<compile_context>
chip_gen: v7x
topology: tpu7x:2x2x1
jax: 0.10.0
libtpu: 0.0.40
codegen_flags: <defaults>
</compile_context>

<pallas_src>
import functools

import jax
import jax.numpy as jnp
from jax import lax
from jax.experimental import pallas as pl
from jax.experimental.pallas import tpu as pltpu


def _round_up(x, m):
    return (x + m - 1) // m * m


# ---------------------------------------------------------------------------
# Fused Pallas kernel: conv1 + ReLU + conv2 + residual + ReLU for one batch.
# ---------------------------------------------------------------------------
def _fused_resblock_kernel(xp_ref, w1_ref, b1_ref, w2_ref, b2_ref, mask_ref,
                           out_ref, pt_ref, hp_ref,
                           *, shifts, c, k3c, roff, l_out):
    kpad = pt_ref.shape[0]

    # Zero the padded tail of the contraction dim (rows [k3c, kpad) are never
    # written below).  Done unconditionally each step so it is correct even
    # when the "parallel" grid is sharded across cores.
    if kpad > k3c:
        pt_ref[k3c:, :] = jnp.zeros((kpad - k3c, l_out), jnp.float32)

    # Zero-padded conv1-activation volume (VMEM scratch is uninitialized).
    hp_ref[...] = jnp.zeros_like(hp_ref)

    mask = mask_ref[...]                     # (1, L): 1.0 on valid output lanes

    # ---- conv1: in-VMEM im2col (lane-shifted slices) + one MXU matmul ------
    for t, s in enumerate(shifts):
        pt_ref[t * c:(t + 1) * c, :] = xp_ref[:, s:s + l_out]
    h = jnp.dot(w1_ref[...], pt_ref[...], preferred_element_type=jnp.float32)
    h = jnp.maximum(h + b1_ref[...], 0.0)
    # Zero the halo/garbage lanes and place h at the padded-volume offset so
    # conv2 sees a correctly zero-padded activation volume.
    hp_ref[:, roff:roff + l_out] = h * mask

    # ---- conv2 + bias + residual + ReLU ------------------------------------
    for t, s in enumerate(shifts):
        pt_ref[t * c:(t + 1) * c, :] = hp_ref[:, s:s + l_out]
    acc = jnp.dot(w2_ref[...], pt_ref[...], preferred_element_type=jnp.float32)
    acc = acc + b2_ref[...] + xp_ref[:, roff:roff + l_out]     # residual = x
    out_ref[...] = jnp.maximum(acc, 0.0).astype(out_ref.dtype)


# ---------------------------------------------------------------------------
# Wrapper: layout prep (pad + flatten spatial onto lanes), weight packing.
# ---------------------------------------------------------------------------
def res_block_3d_no_bn(x, w1, b1, w2, b2):
    """x: (N, C, D, H, W) float32 (PyTorch NCDHW). Returns same shape/dtype."""
    N, C, D, H, W = x.shape
    Cout, Cin, K, _, _ = w1.shape
    assert Cout == C and Cin == C
    p = K // 2
    Dp, Hp, Wp = D + 2 * p, H + 2 * p, W + 2 * p
    hpwp = Hp * Wp
    k3c = K * K * K * C
    kpad = _round_up(k3c, 128)                 # padded contraction dim
    l_out = _round_up(D * hpwp, 128)           # lane-dense output width
    s_max = (K - 1) * (hpwp + Wp + 1)          # largest tap lane-shift
    l_vol = _round_up(s_max + l_out, 128)      # padded/flattened slab width
    roff = p * (hpwp + Wp + 1)                 # (p,p,p) offset in flat coords
    shifts = tuple(kd * hpwp + kh * Wp + kw
                   for kd in range(K) for kh in range(K) for kw in range(K))

    f32 = jnp.float32
    # Zero-pad the volume once and flatten (Dp,Hp,Wp) onto the lane axis.
    xp = jnp.pad(x.astype(f32), ((0, 0), (0, 0), (p, p), (p, p), (p, p)))
    xp = xp.reshape(N, C, Dp * hpwp)
    xp = jnp.pad(xp, ((0, 0), (0, 0), (0, l_vol - Dp * hpwp)))

    # Conv3d weight (Cout, Cin, kd, kh, kw) -> (Cout, K^3*Cin), tap-major,
    # zero-padded on the contraction dim to a multiple of 128.
    def prep_w(w):
        wt = jnp.transpose(w.astype(f32), (0, 2, 3, 4, 1)).reshape(C, k3c)
        return jnp.pad(wt, ((0, 0), (0, kpad - k3c)))

    w1t, w2t = prep_w(w1), prep_w(w2)
    b1c = b1.astype(f32).reshape(C, 1)
    b2c = b2.astype(f32).reshape(C, 1)

    # Validity mask over output lanes (garbage lanes come from the H/W padding
    # columns of the flattened plane and the round-up to 128).
    lanes = jnp.arange(l_out, dtype=jnp.int32)
    d_i = lanes // hpwp
    r_i = lanes % hpwp
    valid = (d_i < D) & ((r_i // Wp) < H) & ((r_i % Wp) < W)
    mask = valid.astype(f32).reshape(1, l_out)

    # VMEM budget (double-buffered pipeline blocks + scratch), with headroom.
    vmem_need = 4 * (2 * C * l_vol + 2 * C * l_out + 4 * C * kpad + 4 * C
                     + 2 * l_out + kpad * l_out + C * l_vol)
    vmem_limit = int(min(48 * 2**20, max(32 * 2**20, 2 * vmem_need)))

    kernel = functools.partial(_fused_resblock_kernel, shifts=shifts, c=C,
                               k3c=k3c, roff=roff, l_out=l_out)

    out = pl.pallas_call(
        kernel,
        out_shape=jax.ShapeDtypeStruct((N, C, l_out), x.dtype),
        grid=(N,),
        in_specs=[
            pl.BlockSpec((None, C, l_vol), lambda n: (n, 0, 0)),  # padded x
            pl.BlockSpec((C, kpad), lambda n: (0, 0)),            # w1 (packed)
            pl.BlockSpec((C, 1), lambda n: (0, 0)),               # b1
            pl.BlockSpec((C, kpad), lambda n: (0, 0)),            # w2 (packed)
            pl.BlockSpec((C, 1), lambda n: (0, 0)),               # b2
            pl.BlockSpec((1, l_out), lambda n: (0, 0)),           # lane mask
        ],
        out_specs=pl.BlockSpec((None, C, l_out), lambda n: (n, 0, 0)),
        scratch_shapes=[
            pltpu.VMEM((kpad, l_out), jnp.float32),   # im2col patches (reused)
            pltpu.VMEM((C, l_vol), jnp.float32),      # zero-padded conv1 act.
        ],
        compiler_params=pltpu.CompilerParams(
            dimension_semantics=("parallel",),
            vmem_limit_bytes=vmem_limit,
        ),
    )(xp, w1t, b1c, w2t, b2c, mask)

    # Drop padding/garbage lanes and restore (N, C, D, H, W).
    y = out[:, :, :D * hpwp].reshape(N, C, D, Hp, Wp)[:, :, :, :H, :W]
    return y.astype(x.dtype)


# ---------------------------------------------------------------------------
# Pure-JAX reference (for correctness check) and driver
# ---------------------------------------------------------------------------
def _reference(x, w1, b1, w2, b2):
    K = w1.shape[-1]
    p = K // 2
    dn = ("NCDHW", "OIDHW", "NCDHW")

    def conv(inp, w, b):
        out = lax.conv_general_dilated(
            inp, w, window_strides=(1, 1, 1), padding=[(p, p)] * 3,
            dimension_numbers=dn, precision=lax.Precision.HIGHEST)
        return out + b.reshape(1, -1, 1, 1, 1)

    h = jnp.maximum(conv(x, w1, b1), 0.0)
    y = x + conv(h, w2, b2)
    return jnp.maximum(y, 0.0)


if __name__ == "__main__":
    # Small shapes consistent with the module: batch=2, channels=4, spatial=8,
    # kernel_size=3.
    N, C, D, H, W, K = 2, 4, 8, 8, 8, 3

    key = jax.random.PRNGKey(0)
    kx, kw1, kb1, kw2, kb2 = jax.random.split(key, 5)

    x = jax.random.normal(kx, (N, C, D, H, W), dtype=jnp.float32)

    # Deterministic Conv3d-style init: U(-bound, bound), bound = 1/sqrt(fan_in)
    fan_in = C * K * K * K
    bound = 1.0 / (fan_in ** 0.5)
    w1 = jax.random.uniform(kw1, (C, C, K, K, K), jnp.float32, -bound, bound)
    b1 = jax.random.uniform(kb1, (C,), jnp.float32, -bound, bound)
    w2 = jax.random.uniform(kw2, (C, C, K, K, K), jnp.float32, -bound, bound)
    b2 = jax.random.uniform(kb2, (C,), jnp.float32, -bound, bound)

    y = jax.jit(res_block_3d_no_bn)(x, w1, b1, w2, b2)
    y = jax.block_until_ready(y)

    y_ref = _reference(x, w1, b1, w2, b2)
    assert y.shape == x.shape and y.dtype == x.dtype
    assert jnp.allclose(y, y_ref, atol=1e-4, rtol=1e-4), "mismatch vs reference"

    print("KERNEL_OK")
</pallas_src>

<mosaic_0001>
module attributes {stable_mosaic.version = 11 : i64} {
  func.func @_fused_resblock_kernel(%arg0: i32, %arg1: memref<1x4x1152xf32, #tpu.memory_space<vmem>>, %arg2: memref<4x128xf32, #tpu.memory_space<vmem>>, %arg3: memref<4x1xf32, #tpu.memory_space<vmem>>, %arg4: memref<4x128xf32, #tpu.memory_space<vmem>>, %arg5: memref<4x1xf32, #tpu.memory_space<vmem>>, %arg6: memref<1x896xf32, #tpu.memory_space<vmem>>, %arg7: memref<1x4x896xf32, #tpu.memory_space<vmem>>, %arg8: memref<128x896xf32, #tpu.memory_space<vmem>>, %arg9: memref<4x1152xf32, #tpu.memory_space<vmem>>) attributes {dimension_semantics = [#tpu.dimension_semantics<parallel>], iteration_bounds = array<i64: 2>, scalar_prefetch = 0 : i64, scratch_operands = 2 : i64, tpu.core_type = #tpu.core_type<tc>, window_params = [{transform_indices = @transform_0, window_bounds = array<i64: 1, 4, 1152>}, {pipeline_mode = #tpu.pipeline_mode<synchronous>, transform_indices = @transform_1, window_bounds = array<i64: 4, 128>}, {pipeline_mode = #tpu.pipeline_mode<synchronous>, transform_indices = @transform_2, window_bounds = array<i64: 4, 1>}, {pipeline_mode = #tpu.pipeline_mode<synchronous>, transform_indices = @transform_3, window_bounds = array<i64: 4, 128>}, {pipeline_mode = #tpu.pipeline_mode<synchronous>, transform_indices = @transform_4, window_bounds = array<i64: 4, 1>}, {pipeline_mode = #tpu.pipeline_mode<synchronous>, transform_indices = @transform_5, window_bounds = array<i64: 1, 896>}, {transform_indices = @transform_6, window_bounds = array<i64: 1, 4, 896>}]} {
    %cst = arith.constant 0.000000e+00 : f32
    %0 = vector.broadcast %cst : f32 to vector<20x896xf32>
    %c108 = arith.constant 108 : index
    %c0 = arith.constant 0 : index
    %1 = vector.load %arg8[%c108, %c0] : memref<128x896xf32, #tpu.memory_space<vmem>>, vector<20x896xf32>
    tpu.vector_store %arg8[%c108, %c0], %0 {strides = array<i32>} : memref<128x896xf32, #tpu.memory_space<vmem>>, vector<20x896xf32>,
    %cst_0 = arith.constant 0.000000e+00 : f32
    %2 = vector.broadcast %cst_0 : f32 to vector<4x1152xf32>
    %c0_1 = arith.constant 0 : index
    %c0_2 = arith.constant 0 : index
    %3 = vector.load %arg9[%c0_1, %c0_2] : memref<4x1152xf32, #tpu.memory_space<vmem>>, vector<4x1152xf32>
    tpu.vector_store %arg9[%c0_1, %c0_2], %2 {strides = array<i32>} : memref<4x1152xf32, #tpu.memory_space<vmem>>, vector<4x1152xf32>,
    %c0_3 = arith.constant 0 : index
    %c0_4 = arith.constant 0 : index
    %4 = vector.load %arg6[%c0_3, %c0_4] : memref<1x896xf32, #tpu.memory_space<vmem>>, vector<1x896xf32>
    %c0_5 = arith.constant 0 : index
    %c0_6 = arith.constant 0 : index
    %c0_7 = arith.constant 0 : index
    %5 = vector.load %arg1[%c0_5, %c0_6, %c0_7] : memref<1x4x1152xf32, #tpu.memory_space<vmem>>, vector<1x4x896xf32>
    %6 = vector.shape_cast %5 : vector<1x4x896xf32> to vector<4x896xf32>
    %c0_8 = arith.constant 0 : index
    %c0_9 = arith.constant 0 : index
    %7 = vector.load %arg8[%c0_8, %c0_9] : memref<128x896xf32, #tpu.memory_space<vmem>>, vector<4x896xf32>
    tpu.vector_store %arg8[%c0_8, %c0_9], %6 {strides = array<i32>} : memref<128x896xf32, #tpu.memory_space<vmem>>, vector<4x896xf32>,
    %c0_10 = arith.constant 0 : index
    %c0_11 = arith.constant 0 : index
    %c1 = arith.constant 1 : index
    %8 = vector.load %arg1[%c0_10, %c0_11, %c1] : memref<1x4x1152xf32, #tpu.memory_space<vmem>>, vector<1x4x896xf32>
    %9 = vector.shape_cast %8 : vector<1x4x896xf32> to vector<4x896xf32>
    %c4 = arith.constant 4 : index
    %c0_12 = arith.constant 0 : index
    %10 = vector.load %arg8[%c4, %c0_12] : memref<128x896xf32, #tpu.memory_space<vmem>>, vector<4x896xf32>
    tpu.vector_store %arg8[%c4, %c0_12], %9 {strides = array<i32>} : memref<128x896xf32, #tpu.memory_space<vmem>>, vector<4x896xf32>,
    %c0_13 = arith.constant 0 : index
    %c0_14 = arith.constant 0 : index
    %c2 = arith.constant 2 : index
    %11 = vector.load %arg1[%c0_13, %c0_14, %c2] : memref<1x4x1152xf32, #tpu.memory_space<vmem>>, vector<1x4x896xf32>
    %12 = vector.shape_cast %11 : vector<1x4x896xf32> to vector<4x896xf32>
    %c8 = arith.constant 8 : index
    %c0_15 = arith.constant 0 : index
    %13 = vector.load %arg8[%c8, %c0_15] : memref<128x896xf32, #tpu.memory_space<vmem>>, vector<4x896xf32>
    tpu.vector_store %arg8[%c8, %c0_15], %12 {strides = array<i32>} : memref<128x896xf32, #tpu.memory_space<vmem>>, vector<4x896xf32>,
    %c0_16 = arith.constant 0 : index
    %c0_17 = arith.constant 0 : index
    %c10 = arith.constant 10 : index
    %14 = vector.load %arg1[%c0_16, %c0_17, %c10] : memref<1x4x1152xf32, #tpu.memory_space<vmem>>, vector<1x4x896xf32>
    %15 = vector.shape_cast %14 : vector<1x4x896xf32> to vector<4x896xf32>
    %c12 = arith.constant 12 : index
    %c0_18 = arith.constant 0 : index
    %16 = vector.load %arg8[%c12, %c0_18] : memref<128x896xf32, #tpu.memory_space<vmem>>, vector<4x896xf32>
    tpu.vector_store %arg8[%c12, %c0_18], %15 {strides = array<i32>} : memref<128x896xf32, #tpu.memory_space<vmem>>, vector<4x896xf32>,
    %c0_19 = arith.constant 0 : index
    %c0_20 = arith.constant 0 : index
    %c11 = arith.constant 11 : index
    %17 = vector.load %arg1[%c0_19, %c0_20, %c11] : memref<1x4x1152xf32, #tpu.memory_space<vmem>>, vector<1x4x896xf32>
    %18 = vector.shape_cast %17 : vector<1x4x896xf32> to vector<4x896xf32>
    %c16 = arith.constant 16 : index
    %c0_21 = arith.constant 0 : index
    %19 = vector.load %arg8[%c16, %c0_21] : memref<128x896xf32, #tpu.memory_space<vmem>>, vector<4x896xf32>
    tpu.vector_store %arg8[%c16, %c0_21], %18 {strides = array<i32>} : memref<128x896xf32, #tpu.memory_space<vmem>>, vector<4x896xf32>,
    %c0_22 = arith.constant 0 : index
    %c0_23 = arith.constant 0 : index
    %c12_24 = arith.constant 12 : index
    %20 = vector.load %arg1[%c0_22, %c0_23, %c12_24] : memref<1x4x1152xf32, #tpu.memory_space<vmem>>, vector<1x4x896xf32>
    %21 = vector.shape_cast %20 : vector<1x4x896xf32> to vector<4x896xf32>
    %c20 = arith.constant 20 : index
    %c0_25 = arith.constant 0 : index
    %22 = vector.load %arg8[%c20, %c0_25] : memref<128x896xf32, #tpu.memory_space<vmem>>, vector<4x896xf32>
    tpu.vector_store %arg8[%c20, %c0_25], %21 {strides = array<i32>} : memref<128x896xf32, #tpu.memory_space<vmem>>, vector<4x896xf32>,
    %c0_26 = arith.constant 0 : index
    %c0_27 = arith.constant 0 : index
    %c20_28 = arith.constant 20 : index
    %23 = vector.load %arg1[%c0_26, %c0_27, %c20_28] : memref<1x4x1152xf32, #tpu.memory_space<vmem>>, vector<1x4x896xf32>
    %24 = vector.shape_cast %23 : vector<1x4x896xf32> to vector<4x896xf32>
    %c24 = arith.constant 24 : index
    %c0_29 = arith.constant 0 : index
    %25 = vector.load %arg8[%c24, %c0_29] : memref<128x896xf32, #tpu.memory_space<vmem>>, vector<4x896xf32>
    tpu.vector_store %arg8[%c24, %c0_29], %24 {strides = array<i32>} : memref<128x896xf32, #tpu.memory_space<vmem>>, vector<4x896xf32>,
    %c0_30 = arith.constant 0 : index
    %c0_31 = arith.constant 0 : index
    %c21 = arith.constant 21 : index
    %26 = vector.load %arg1[%c0_30, %c0_31, %c21] : memref<1x4x1152xf32, #tpu.memory_space<vmem>>, vector<1x4x896xf32>
    %27 = vector.shape_cast %26 : vector<1x4x896xf32> to vector<4x896xf32>
    %c28 = arith.constant 28 : index
    %c0_32 = arith.constant 0 : index
    %28 = vector.load %arg8[%c28, %c0_32] : memref<128x896xf32, #tpu.memory_space<vmem>>, vector<4x896xf32>
    tpu.vector_store %arg8[%c28, %c0_32], %27 {strides = array<i32>} : memref<128x896xf32, #tpu.memory_space<vmem>>, vector<4x896xf32>,
    %c0_33 = arith.constant 0 : index
    %c0_34 = arith.constant 0 : index
    %c22 = arith.constant 22 : index
    %29 = vector.load %arg1[%c0_33, %c0_34, %c22] : memref<1x4x1152xf32, #tpu.memory_space<vmem>>, vector<1x4x896xf32>
    %30 = vector.shape_cast %29 : vector<1x4x896xf32> to vector<4x896xf32>
    %c32 = arith.constant 32 : index
    %c0_35 = arith.constant 0 : index
    %31 = vector.load %arg8[%c32, %c0_35] : memref<128x896xf32, #tpu.memory_space<vmem>>, vector<4x896xf32>
    tpu.vector_store %arg8[%c32, %c0_35], %30 {strides = array<i32>} : memref<128x896xf32, #tpu.memory_space<vmem>>, vector<4x896xf32>,
    %c0_36 = arith.constant 0 : index
    %c0_37 = arith.constant 0 : index
    %c100 = arith.constant 100 : index
    %32 = vector.load %arg1[%c0_36, %c0_37, %c100] : memref<1x4x1152xf32, #tpu.memory_space<vmem>>, vector<1x4x896xf32>
    %33 = vector.shape_cast %32 : vector<1x4x896xf32> to vector<4x896xf32>
    %c36 = arith.constant 36 : index
    %c0_38 = arith.constant 0 : index
    %34 = vector.load %arg8[%c36, %c0_38] : memref<128x896xf32, #tpu.memory_space<vmem>>, vector<4x896xf32>
    tpu.vector_store %arg8[%c36, %c0_38], %33 {strides = array<i32>} : memref<128x896xf32, #tpu.memory_space<vmem>>, vector<4x896xf32>,
    %c0_39 = arith.constant 0 : index
    %c0_40 = arith.constant 0 : index
    %c101 = arith.constant 101 : index
    %35 = vector.load %arg1[%c0_39, %c0_40, %c101] : memref<1x4x1152xf32, #tpu.memory_space<vmem>>, vector<1x4x896xf32>
    %36 = vector.shape_cast %35 : vector<1x4x896xf32> to vector<4x896xf32>
    %c40 = arith.constant 40 : index
    %c0_41 = arith.constant 0 : index
    %37 = vector.load %arg8[%c40, %c0_41] : memref<128x896xf32, #tpu.memory_space<vmem>>, vector<4x896xf32>
    tpu.vector_store %arg8[%c40, %c0_41], %36 {strides = array<i32>} : memref<128x896xf32, #tpu.memory_space<vmem>>, vector<4x896xf32>,
    %c0_42 = arith.constant 0 : index
    %c0_43 = arith.constant 0 : index
    %c102 = arith.constant 102 : index
    %38 = vector.load %arg1[%c0_42, %c0_43, %c102] : memref<1x4x1152xf32, #tpu.memory_space<vmem>>, vector<1x4x896xf32>
    %39 = vector.shape_cast %38 : vector<1x4x896xf32> to vector<4x896xf32>
    %c44 = arith.constant 44 : index
    %c0_44 = arith.constant 0 : index
    %40 = vector.load %arg8[%c44, %c0_44] : memref<128x896xf32, #tpu.memory_space<vmem>>, vector<4x896xf32>
    tpu.vector_store %arg8[%c44, %c0_44], %39 {strides = array<i32>} : memref<128x896xf32, #tpu.memory_space<vmem>>, vector<4x896xf32>,
    %c0_45 = arith.constant 0 : index
    %c0_46 = arith.constant 0 : index
    %c110 = arith.constant 110 : index
    %41 = vector.load %arg1[%c0_45, %c0_46, %c110] : memref<1x4x1152xf32, #tpu.memory_space<vmem>>, vector<1x4x896xf32>
    %42 = vector.shape_cast %41 : vector<1x4x896xf32> to vector<4x896xf32>
    %c48 = arith.constant 48 : index
    %c0_47 = arith.constant 0 : index
    %43 = vector.load %arg8[%c48, %c0_47] : memref<128x896xf32, #tpu.memory_space<vmem>>, vector<4x896xf32>
    tpu.vector_store %arg8[%c48, %c0_47], %42 {strides = array<i32>} : memref<128x896xf32, #tpu.memory_space<vmem>>, vector<4x896xf32>,
    %c0_48 = arith.constant 0 : index
    %c0_49 = arith.constant 0 : index
    %c111 = arith.constant 111 : index
    %44 = vector.load %arg1[%c0_48, %c0_49, %c111] : memref<1x4x1152xf32, #tpu.memory_space<vmem>>, vector<1x4x896xf32>
    %45 = vector.shape_cast %44 : vector<1x4x896xf32> to vector<4x896xf32>
    %c52 = arith.constant 52 : index
    %c0_50 = arith.constant 0 : index
    %46 = vector.load %arg8[%c52, %c0_50] : memref<128x896xf32, #tpu.memory_space<vmem>>, vector<4x896xf32>
    tpu.vector_store %arg8[%c52, %c0_50], %45 {strides = array<i32>} : memref<128x896xf32, #tpu.memory_space<vmem>>, vector<4x896xf32>,
    %c0_51 = arith.constant 0 : index
    %c0_52 = arith.constant 0 : index
    %c112 = arith.constant 112 : index
    %47 = vector.load %arg1[%c0_51, %c0_52, %c112] : memref<1x4x1152xf32, #tpu.memory_space<vmem>>, vector<1x4x896xf32>
    %48 = vector.shape_cast %47 : vector<1x4x896xf32> to vector<4x896xf32>
    %c56 = arith.constant 56 : index
    %c0_53 = arith.constant 0 : index
    %49 = vector.load %arg8[%c56, %c0_53] : memref<128x896xf32, #tpu.memory_space<vmem>>, vector<4x896xf32>
    tpu.vector_store %arg8[%c56, %c0_53], %48 {strides = array<i32>} : memref<128x896xf32, #tpu.memory_space<vmem>>, vector<4x896xf32>,
    %c0_54 = arith.constant 0 : index
    %c0_55 = arith.constant 0 : index
    %c120 = arith.constant 120 : index
    %50 = vector.load %arg1[%c0_54, %c0_55, %c120] : memref<1x4x1152xf32, #tpu.memory_space<vmem>>, vector<1x4x896xf32>
    %51 = vector.shape_cast %50 : vector<1x4x896xf32> to vector<4x896xf32>
    %c60 = arith.constant 60 : index
    %c0_56 = arith.constant 0 : index
    %52 = vector.load %arg8[%c60, %c0_56] : memref<128x896xf32, #tpu.memory_space<vmem>>, vector<4x896xf32>
    tpu.vector_store %arg8[%c60, %c0_56], %51 {strides = array<i32>} : memref<128x896xf32, #tpu.memory_space<vmem>>, vector<4x896xf32>,
    %c0_57 = arith.constant 0 : index
    %c0_58 = arith.constant 0 : index
    %c121 = arith.constant 121 : index
    %53 = vector.load %arg1[%c0_57, %c0_58, %c121] : memref<1x4x1152xf32, #tpu.memory_space<vmem>>, vector<1x4x896xf32>
    %54 = vector.shape_cast %53 : vector<1x4x896xf32> to vector<4x896xf32>
    %c64 = arith.constant 64 : index
    %c0_59 = arith.constant 0 : index
    %55 = vector.load %arg8[%c64, %c0_59] : memref<128x896xf32, #tpu.memory_space<vmem>>, vector<4x896xf32>
    tpu.vector_store %arg8[%c64, %c0_59], %54 {strides = array<i32>} : memref<128x896xf32, #tpu.memory_space<vmem>>, vector<4x896xf32>,
    %c0_60 = arith.constant 0 : index
    %c0_61 = arith.constant 0 : index
    %c122 = arith.constant 122 : index
    %56 = vector.load %arg1[%c0_60, %c0_61, %c122] : memref<1x4x1152xf32, #tpu.memory_space<vmem>>, vector<1x4x896xf32>
    %57 = vector.shape_cast %56 : vector<1x4x896xf32> to vector<4x896xf32>
    %c68 = arith.constant 68 : index
    %c0_62 = arith.constant 0 : index
    %58 = vector.load %arg8[%c68, %c0_62] : memref<128x896xf32, #tpu.memory_space<vmem>>, vector<4x896xf32>
    tpu.vector_store %arg8[%c68, %c0_62], %57 {strides = array<i32>} : memref<128x896xf32, #tpu.memory_space<vmem>>, vector<4x896xf32>,
    %c0_63 = arith.constant 0 : index
    %c0_64 = arith.constant 0 : index
    %c200 = arith.constant 200 : index
    %59 = vector.load %arg1[%c0_63, %c0_64, %c200] : memref<1x4x1152xf32, #tpu.memory_space<vmem>>, vector<1x4x896xf32>
    %60 = vector.shape_cast %59 : vector<1x4x896xf32> to vector<4x896xf32>
    %c72 = arith.constant 72 : index
    %c0_65 = arith.constant 0 : index
    %61 = vector.load %arg8[%c72, %c0_65] : memref<128x896xf32, #tpu.memory_space<vmem>>, vector<4x896xf32>
    tpu.vector_store %arg8[%c72, %c0_65], %60 {strides = array<i32>} : memref<128x896xf32, #tpu.memory_space<vmem>>, vector<4x896xf32>,
    %c0_66 = arith.constant 0 : index
    %c0_67 = arith.constant 0 : index
    %c201 = arith.constant 201 : index
    %62 = vector.load %arg1[%c0_66, %c0_67, %c201] : memref<1x4x1152xf32, #tpu.memory_space<vmem>>, vector<1x4x896xf32>
    %63 = vector.shape_cast %62 : vector<1x4x896xf32> to vector<4x896xf32>
    %c76 = arith.constant 76 : index
    %c0_68 = arith.constant 0 : index
    %64 = vector.load %arg8[%c76, %c0_68] : memref<128x896xf32, #tpu.memory_space<vmem>>, vector<4x896xf32>
    tpu.vector_store %arg8[%c76, %c0_68], %63 {strides = array<i32>} : memref<128x896xf32, #tpu.memory_space<vmem>>, vector<4x896xf32>,
    %c0_69 = arith.constant 0 : index
    %c0_70 = arith.constant 0 : index
    %c202 = arith.constant 202 : index
    %65 = vector.load %arg1[%c0_69, %c0_70, %c202] : memref<1x4x1152xf32, #tpu.memory_space<vmem>>, vector<1x4x896xf32>
    %66 = vector.shape_cast %65 : vector<1x4x896xf32> to vector<4x896xf32>
    %c80 = arith.constant 80 : index
    %c0_71 = arith.constant 0 : index
    %67 = vector.load %arg8[%c80, %c0_71] : memref<128x896xf32, #tpu.memory_space<vmem>>, vector<4x896xf32>
    tpu.vector_store %arg8[%c80, %c0_71], %66 {strides = array<i32>} : memref<128x896xf32, #tpu.memory_space<vmem>>, vector<4x896xf32>,
    %c0_72 = arith.constant 0 : index
    %c0_73 = arith.constant 0 : index
    %c210 = arith.constant 210 : index
    %68 = vector.load %arg1[%c0_72, %c0_73, %c210] : memref<1x4x1152xf32, #tpu.memory_space<vmem>>, vector<1x4x896xf32>
    %69 = vector.shape_cast %68 : vector<1x4x896xf32> to vector<4x896xf32>
    %c84 = arith.constant 84 : index
    %c0_74 = arith.constant 0 : index
    %70 = vector.load %arg8[%c84, %c0_74] : memref<128x896xf32, #tpu.memory_space<vmem>>, vector<4x896xf32>
    tpu.vector_store %arg8[%c84, %c0_74], %69 {strides = array<i32>} : memref<128x896xf32, #tpu.memory_space<vmem>>, vector<4x896xf32>,
    %c0_75 = arith.constant 0 : index
    %c0_76 = arith.constant 0 : index
    %c211 = arith.constant 211 : index
    %71 = vector.load %arg1[%c0_75, %c0_76, %c211] : memref<1x4x1152xf32, #tpu.memory_space<vmem>>, vector<1x4x896xf32>
    %72 = vector.shape_cast %71 : vector<1x4x896xf32> to vector<4x896xf32>
    %c88 = arith.constant 88 : index
    %c0_77 = arith.constant 0 : index
    %73 = vector.load %arg8[%c88, %c0_77] : memref<128x896xf32, #tpu.memory_space<vmem>>, vector<4x896xf32>
    tpu.vector_store %arg8[%c88, %c0_77], %72 {strides = array<i32>} : memref<128x896xf32, #tpu.memory_space<vmem>>, vector<4x896xf32>,
    %c0_78 = arith.constant 0 : index
    %c0_79 = arith.constant 0 : index
    %c212 = arith.constant 212 : index
    %74 = vector.load %arg1[%c0_78, %c0_79, %c212] : memref<1x4x1152xf32, #tpu.memory_space<vmem>>, vector<1x4x896xf32>
    %75 = vector.shape_cast %74 : vector<1x4x896xf32> to vector<4x896xf32>
    %c92 = arith.constant 92 : index
    %c0_80 = arith.constant 0 : index
    %76 = vector.load %arg8[%c92, %c0_80] : memref<128x896xf32, #tpu.memory_space<vmem>>, vector<4x896xf32>
    tpu.vector_store %arg8[%c92, %c0_80], %75 {strides = array<i32>} : memref<128x896xf32, #tpu.memory_space<vmem>>, vector<4x896xf32>,
    %c0_81 = arith.constant 0 : index
    %c0_82 = arith.constant 0 : index
    %c220 = arith.constant 220 : index
    %77 = vector.load %arg1[%c0_81, %c0_82, %c220] : memref<1x4x1152xf32, #tpu.memory_space<vmem>>, vector<1x4x896xf32>
    %78 = vector.shape_cast %77 : vector<1x4x896xf32> to vector<4x896xf32>
    %c96 = arith.constant 96 : index
    %c0_83 = arith.constant 0 : index
    %79 = vector.load %arg8[%c96, %c0_83] : memref<128x896xf32, #tpu.memory_space<vmem>>, vector<4x896xf32>
    tpu.vector_store %arg8[%c96, %c0_83], %78 {strides = array<i32>} : memref<128x896xf32, #tpu.memory_space<vmem>>, vector<4x896xf32>,
    %c0_84 = arith.constant 0 : index
    %c0_85 = arith.constant 0 : index
    %c221 = arith.constant 221 : index
    %80 = vector.load %arg1[%c0_84, %c0_85, %c221] : memref<1x4x1152xf32, #tpu.memory_space<vmem>>, vector<1x4x896xf32>
    %81 = vector.shape_cast %80 : vector<1x4x896xf32> to vector<4x896xf32>
    %c100_86 = arith.constant 100 : index
    %c0_87 = arith.constant 0 : index
    %82 = vector.load %arg8[%c100_86, %c0_87] : memref<128x896xf32, #tpu.memory_space<vmem>>, vector<4x896xf32>
    tpu.vector_store %arg8[%c100_86, %c0_87], %81 {strides = array<i32>} : memref<128x896xf32, #tpu.memory_space<vmem>>, vector<4x896xf32>,
    %c0_88 = arith.constant 0 : index
    %c0_89 = arith.constant 0 : index
    %c222 = arith.constant 222 : index
    %83 = vector.load %arg1[%c0_88, %c0_89, %c222] : memref<1x4x1152xf32, #tpu.memory_space<vmem>>, vector<1x4x896xf32>
    %84 = vector.shape_cast %83 : vector<1x4x896xf32> to vector<4x896xf32>
    %c104 = arith.constant 104 : index
    %c0_90 = arith.constant 0 : index
    %85 = vector.load %arg8[%c104, %c0_90] : memref<128x896xf32, #tpu.memory_space<vmem>>, vector<4x896xf32>
    tpu.vector_store %arg8[%c104, %c0_90], %84 {strides = array<i32>} : memref<128x896xf32, #tpu.memory_space<vmem>>, vector<4x896xf32>,
    %c0_91 = arith.constant 0 : index
    %c0_92 = arith.constant 0 : index
    %86 = vector.load %arg2[%c0_91, %c0_92] : memref<4x128xf32, #tpu.memory_space<vmem>>, vector<4x128xf32>
    %c0_93 = arith.constant 0 : index
    %c0_94 = arith.constant 0 : index
    %87 = vector.load %arg8[%c0_93, %c0_94] : memref<128x896xf32, #tpu.memory_space<vmem>>, vector<128x896xf32>
    %cst_95 = arith.constant dense<0.000000e+00> : vector<4x896xf32>
    %88 = tpu.matmul %86, %87, %cst_95 {dimension_numbers = #tpu.dot_dimension_numbers<[1], [0], [0], [1], [0, 0, 1, 1], [], []>} : vector<4x128xf32>, vector<128x896xf32>, vector<4x896xf32> -> vector<4x896xf32>
    %c0_96 = arith.constant 0 : index
    %c0_97 = arith.constant 0 : index
    %89 = vector.load %arg3[%c0_96, %c0_97] : memref<4x1xf32, #tpu.memory_space<vmem>>, vector<4x1xf32>
    %90 = vector.broadcast %89 : vector<4x1xf32> to vector<4x896xf32>
    %91 = arith.addf %88, %90 : vector<4x896xf32>
    %cst_98 = arith.constant 0.000000e+00 : f32
    %92 = vector.broadcast %cst_98 : f32 to vector<4x896xf32>
    %93 = arith.maximumf %91, %92 : vector<4x896xf32>
    %94 = vector.broadcast %4 : vector<1x896xf32> to vector<4x896xf32>
    %95 = arith.mulf %93, %94 : vector<4x896xf32>
    %c0_99 = arith.constant 0 : index
    %c111_100 = arith.constant 111 : index
    %96 = vector.load %arg9[%c0_99, %c111_100] : memref<4x1152xf32, #tpu.memory_space<vmem>>, vector<4x896xf32>
    tpu.vector_store %arg9[%c0_99, %c111_100], %95 {strides = array<i32>} : memref<4x1152xf32, #tpu.memory_space<vmem>>, vector<4x896xf32>,
    %c0_101 = arith.constant 0 : index
    %c0_102 = arith.constant 0 : index
    %97 = vector.load %arg9[%c0_101, %c0_102] : memref<4x1152xf32, #tpu.memory_space<vmem>>, vector<4x896xf32>
    %c0_103 = arith.constant 0 : index
    %c0_104 = arith.constant 0 : index
    %98 = vector.load %arg8[%c0_103, %c0_104] : memref<128x896xf32, #tpu.memory_space<vmem>>, vector<4x896xf32>
    tpu.vector_store %arg8[%c0_103, %c0_104], %97 {strides = array<i32>} : memref<128x896xf32, #tpu.memory_space<vmem>>, vector<4x896xf32>,
    %c0_105 = arith.constant 0 : index
    %c1_106 = arith.constant 1 : index
    %99 = vector.load %arg9[%c0_105, %c1_106] : memref<4x1152xf32, #tpu.memory_space<vmem>>, vector<4x896xf32>
    %c4_107 = arith.constant 4 : index
    %c0_108 = arith.constant 0 : index
    %100 = vector.load %arg8[%c4_107, %c0_108] : memref<128x896xf32, #tpu.memory_space<vmem>>, vector<4x896xf32>
    tpu.vector_store %arg8[%c4_107, %c0_108], %99 {strides = array<i32>} : memref<128x896xf32, #tpu.memory_space<vmem>>, vector<4x896xf32>,
    %c0_109 = arith.constant 0 : index
    %c2_110 = arith.constant 2 : index
    %101 = vector.load %arg9[%c0_109, %c2_110] : memref<4x1152xf32, #tpu.memory_space<vmem>>, vector<4x896xf32>
    %c8_111 = arith.constant 8 : index
    %c0_112 = arith.constant 0 : index
    %102 = vector.load %arg8[%c8_111, %c0_112] : memref<128x896xf32, #tpu.memory_space<vmem>>, vector<4x896xf32>
    tpu.vector_store %arg8[%c8_111, %c0_112], %101 {strides = array<i32>} : memref<128x896xf32, #tpu.memory_space<vmem>>, vector<4x896xf32>,
    %c0_113 = arith.constant 0 : index
    %c10_114 = arith.constant 10 : index
    %103 = vector.load %arg9[%c0_113, %c10_114] : memref<4x1152xf32, #tpu.memory_space<vmem>>, vector<4x896xf32>
    %c12_115 = arith.constant 12 : index
    %c0_116 = arith.constant 0 : index
    %104 = vector.load %arg8[%c12_115, %c0_116] : memref<128x896xf32, #tpu.memory_space<vmem>>, vector<4x896xf32>
    tpu.vector_store %arg8[%c12_115, %c0_116], %103 {strides = array<i32>} : memref<128x896xf32, #tpu.memory_space<vmem>>, vector<4x896xf32>,
    %c0_117 = arith.constant 0 : index
    %c11_118 = arith.constant 11 : index
    %105 = vector.load %arg9[%c0_117, %c11_118] : memref<4x1152xf32, #tpu.memory_space<vmem>>, vector<4x896xf32>
    %c16_119 = arith.constant 16 : index
    %c0_120 = arith.constant 0 : index
    %106 = vector.load %arg8[%c16_119, %c0_120] : memref<128x896xf32, #tpu.memory_space<vmem>>, vector<4x896xf32>
    tpu.vector_store %arg8[%c16_119, %c0_120], %105 {strides = array<i32>} : memref<128x896xf32, #tpu.memory_space<vmem>>, vector<4x896xf32>,
    %c0_121 = arith.constant 0 : index
    %c12_122 = arith.constant 12 : index
    %107 = vector.load %arg9[%c0_121, %c12_122] : memref<4x1152xf32, #tpu.memory_space<vmem>>, vector<4x896xf32>
    %c20_123 = arith.constant 20 : index
    %c0_124 = arith.constant 0 : index
    %108 = vector.load %arg8[%c20_123, %c0_124] : memref<128x896xf32, #tpu.memory_space<vmem>>, vector<4x896xf32>
    tpu.vector_store %arg8[%c20_123, %c0_124], %107 {strides = array<i32>} : memref<128x896xf32, #tpu.memory_space<vmem>>, vector<4x896xf32>,
    %c0_125 = arith.constant 0 : index
    %c20_126 = arith.constant 20 : index
    %109 = vector.load %arg9[%c0_125, %c20_126] : memref<4x1152xf32, #tpu.memory_space<vmem>>, vector<4x896xf32>
    %c24_127 = arith.constant 24 : index
    %c0_128 = arith.constant 0 : index
    %110 = vector.load %arg8[%c24_127, %c0_128] : memref<128x896xf32, #tpu.memory_space<vmem>>, vector<4x896xf32>
    tpu.vector_store %arg8[%c24_127, %c0_128], %109 {strides = array<i32>} : memref<128x896xf32, #tpu.memory_space<vmem>>, vector<4x896xf32>,
    %c0_129 = arith.constant 0 : index
    %c21_130 = arith.constant 21 : index
    %111 = vector.load %arg9[%c0_129, %c21_130] : memref<4x1152xf32, #tpu.memory_space<vmem>>, vector<4x896xf32>
    %c28_131 = arith.constant 28 : index
    %c0_132 = arith.constant 0 : index
    %112 = vector.load %arg8[%c28_131, %c0_132] : memref<128x896xf32, #tpu.memory_space<vmem>>, vector<4x896xf32>
    tpu.vector_store %arg8[%c28_131, %c0_132], %111 {strides = array<i32>} : memref<128x896xf32, #tpu.memory_space<vmem>>, vector<4x896xf32>,
    %c0_133 = arith.constant 0 : index
    %c22_134 = arith.constant 22 : index
    %113 = vector.load %arg9[%c0_133, %c22_134] : memref<4x1152xf32, #tpu.memory_space<vmem>>, vector<4x896xf32>
    %c32_135 = arith.constant 32 : index
    %c0_136 = arith.constant 0 : index
    %114 = vector.load %arg8[%c32_135, %c0_136] : memref<128x896xf32, #tpu.memory_space<vmem>>, vector<4x896xf32>
    tpu.vector_store %arg8[%c32_135, %c0_136], %113 {strides = array<i32>} : memref<128x896xf32, #tpu.memory_space<vmem>>, vector<4x896xf32>,
    %c0_137 = arith.constant 0 : index
    %c100_138 = arith.constant 100 : index
    %115 = vector.load %arg9[%c0_137, %c100_138] : memref<4x1152xf32, #tpu.memory_space<vmem>>, vector<4x896xf32>
    %c36_139 = arith.constant 36 : index
    %c0_140 = arith.constant 0 : index
    %116 = vector.load %arg8[%c36_139, %c0_140] : memref<128x896xf32, #tpu.memory_space<vmem>>, vector<4x896xf32>
    tpu.vector_store %arg8[%c36_139, %c0_140], %115 {strides = array<i32>} : memref<128x896xf32, #tpu.memory_space<vmem>>, vector<4x896xf32>,
    %c0_141 = arith.constant 0 : index
    %c101_142 = arith.constant 101 : index
    %117 = vector.load %arg9[%c0_141, %c101_142] : memref<4x1152xf32, #tpu.memory_space<vmem>>, vector<4x896xf32>
    %c40_143 = arith.constant 40 : index
    %c0_144 = arith.constant 0 : index
    %118 = vector.load %arg8[%c40_143, %c0_144] : memref<128x896xf32, #tpu.memory_space<vmem>>, vector<4x896xf32>
    tpu.vector_store %arg8[%c40_143, %c0_144], %117 {strides = array<i32>} : memref<128x896xf32, #tpu.memory_space<vmem>>, vector<4x896xf32>,
    %c0_145 = arith.constant 0 : index
    %c102_146 = arith.constant 102 : index
    %119 = vector.load %arg9[%c0_145, %c102_146] : memref<4x1152xf32, #tpu.memory_space<vmem>>, vector<4x896xf32>
    %c44_147 = arith.constant 44 : index
    %c0_148 = arith.constant 0 : index
    %120 = vector.load %arg8[%c44_147, %c0_148] : memref<128x896xf32, #tpu.memory_space<vmem>>, vector<4x896xf32>
    tpu.vector_store %arg8[%c44_147, %c0_148], %119 {strides = array<i32>} : memref<128x896xf32, #tpu.memory_space<vmem>>, vector<4x896xf32>,
    %c0_149 = arith.constant 0 : index
    %c110_150 = arith.constant 110 : index
    %121 = vector.load %arg9[%c0_149, %c110_150] : memref<4x1152xf32, #tpu.memory_space<vmem>>, vector<4x896xf32>
    %c48_151 = arith.constant 48 : index
    %c0_152 = arith.constant 0 : index
    %122 = vector.load %arg8[%c48_151, %c0_152] : memref<128x896xf32, #tpu.memory_space<vmem>>, vector<4x896xf32>
    tpu.vector_store %arg8[%c48_151, %c0_152], %121 {strides = array<i32>} : memref<128x896xf32, #tpu.memory_space<vmem>>, vector<4x896xf32>,
    %c0_153 = arith.constant 0 : index
    %c111_154 = arith.constant 111 : index
    %123 = vector.load %arg9[%c0_153, %c111_154] : memref<4x1152xf32, #tpu.memory_space<vmem>>, vector<4x896xf32>
    %c52_155 = arith.constant 52 : index
    %c0_156 = arith.constant 0 : index
    %124 = vector.load %arg8[%c52_155, %c0_156] : memref<128x896xf32, #tpu.memory_space<vmem>>, vector<4x896xf32>
    tpu.vector_store %arg8[%c52_155, %c0_156], %123 {strides = array<i32>} : memref<128x896xf32, #tpu.memory_space<vmem>>, vector<4x896xf32>,
    %c0_157 = arith.constant 0 : index
    %c112_158 = arith.constant 112 : index
    %125 = vector.load %arg9[%c0_157, %c112_158] : memref<4x1152xf32, #tpu.memory_space<vmem>>, vector<4x896xf32>
    %c56_159 = arith.constant 56 : index
    %c0_160 = arith.constant 0 : index
    %126 = vector.load %arg8[%c56_159, %c0_160] : memref<128x896xf32, #tpu.memory_space<vmem>>, vector<4x896xf32>
    tpu.vector_store %arg8[%c56_159, %c0_160], %125 {strides = array<i32>} : memref<128x896xf32, #tpu.memory_space<vmem>>, vector<4x896xf32>,
    %c0_161 = arith.constant 0 : index
    %c120_162 = arith.constant 120 : index
    %127 = vector.load %arg9[%c0_161, %c120_162] : memref<4x1152xf32, #tpu.memory_space<vmem>>, vector<4x896xf32>
    %c60_163 = arith.constant 60 : index
    %c0_164 = arith.constant 0 : index
    %128 = vector.load %arg8[%c60_163, %c0_164] : memref<128x896xf32, #tpu.memory_space<vmem>>, vector<4x896xf32>
    tpu.vector_store %arg8[%c60_163, %c0_164], %127 {strides = array<i32>} : memref<128x896xf32, #tpu.memory_space<vmem>>, vector<4x896xf32>,
    %c0_165 = arith.constant 0 : index
    %c121_166 = arith.constant 121 : index
    %129 = vector.load %arg9[%c0_165, %c121_166] : memref<4x1152xf32, #tpu.memory_space<vmem>>, vector<4x896xf32>
    %c64_167 = arith.constant 64 : index
    %c0_168 = arith.constant 0 : index
    %130 = vector.load %arg8[%c64_167, %c0_168] : memref<128x896xf32, #tpu.memory_space<vmem>>, vector<4x896xf32>
    tpu.vector_store %arg8[%c64_167, %c0_168], %129 {strides = array<i32>} : memref<128x896xf32, #tpu.memory_space<vmem>>, vector<4x896xf32>,
    %c0_169 = arith.constant 0 : index
    %c122_170 = arith.constant 122 : index
    %131 = vector.load %arg9[%c0_169, %c122_170] : memref<4x1152xf32, #tpu.memory_space<vmem>>, vector<4x896xf32>
    %c68_171 = arith.constant 68 : index
    %c0_172 = arith.constant 0 : index
    %132 = vector.load %arg8[%c68_171, %c0_172] : memref<128x896xf32, #tpu.memory_space<vmem>>, vector<4x896xf32>
    tpu.vector_store %arg8[%c68_171, %c0_172], %131 {strides = array<i32>} : memref<128x896xf32, #tpu.memory_space<vmem>>, vector<4x896xf32>,
    %c0_173 = arith.constant 0 : index
    %c200_174 = arith.constant 200 : index
    %133 = vector.load %arg9[%c0_173, %c200_174] : memref<4x1152xf32, #tpu.memory_space<vmem>>, vector<4x896xf32>
    %c72_175 = arith.constant 72 : index
    %c0_176 = arith.constant 0 : index
    %134 = vector.load %arg8[%c72_175, %c0_176] : memref<128x896xf32, #tpu.memory_space<vmem>>, vector<4x896xf32>
    tpu.vector_store %arg8[%c72_175, %c0_176], %133 {strides = array<i32>} : memref<128x896xf32, #tpu.memory_space<vmem>>, vector<4x896xf32>,
    %c0_177 = arith.constant 0 : index
    %c201_178 = arith.constant 201 : index
    %135 = vector.load %arg9[%c0_177, %c201_178] : memref<4x1152xf32, #tpu.memory_space<vmem>>, vector<4x896xf32>
    %c76_179 = arith.constant 76 : index
    %c0_180 = arith.constant 0 : index
    %136 = vector.load %arg8[%c76_179, %c0_180] : memref<128x896xf32, #tpu.memory_space<vmem>>, vector<4x896xf32>
    tpu.vector_store %arg8[%c76_179, %c0_180], %135 {strides = array<i32>} : memref<128x896xf32, #tpu.memory_space<vmem>>, vector<4x896xf32>,
    %c0_181 = arith.constant 0 : index
    %c202_182 = arith.constant 202 : index
    %137 = vector.load %arg9[%c0_181, %c202_182] : memref<4x1152xf32, #tpu.memory_space<vmem>>, vector<4x896xf32>
    %c80_183 = arith.constant 80 : index
    %c0_184 = arith.constant 0 : index
    %138 = vector.load %arg8[%c80_183, %c0_184] : memref<128x896xf32, #tpu.memory_space<vmem>>, vector<4x896xf32>
    tpu.vector_store %arg8[%c80_183, %c0_184], %137 {strides = array<i32>} : memref<128x896xf32, #tpu.memory_space<vmem>>, vector<4x896xf32>,
    %c0_185 = arith.constant 0 : index
    %c210_186 = arith.constant 210 : index
    %139 = vector.load %arg9[%c0_185, %c210_186] : memref<4x1152xf32, #tpu.memory_space<vmem>>, vector<4x896xf32>
    %c84_187 = arith.constant 84 : index
    %c0_188 = arith.constant 0 : index
    %140 = vector.load %arg8[%c84_187, %c0_188] : memref<128x896xf32, #tpu.memory_space<vmem>>, vector<4x896xf32>
    tpu.vector_store %arg8[%c84_187, %c0_188], %139 {strides = array<i32>} : memref<128x896xf32, #tpu.memory_space<vmem>>, vector<4x896xf32>,
    %c0_189 = arith.constant 0 : index
    %c211_190 = arith.constant 211 : index
    %141 = vector.load %arg9[%c0_189, %c211_190] : memref<4x1152xf32, #tpu.memory_space<vmem>>, vector<4x896xf32>
    %c88_191 = arith.constant 88 : index
    %c0_192 = arith.constant 0 : index
    %142 = vector.load %arg8[%c88_191, %c0_192] : memref<128x896xf32, #tpu.memory_space<vmem>>, vector<4x896xf32>
    tpu.vector_store %arg8[%c88_191, %c0_192], %141 {strides = array<i32>} : memref<128x896xf32, #tpu.memory_space<vmem>>, vector<4x896xf32>,
    %c0_193 = arith.constant 0 : index
    %c212_194 = arith.constant 212 : index
    %143 = vector.load %arg9[%c0_193, %c212_194] : memref<4x1152xf32, #tpu.memory_space<vmem>>, vector<4x896xf32>
    %c92_195 = arith.constant 92 : index
    %c0_196 = arith.constant 0 : index
    %144 = vector.load %arg8[%c92_195, %c0_196] : memref<128x896xf32, #tpu.memory_space<vmem>>, vector<4x896xf32>
    tpu.vector_store %arg8[%c92_195, %c0_196], %143 {strides = array<i32>} : memref<128x896xf32, #tpu.memory_space<vmem>>, vector<4x896xf32>,
    %c0_197 = arith.constant 0 : index
    %c220_198 = arith.constant 220 : index
    %145 = vector.load %arg9[%c0_197, %c220_198] : memref<4x1152xf32, #tpu.memory_space<vmem>>, vector<4x896xf32>
    %c96_199 = arith.constant 96 : index
    %c0_200 = arith.constant 0 : index
    %146 = vector.load %arg8[%c96_199, %c0_200] : memref<128x896xf32, #tpu.memory_space<vmem>>, vector<4x896xf32>
    tpu.vector_store %arg8[%c96_199, %c0_200], %145 {strides = array<i32>} : memref<128x896xf32, #tpu.memory_space<vmem>>, vector<4x896xf32>,
    %c0_201 = arith.constant 0 : index
    %c221_202 = arith.constant 221 : index
    %147 = vector.load %arg9[%c0_201, %c221_202] : memref<4x1152xf32, #tpu.memory_space<vmem>>, vector<4x896xf32>
    %c100_203 = arith.constant 100 : index
    %c0_204 = arith.constant 0 : index
    %148 = vector.load %arg8[%c100_203, %c0_204] : memref<128x896xf32, #tpu.memory_space<vmem>>, vector<4x896xf32>
    tpu.vector_store %arg8[%c100_203, %c0_204], %147 {strides = array<i32>} : memref<128x896xf32, #tpu.memory_space<vmem>>, vector<4x896xf32>,
    %c0_205 = arith.constant 0 : index
    %c222_206 = arith.constant 222 : index
    %149 = vector.load %arg9[%c0_205, %c222_206] : memref<4x1152xf32, #tpu.memory_space<vmem>>, vector<4x896xf32>
    %c104_207 = arith.constant 104 : index
    %c0_208 = arith.constant 0 : index
    %150 = vector.load %arg8[%c104_207, %c0_208] : memref<128x896xf32, #tpu.memory_space<vmem>>, vector<4x896xf32>
    tpu.vector_store %arg8[%c104_207, %c0_208], %149 {strides = array<i32>} : memref<128x896xf32, #tpu.memory_space<vmem>>, vector<4x896xf32>,
    %c0_209 = arith.constant 0 : index
    %c0_210 = arith.constant 0 : index
    %151 = vector.load %arg4[%c0_209, %c0_210] : memref<4x128xf32, #tpu.memory_space<vmem>>, vector<4x128xf32>
    %c0_211 = arith.constant 0 : index
    %c0_212 = arith.constant 0 : index
    %152 = vector.load %arg8[%c0_211, %c0_212] : memref<128x896xf32, #tpu.memory_space<vmem>>, vector<128x896xf32>
    %cst_213 = arith.constant dense<0.000000e+00> : vector<4x896xf32>
    %153 = tpu.matmul %151, %152, %cst_213 {dimension_numbers = #tpu.dot_dimension_numbers<[1], [0], [0], [1], [0, 0, 1, 1], [], []>} : vector<4x128xf32>, vector<128x896xf32>, vector<4x896xf32> -> vector<4x896xf32>
    %c0_214 = arith.constant 0 : index
    %c0_215 = arith.constant 0 : index
    %154 = vector.load %arg5[%c0_214, %c0_215] : memref<4x1xf32, #tpu.memory_space<vmem>>, vector<4x1xf32>
    %155 = vector.broadcast %154 : vector<4x1xf32> to vector<4x896xf32>
    %156 = arith.addf %153, %155 : vector<4x896xf32>
    %c0_216 = arith.constant 0 : index
    %c0_217 = arith.constant 0 : index
    %c111_218 = arith.constant 111 : index
    %157 = vector.load %arg1[%c0_216, %c0_217, %c111_218] : memref<1x4x1152xf32, #tpu.memory_space<vmem>>, vector<1x4x896xf32>
    %158 = vector.shape_cast %157 : vector<1x4x896xf32> to vector<4x896xf32>
    %159 = arith.addf %156, %158 : vector<4x896xf32>
    %cst_219 = arith.constant 0.000000e+00 : f32
    %160 = vector.broadcast %cst_219 : f32 to vector<4x896xf32>
    %161 = arith.maximumf %159, %160 : vector<4x896xf32>
    %c0_220 = arith.constant 0 : index
    %c0_221 = arith.constant 0 : index
    %c0_222 = arith.constant 0 : index
    %162 = vector.load %arg7[%c0_220, %c0_221, %c0_222] : memref<1x4x896xf32, #tpu.memory_space<vmem>>, vector<1x4x896xf32>
    %163 = vector.shape_cast %162 : vector<1x4x896xf32> to vector<4x896xf32>
    %164 = vector.shape_cast %161 : vector<4x896xf32> to vector<1x4x896xf32>
    tpu.vector_store %arg7[%c0_220, %c0_221, %c0_222], %164 {strides = array<i32>} : memref<1x4x896xf32, #tpu.memory_space<vmem>>, vector<1x4x896xf32>,
    return
  }
  func.func @transform_0(%arg0: i32) -> (i32, i32, i32) {
    %c0_i32 = arith.constant 0 : i32
    %c0_i32_0 = arith.constant 0 : i32
    %c0_i32_1 = arith.constant 0 : i32
    return %arg0, %c0_i32, %c0_i32_0 : i32, i32, i32
  }
  func.func @transform_1(%arg0: i32) -> (i32, i32) {
    %c0_i32 = arith.constant 0 : i32
    %c0_i32_0 = arith.constant 0 : i32
    %c0_i32_1 = arith.constant 0 : i32
    return %c0_i32, %c0_i32_0 : i32, i32
  }
  func.func @transform_2(%arg0: i32) -> (i32, i32) {
    %c0_i32 = arith.constant 0 : i32
    %c0_i32_0 = arith.constant 0 : i32
    %c0_i32_1 = arith.constant 0 : i32
    return %c0_i32, %c0_i32_0 : i32, i32
  }
  func.func @transform_3(%arg0: i32) -> (i32, i32) {
    %c0_i32 = arith.constant 0 : i32
    %c0_i32_0 = arith.constant 0 : i32
    %c0_i32_1 = arith.constant 0 : i32
    return %c0_i32, %c0_i32_0 : i32, i32
  }
  func.func @transform_4(%arg0: i32) -> (i32, i32) {
    %c0_i32 = arith.constant 0 : i32
    %c0_i32_0 = arith.constant 0 : i32
    %c0_i32_1 = arith.constant 0 : i32
    return %c0_i32, %c0_i32_0 : i32, i32
  }
  func.func @transform_5(%arg0: i32) -> (i32, i32) {
    %c0_i32 = arith.constant 0 : i32
    %c0_i32_0 = arith.constant 0 : i32
    %c0_i32_1 = arith.constant 0 : i32
    return %c0_i32, %c0_i32_0 : i32, i32
  }
  func.func @transform_6(%arg0: i32) -> (i32, i32, i32) {
    %c0_i32 = arith.constant 0 : i32
    %c0_i32_0 = arith.constant 0 : i32
    %c0_i32_1 = arith.constant 0 : i32
    return %arg0, %c0_i32, %c0_i32_0 : i32, i32, i32
  }
}

</mosaic_0001>

<llo_original>
// kernel: res_block_3d_no_bn.1
$region0: #{res_block_3d_no_bn.1}
  #allocation0 [shape = 'u32[]', space=smem, size = 0x4, offset = 0x4, fixed_abs, tag = 'smem constant byte address 0x4 - core index']
  #allocation1 [shape = 'u32[144,128]{1,0:T(1,128)}', space=vmem, size = 0x12000, scoped, tag = 'internal scratch']
  #allocation2 [shape = 'f32[128,896]{1,0:T(8,128)}', space=vmem, size = 0x70000, scoped, tag = 'scratch operand']
  #allocation3 [shape = 'f32[4,1152]{1,0:T(4,128)}', space=vmem, size = 0x4800, scoped, tag = 'scratch operand']
  %s0 = inlined_call_operand.vmem [shape: f32[2,4,1152], index: 0, kind: input, shape index: {}]
  %s1 = inlined_call_operand.vmem [shape: f32[4,128], index: 1, kind: input, shape index: {}]
  %s2 = inlined_call_operand.vmem [shape: f32[4,1], index: 2, kind: input, shape index: {}]
  %s3 = inlined_call_operand.vmem [shape: f32[4,128], index: 3, kind: input, shape index: {}]
  %s4 = inlined_call_operand.vmem [shape: f32[4,1], index: 4, kind: input, shape index: {}]
  %s5 = inlined_call_operand.vmem [shape: f32[1,896], index: 5, kind: input, shape index: {}]
  %s6 = inlined_call_operand.vmem [shape: f32[2,4,896], index: 6, kind: output, shape index: {}]
  %s7 = sld [smem:[#allocation0]]
  $region57: #{res_block_3d_no_bn.1} parent=0
    _
  %s9 = ssub.s32 1, %s7
  %s10 = scalar_select 0, %s9, %s7
  loop: start=0, step=1, limit=4
  $region2: #{res_block_3d_no_bn.1} parent=0 // loop_pre_header
    _
  $region3: #{res_block_3d_no_bn.1} parent=0 // loop_header
    %s12 = sphi 0, %s16
    %p13 = scmp.ge.s32.totalorder %s12, 4
    %s22 = sphi 0, %s24
    %s25 = sphi 0, %s22
    %s26 = sphi 0, %s25
    %s42 = sphi 0, %s26
    %s46 = sphi 0, %s46
    %s48 = sphi 0, %s46
    %s49 = sphi 0, %s48
    %s63 = sphi 0, %s49
    %s67 = sphi 0, %s67
    %s69 = sphi 0, %s67
    %s70 = sphi 0, %s69
    %s84 = sphi 0, %s70
    %s88 = sphi 0, %s88
    %s90 = sphi 0, %s88
    %s91 = sphi 0, %s90
    %s105 = sphi 0, %s91
    %s109 = sphi 0, %s109
    %s111 = sphi 0, %s109
    %s112 = sphi 0, %s111
    %s126 = sphi 0, %s112
    %s130 = sphi 0, %s130
    %s132 = sphi 0, %s130
    %s133 = sphi 0, %s132
    %s147 = sphi 0, %s133
    %s153 = sphi 0, %s155
    %s156 = sphi 0, %s153
    %s157 = sphi 0, %s156
    %s173 = sphi 0, %s157
  $region4: #{res_block_3d_no_bn.1} parent=0 // loop_header_branch
    %15 = sbr.rel (%p13) target = $region8
  $region5: #{res_block_3d_no_bn.1} parent=0 // loop_body
    %s17 = ssub.s32 %s12, 1
    %s18 = ssub.s32 %s12, 2
    %s19 = sadd.s32 %s12, 1
    %s20 = ssub.s32 %s12, %s19
    %p21 = scmp.eq.s32.totalorder %s20, 0
    %s23 = sadd.s32 %s22, 1
    %s24 = scalar_select %p21, %s22, %s23
    %p27 = pneg %p21
    %p28 = scmp.eq.s32.totalorder %s12, 1
    %p29 = por %p27, %p28
    %p30 = scmp.ne.s32.totalorder %s22, %s25
    %p31 = scmp.eq.s32.totalorder %s12, 0
    %p32 = por %p30, %p31
    %p33 = scmp.ne.s32.totalorder %s22, %s25
    %p34 = scmp.eq.s32.totalorder %s17, 1
    %p35 = por %p33, %p34
    %p36 = scmp.ne.s32.totalorder %s25, %s26
    %p37 = scmp.eq.s32.totalorder %s17, 0
    %p38 = por %p36, %p37
    %p39 = scmp.ne.s32.totalorder %s25, %s26
    %p40 = scmp.eq.s32.totalorder %s18, 1
    %p41 = por %p39, %p40
    %p43 = scmp.ne.s32.totalorder %s26, %s42
    %p44 = scmp.eq.s32.totalorder %s18, 0
    %p45 = por %p43, %p44
    %s47 = sadd.s32 %s46, 1
    %p50 = scmp.eq.s32.totalorder %s12, 1
    %p51 = scmp.ne.s32.totalorder %s46, %s48
    %p52 = scmp.eq.s32.totalorder %s12, 0
    %p53 = por %p51, %p52
    %p54 = scmp.ne.s32.totalorder %s46, %s48
    %p55 = scmp.eq.s32.totalorder %s17, 1
    %p56 = por %p54, %p55
    %p57 = scmp.ne.s32.totalorder %s48, %s49
    %p58 = scmp.eq.s32.totalorder %s17, 0
    %p59 = por %p57, %p58
    %p60 = scmp.ne.s32.totalorder %s48, %s49
    %p61 = scmp.eq.s32.totalorder %s18, 1
    %p62 = por %p60, %p61
    %p64 = scmp.ne.s32.totalorder %s49, %s63
    %p65 = scmp.eq.s32.totalorder %s18, 0
    %p66 = por %p64, %p65
    %s68 = sadd.s32 %s67, 1
    %p71 = scmp.eq.s32.totalorder %s12, 1
    %p72 = scmp.ne.s32.totalorder %s67, %s69
    %p73 = scmp.eq.s32.totalorder %s12, 0
    %p74 = por %p72, %p73
    %p75 = scmp.ne.s32.totalorder %s67, %s69
    %p76 = scmp.eq.s32.totalorder %s17, 1
    %p77 = por %p75, %p76
    %p78 = scmp.ne.s32.totalorder %s69, %s70
    %p79 = scmp.eq.s32.totalorder %s17, 0
    %p80 = por %p78, %p79
    %p81 = scmp.ne.s32.totalorder %s69, %s70
    %p82 = scmp.eq.s32.totalorder %s18, 1
    %p83 = por %p81, %p82
    %p85 = scmp.ne.s32.totalorder %s70, %s84
    %p86 = scmp.eq.s32.totalorder %s18, 0
    %p87 = por %p85, %p86
    %s89 = sadd.s32 %s88, 1
    %p92 = scmp.eq.s32.totalorder %s12, 1
    %p93 = scmp.ne.s32.totalorder %s88, %s90
    %p94 = scmp.eq.s32.totalorder %s12, 0
    %p95 = por %p93, %p94
    %p96 = scmp.ne.s32.totalorder %s88, %s90
    %p97 = scmp.eq.s32.totalorder %s17, 1
    %p98 = por %p96, %p97
    %p99 = scmp.ne.s32.totalorder %s90, %s91
    %p100 = scmp.eq.s32.totalorder %s17, 0
    %p101 = por %p99, %p100
    %p102 = scmp.ne.s32.totalorder %s90, %s91
    %p103 = scmp.eq.s32.totalorder %s18, 1
    %p104 = por %p102, %p103
    %p106 = scmp.ne.s32.totalorder %s91, %s105
    %p107 = scmp.eq.s32.totalorder %s18, 0
    %p108 = por %p106, %p107
    %s110 = sadd.s32 %s109, 1
    %p113 = scmp.eq.s32.totalorder %s12, 1
    %p114 = scmp.ne.s32.totalorder %s109, %s111
    %p115 = scmp.eq.s32.totalorder %s12, 0
    %p116 = por %p114, %p115
    %p117 = scmp.ne.s32.totalorder %s109, %s111
    %p118 = scmp.eq.s32.totalorder %s17, 1
    %p119 = por %p117, %p118
    %p120 = scmp.ne.s32.totalorder %s111, %s112
    %p121 = scmp.eq.s32.totalorder %s17, 0
    %p122 = por %p120, %p121
    %p123 = scmp.ne.s32.totalorder %s111, %s112
    %p124 = scmp.eq.s32.totalorder %s18, 1
    %p125 = por %p123, %p124
    %p127 = scmp.ne.s32.totalorder %s112, %s126
    %p128 = scmp.eq.s32.totalorder %s18, 0
    %p129 = por %p127, %p128
    %s131 = sadd.s32 %s130, 1
    %p134 = scmp.eq.s32.totalorder %s12, 1
    %p135 = scmp.ne.s32.totalorder %s130, %s132
    %p136 = scmp.eq.s32.totalorder %s12, 0
    %p137 = por %p135, %p136
    %p138 = scmp.ne.s32.totalorder %s130, %s132
    %p139 = scmp.eq.s32.totalorder %s17, 1
    %p140 = por %p138, %p139
    %p141 = scmp.ne.s32.totalorder %s132, %s133
    %p142 = scmp.eq.s32.totalorder %s17, 0
    %p143 = por %p141, %p142
    %p144 = scmp.ne.s32.totalorder %s132, %s133
    %p145 = scmp.eq.s32.totalorder %s18, 1
    %p146 = por %p144, %p145
    %p148 = scmp.ne.s32.totalorder %s133, %s147
    %p149 = scmp.eq.s32.totalorder %s18, 0
    %p150 = por %p148, %p149
    %s151 = ssub.s32 %s12, %s19
    %p152 = scmp.eq.s32.totalorder %s151, 0
    %s154 = sadd.s32 %s153, 1
    %s155 = scalar_select %p152, %s153, %s154
    %p158 = pneg %p152
    %p159 = scmp.eq.s32.totalorder %s12, 1
    %p160 = por %p158, %p159
    %p161 = scmp.ne.s32.totalorder %s153, %s156
    %p162 = scmp.eq.s32.totalorder %s12, 0
    %p163 = por %p161, %p162
    %p164 = scmp.ne.s32.totalorder %s153, %s156
    %p165 = scmp.eq.s32.totalorder %s17, 1
    %p166 = por %p164, %p165
    %p167 = scmp.ne.s32.totalorder %s156, %s157
    %p168 = scmp.eq.s32.totalorder %s17, 0
    %p169 = por %p167, %p168
    %p170 = scmp.ne.s32.totalorder %s156, %s157
    %p171 = scmp.eq.s32.totalorder %s18, 1
    %p172 = por %p170, %p171
    %p174 = scmp.ne.s32.totalorder %s157, %s173
    %p175 = scmp.eq.s32.totalorder %s18, 0
    %p176 = por %p174, %p175
    %p177 = scmp.le.s32.totalorder 1, %s12
    %p178 = scmp.lt.s32.totalorder %s12, 3
    %p179 = pnand %p177, %p178
    %p180 = pneg %p179
    // Predicated region
    $region9: #{res_block_3d_no_bn.1} parent=5 // pred_check
      _
    $region10: #{res_block_3d_no_bn.1} parent=5 // pred_check_branch
      %182 = sbr.rel (%p179) target = $region12
    $region11: #{res_block_3d_no_bn.1} parent=5 // pred_region
      %s183 = ssub.s32 %s12, 1
      // Predicated region
      $region13: #{res_block_3d_no_bn.1} parent=11 // pred_check
        %p184 = pneg %p59
      $region14: #{res_block_3d_no_bn.1} parent=11 // pred_check_branch
        %186 = sbr.rel (%p184) target = $region16
      $region15: #{res_block_3d_no_bn.1} parent=11 // pred_region
        _
      $region16: #{res_block_3d_no_bn.1} parent=11 // pred_fallthru
        _
      // Predicated region
      $region17: #{res_block_3d_no_bn.1} parent=11 // pred_check
        %p187 = pneg %p80
      $region18: #{res_block_3d_no_bn.1} parent=11 // pred_check_branch
        %189 = sbr.rel (%p187) target = $region20
      $region19: #{res_block_3d_no_bn.1} parent=11 // pred_region
        _
      $region20: #{res_block_3d_no_bn.1} parent=11 // pred_fallthru
        _
      // Predicated region
      $region21: #{res_block_3d_no_bn.1} parent=11 // pred_check
        %p190 = pneg %p101
      $region22: #{res_block_3d_no_bn.1} parent=11 // pred_check_branch
        %192 = sbr.rel (%p190) target = $region24
      $region23: #{res_block_3d_no_bn.1} parent=11 // pred_region
        _
      $region24: #{res_block_3d_no_bn.1} parent=11 // pred_fallthru
        _
      // Predicated region
      $region25: #{res_block_3d_no_bn.1} parent=11 // pred_check
        %p193 = pneg %p122
      $region26: #{res_block_3d_no_bn.1} parent=11 // pred_check_branch
        %195 = sbr.rel (%p193) target = $region28
      $region27: #{res_block_3d_no_bn.1} parent=11 // pred_region
        _
      $region28: #{res_block_3d_no_bn.1} parent=11 // pred_fallthru
        _
      // Predicated region
      $region29: #{res_block_3d_no_bn.1} parent=11 // pred_check
        %p196 = pneg %p143
      $region30: #{res_block_3d_no_bn.1} parent=11 // pred_check_branch
        %198 = sbr.rel (%p196) target = $region32
      $region31: #{res_block_3d_no_bn.1} parent=11 // pred_region
        _
      $region32: #{res_block_3d_no_bn.1} parent=11 // pred_fallthru
        _
    $region12: #{res_block_3d_no_bn.1} parent=5 // pred_fallthru
      _
    %p199 = scmp.lt.s32.totalorder %s12, 2
    // Predicated region
    $region33: #{res_block_3d_no_bn.1} parent=5 // pred_check
      %p200 = pneg %p199
    $region34: #{res_block_3d_no_bn.1} parent=5 // pred_check_branch
      %202 = sbr.rel (%p200) target = $region36
    $region35: #{res_block_3d_no_bn.1} parent=5 // pred_region
      // Predicated region
      $region37: #{res_block_3d_no_bn.1} parent=35 // pred_check
        %p203 = pneg %p32
      $region38: #{res_block_3d_no_bn.1} parent=35 // pred_check_branch
        %205 = sbr.rel (%p203) target = $region40
      $region39: #{res_block_3d_no_bn.1} parent=35 // pred_region
        %p206 = scmp.lt.s32.totalorder %s12, 1
        %s207 = scalar_select %p206, %s12, 1
        %s208 = smul.addr %s207, 9
        %s209 = smul.addr %s208, 4
        %s210 = scalar_lea.vmem %s0, %s209
      $region40: #{res_block_3d_no_bn.1} parent=35 // pred_fallthru
        _
    $region36: #{res_block_3d_no_bn.1} parent=5 // pred_fallthru
      _
    %p211 = scmp.le.s32.totalorder 1, %s12
    %p212 = scmp.lt.s32.totalorder %s12, 3
    %p213 = pnand %p211, %p212
    %p214 = pneg %p213
    // Predicated region
    $region41: #{res_block_3d_no_bn.1} parent=5 // pred_check
      _
    $region42: #{res_block_3d_no_bn.1} parent=5 // pred_check_branch
      %216 = sbr.rel (%p213) target = $region44
    $region43: #{res_block_3d_no_bn.1} parent=5 // pred_region
      %s217 = ssub.s32 %s12, 1
      %p218 = scmp.lt.s32.totalorder %s17, 1
      %s219 = scalar_select %p218, %s17, 1
      %s220 = smul.addr %s219, 9
      %s221 = smul.addr %s220, 4
      %s222 = scalar_lea.vmem %s0, %s221
      %p223 = pneg %p38
      %p224 = pneg %p35
      %p225 = pneg %p59
      %p226 = pneg %p56
      %p227 = pneg %p80
      %p228 = pneg %p77
      %p229 = pneg %p101
      %p230 = pneg %p98
      %p231 = pneg %p122
      %p232 = pneg %p119
      %p233 = pneg %p143
      %p234 = pneg %p140
      %p235 = pneg %p169
      %p236 = pneg %p166
      %p237 = scmp.lt.s32.totalorder %s17, 1
      %s238 = scalar_select %p237, %s17, 1
      %s239 = smul.addr %s238, 7
      %s240 = smul.addr %s239, 4
      %s241 = scalar_lea.vmem %s6, %s240
      %p242 = scmp.lt.s32.totalorder %s17, 1
      %s243 = scalar_select %p242, %s17, 1
      %s244 = smul.addr %s243, 9
      %s245 = smul.addr %s244, 4
      %s246 = scalar_lea.vmem %s0, %s245
      %p247 = scmp.lt.s32.totalorder %s17, 1
      %s248 = scalar_select %p247, %s17, 1
      %s249 = smul.addr %s248, 7
      %s250 = smul.addr %s249, 4
      %s251 = scalar_lea.vmem %s6, %s250
      %252 = vst [vmem:[#allocation2 + $0x2d8] sm:$0xf0] 0.0
      %253 = vst [vmem:[#allocation2 + $0x2e0] sm:$0xf0] 0.0
      %254 = vst [vmem:[#allocation2 + $0x2e8] sm:$0xf0] 0.0
      %255 = vst [vmem:[#allocation2 + $0x2f0] sm:$0xf0] 0.0
      %256 = vst [vmem:[#allocation2 + $0x2f8] sm:$0xf0] 0.0
      %257 = vst [vmem:[#allocation2 + $0x300] sm:$0xf0] 0.0
      %258 = vst [vmem:[#allocation2 + $0x308] sm:$0xf0] 0.0
      %259 = vst [vmem:[#allocation2 + $0x310] sm:$0xff] 0.0
      %260 = vst [vmem:[#allocation2 + $0x318] sm:$0xff] 0.0
      %261 = vst [vmem:[#allocation2 + $0x320] sm:$0xff] 0.0
      %262 = vst [vmem:[#allocation2 + $0x328] sm:$0xff] 0.0
      %263 = vst [vmem:[#allocation2 + $0x330] sm:$0xff] 0.0
      %264 = vst [vmem:[#allocation2 + $0x338] sm:$0xff] 0.0
      %265 = vst [vmem:[#allocation2 + $0x340] sm:$0xff] 0.0
      %266 = vst [vmem:[#allocation2 + $0x348] sm:$0xff] 0.0
      %267 = vst [vmem:[#allocation2 + $0x350] sm:$0xff] 0.0
      %268 = vst [vmem:[#allocation2 + $0x358] sm:$0xff] 0.0
      %269 = vst [vmem:[#allocation2 + $0x360] sm:$0xff] 0.0
      %270 = vst [vmem:[#allocation2 + $0x368] sm:$0xff] 0.0
      %271 = vst [vmem:[#allocation2 + $0x370] sm:$0xff] 0.0
      %272 = vst [vmem:[#allocation2 + $0x378] sm:$0xff] 0.0
      %273 = vst [vmem:[#allocation3] sm:$0xff] 0.0
      %274 = vst [vmem:[#allocation3 + $0x8] sm:$0xff] 0.0
      %275 = vst [vmem:[#allocation3 + $0x10] sm:$0xff] 0.0
      %276 = vst [vmem:[#allocation3 + $0x18] sm:$0xff] 0.0
      %277 = vst [vmem:[#allocation3 + $0x20] sm:$0xf] 0.0
      %v278 = vld [vmem:[%s5] sm:$0xff]
      %v279 = vld [vmem:[%s246] sm:$0xff]
      %v280 = vld [vmem:[%s246 + $0x8] sm:$0xff]
      %v281 = vld [vmem:[%s246 + $0x10] sm:$0xff]
      %v282 = vld [vmem:[%s246 + $0x18] sm:$0xf]
      %v286 = vcombine.high %v279, %v279
      %v287 = vcombine.high %v280, %v280
      %v288 = vcombine.high %v281, %v281
      %292 = vst [vmem:[#allocation2] sm:$0xf] %v279
      %293 = vst [vmem:[#allocation2 + $0x8] sm:$0xf] %v286
      %294 = vst [vmem:[#allocation2 + $0x10] sm:$0xf] %v280
      %295 = vst [vmem:[#allocation2 + $0x18] sm:$0xf] %v287
      %296 = vst [vmem:[#allocation2 + $0x20] sm:$0xf] %v281
      %297 = vst [vmem:[#allocation2 + $0x28] sm:$0xf] %v288
      %298 = vst [vmem:[#allocation2 + $0x30] sm:$0xf] %v282
      %v299 = vld [vmem:[%s246] sm:$0xff]
      %v300 = vld [vmem:[%s246 + $0x8] sm:$0xff]
      %v301 = vld [vmem:[%s246 + $0x10] sm:$0xff]
      %v302 = vld [vmem:[%s246 + $0x18] sm:$0xff]
      %v307 = vcombine.low %v299, %v299
      %v308 = vcombine.low %v300, %v300
      %v309 = vcombine.low %v301, %v301
      %v310 = vcombine.low %v302, %v302
      %311 = vrot.lane.b32.xlu0 %v307, 127
      %v312 = vpop.permute.xlu0 %311
      %313 = vrot.lane.b32.xlu0 %v299, 127
      %v314 = vpop.permute.xlu0 %313
      %315 = vrot.lane.b32.xlu0 %v308, 127
      %v316 = vpop.permute.xlu0 %315
      %317 = vrot.lane.b32.xlu0 %v300, 127
      %v318 = vpop.permute.xlu0 %317
      %319 = vrot.lane.b32.xlu0 %v309, 127
      %v320 = vpop.permute.xlu0 %319
      %321 = vrot.lane.b32.xlu0 %v301, 127
      %v322 = vpop.permute.xlu0 %321
      %323 = vrot.lane.b32.xlu0 %v310, 127
      %v324 = vpop.permute.xlu0 %323
      %325 = vrot.lane.b32.xlu0 %v302, 127
      %v326 = vpop.permute.xlu0 %325
      %vm327 = vcmask 1039360
      %v328 = vsel %vm327, %v312, %v314
      %v329 = vsel %vm327, %v314, %v316
      %v330 = vsel %vm327, %v316, %v318
      %v331 = vsel %vm327, %v318, %v320
      %v332 = vsel %vm327, %v320, %v322
      %v333 = vsel %vm327, %v322, %v324
      %v334 = vsel %vm327, %v324, %v326
      %342 = vst [vmem:[#allocation2] sm:$0xf0] %v328
      %343 = vst [vmem:[#allocation2 + $0x8] sm:$0xf0] %v329
      %344 = vst [vmem:[#allocation2 + $0x10] sm:$0xf0] %v330
      %345 = vst [vmem:[#allocation2 + $0x18] sm:$0xf0] %v331
      %346 = vst [vmem:[#allocation2 + $0x20] sm:$0xf0] %v332
      %347 = vst [vmem:[#allocation2 + $0x28] sm:$0xf0] %v333
      %348 = vst [vmem:[#allocation2 + $0x30] sm:$0xf0] %v334
      %v349 = vld [vmem:[%s246] sm:$0xff]
      %v350 = vld [vmem:[%s246 + $0x8] sm:$0xff]
      %v351 = vld [vmem:[%s246 + $0x10] sm:$0xff]
      %v352 = vld [vmem:[%s246 + $0x18] sm:$0xff]
      %v357 = vcombine.high %v349, %v349
      %v358 = vcombine.high %v350, %v350
      %v359 = vcombine.high %v351, %v351
      %v360 = vcombine.high %v352, %v352
      %361 = vrot.lane.b32.xlu0 %v349, 126
      %v362 = vpop.permute.xlu0 %361
      %363 = vrot.lane.b32.xlu0 %v357, 126
      %v364 = vpop.permute.xlu0 %363
      %365 = vrot.lane.b32.xlu0 %v350, 126
      %v366 = vpop.permute.xlu0 %365
      %367 = vrot.lane.b32.xlu0 %v358, 126
      %v368 = vpop.permute.xlu0 %367
      %369 = vrot.lane.b32.xlu0 %v351, 126
      %v370 = vpop.permute.xlu0 %369
      %371 = vrot.lane.b32.xlu0 %v359, 126
      %v372 = vpop.permute.xlu0 %371
      %373 = vrot.lane.b32.xlu0 %v352, 126
      %v374 = vpop.permute.xlu0 %373
      %375 = vrot.lane.b32.xlu0 %v360, 126
      %v376 = vpop.permute.xlu0 %375
      %vm377 = vcmask 1031168
      %v378 = vsel %vm377, %v362, %v364
      %v379 = vsel %vm377, %v364, %v366
      %v380 = vsel %vm377, %v366, %v368
      %v381 = vsel %vm377, %v368, %v370
      %v382 = vsel %vm377, %v370, %v372
      %v383 = vsel %vm377, %v372, %v374
      %v384 = vsel %vm377, %v374, %v376
      %392 = vst [vmem:[#allocation2 + $0x38] sm:$0xf] %v378
      %393 = vst [vmem:[#allocation2 + $0x40] sm:$0xf] %v379
      %394 = vst [vmem:[#allocation2 + $0x48] sm:$0xf] %v380
      %395 = vst [vmem:[#allocation2 + $0x50] sm:$0xf] %v381
      %396 = vst [vmem:[#allocation2 + $0x58] sm:$0xf] %v382
      %397 = vst [vmem:[#allocation2 + $0x60] sm:$0xf] %v383
      %398 = vst [vmem:[#allocation2 + $0x68] sm:$0xf] %v384
      %v399 = vld [vmem:[%s246] sm:$0xff]
      %v400 = vld [vmem:[%s246 + $0x8] sm:$0xff]
      %v401 = vld [vmem:[%s246 + $0x10] sm:$0xff]
      %v402 = vld [vmem:[%s246 + $0x18] sm:$0xff]
      %v407 = vcombine.low %v399, %v399
      %v408 = vcombine.low %v400, %v400
      %v409 = vcombine.low %v401, %v401
      %v410 = vcombine.low %v402, %v402
      %411 = vrot.lane.b32.xlu0 %v407, 118
      %v412 = vpop.permute.xlu0 %411
      %413 = vrot.lane.b32.xlu0 %v399, 118
      %v414 = vpop.permute.xlu0 %413
      %415 = vrot.lane.b32.xlu0 %v408, 118
      %v416 = vpop.permute.xlu0 %415
      %417 = vrot.lane.b32.xlu0 %v400, 118
      %v418 = vpop.permute.xlu0 %417
      %419 = vrot.lane.b32.xlu0 %v409, 118
      %v420 = vpop.permute.xlu0 %419
      %421 = vrot.lane.b32.xlu0 %v401, 118
      %v422 = vpop.permute.xlu0 %421
      %423 = vrot.lane.b32.xlu0 %v410, 118
      %v424 = vpop.permute.xlu0 %423
      %425 = vrot.lane.b32.xlu0 %v402, 118
      %v426 = vpop.permute.xlu0 %425
      %vm427 = vcmask 965632
      %v428 = vsel %vm427, %v412, %v414
      %v429 = vsel %vm427, %v414, %v416
      %v430 = vsel %vm427, %v416, %v418
      %v431 = vsel %vm427, %v418, %v420
      %v432 = vsel %vm427, %v420, %v422
      %v433 = vsel %vm427, %v422, %v424
      %v434 = vsel %vm427, %v424, %v426
      %442 = vst [vmem:[#allocation2 + $0x38] sm:$0xf0] %v428
      %443 = vst [vmem:[#allocation2 + $0x40] sm:$0xf0] %v429
      %444 = vst [vmem:[#allocation2 + $0x48] sm:$0xf0] %v430
      %445 = vst [vmem:[#allocation2 + $0x50] sm:$0xf0] %v431
      %446 = vst [vmem:[#allocation2 + $0x58] sm:$0xf0] %v432
      %447 = vst [vmem:[#allocation2 + $0x60] sm:$0xf0] %v433
      %448 = vst [vmem:[#allocation2 + $0x68] sm:$0xf0] %v434
      %v449 = vld [vmem:[%s246] sm:$0xff]
      %v450 = vld [vmem:[%s246 + $0x8] sm:$0xff]
      %v451 = vld [vmem:[%s246 + $0x10] sm:$0xff]
      %v452 = vld [vmem:[%s246 + $0x18] sm:$0xff]
      %v457 = vcombine.high %v449, %v449
      %v458 = vcombine.high %v450, %v450
      %v459 = vcombine.high %v451, %v451
      %v460 = vcombine.high %v452, %v452
      %461 = vrot.lane.b32.xlu0 %v449, 117
      %v462 = vpop.permute.xlu0 %461
      %463 = vrot.lane.b32.xlu0 %v457, 117
      %v464 = vpop.permute.xlu0 %463
      %465 = vrot.lane.b32.xlu0 %v450, 117
      %v466 = vpop.permute.xlu0 %465
      %467 = vrot.lane.b32.xlu0 %v458, 117
      %v468 = vpop.permute.xlu0 %467
      %469 = vrot.lane.b32.xlu0 %v451, 117
      %v470 = vpop.permute.xlu0 %469
      %471 = vrot.lane.b32.xlu0 %v459, 117
      %v472 = vpop.permute.xlu0 %471
      %473 = vrot.lane.b32.xlu0 %v452, 117
      %v474 = vpop.permute.xlu0 %473
      %475 = vrot.lane.b32.xlu0 %v460, 117
      %v476 = vpop.permute.xlu0 %475
      %vm477 = vcmask 957440
      %v478 = vsel %vm477, %v462, %v464
      %v479 = vsel %vm477, %v464, %v466
      %v480 = vsel %vm477, %v466, %v468
      %v481 = vsel %vm477, %v468, %v470
      %v482 = vsel %vm477, %v470, %v472
      %v483 = vsel %vm477, %v472, %v474
      %v484 = vsel %vm477, %v474, %v476
      %492 = vst [vmem:[#allocation2 + $0x70] sm:$0xf] %v478
      %493 = vst [vmem:[#allocation2 + $0x78] sm:$0xf] %v479
      %494 = vst [vmem:[#allocation2 + $0x80] sm:$0xf] %v480
      %495 = vst [vmem:[#allocation2 + $0x88] sm:$0xf] %v481
      %496 = vst [vmem:[#allocation2 + $0x90] sm:$0xf] %v482
      %497 = vst [vmem:[#allocation2 + $0x98] sm:$0xf] %v483
      %498 = vst [vmem:[#allocation2 + $0xa0] sm:$0xf] %v484
      %v499 = vld [vmem:[%s246] sm:$0xff]
      %v500 = vld [vmem:[%s246 + $0x8] sm:$0xff]
      %v501 = vld [vmem:[%s246 + $0x10] sm:$0xff]
      %v502 = vld [vmem:[%s246 + $0x18] sm:$0xff]
      %v507 = vcombine.low %v499, %v499
      %v508 = vcombine.low %v500, %v500
      %v509 = vcombine.low %v501, %v501
      %v510 = vcombine.low %v502, %v502
      %511 = vrot.lane.b32.xlu0 %v507, 116
      %v512 = vpop.permute.xlu0 %511
      %513 = vrot.lane.b32.xlu0 %v499, 116
      %v514 = vpop.permute.xlu0 %513
      %515 = vrot.lane.b32.xlu0 %v508, 116
      %v516 = vpop.permute.xlu0 %515
      %517 = vrot.lane.b32.xlu0 %v500, 116
      %v518 = vpop.permute.xlu0 %517
      %519 = vrot.lane.b32.xlu0 %v509, 116
      %v520 = vpop.permute.xlu0 %519
      %521 = vrot.lane.b32.xlu0 %v501, 116
      %v522 = vpop.permute.xlu0 %521
      %523 = vrot.lane.b32.xlu0 %v510, 116
      %v524 = vpop.permute.xlu0 %523
      %525 = vrot.lane.b32.xlu0 %v502, 116
      %v526 = vpop.permute.xlu0 %525
      %vm527 = vcmask 949248
      %v528 = vsel %vm527, %v512, %v514
      %v529 = vsel %vm527, %v514, %v516
      %v530 = vsel %vm527, %v516, %v518
      %v531 = vsel %vm527, %v518, %v520
      %v532 = vsel %vm527, %v520, %v522
      %v533 = vsel %vm527, %v522, %v524
      %v534 = vsel %vm527, %v524, %v526
      %542 = vst [vmem:[#allocation2 + $0x70] sm:$0xf0] %v528
      %543 = vst [vmem:[#allocation2 + $0x78] sm:$0xf0] %v529
      %544 = vst [vmem:[#allocation2 + $0x80] sm:$0xf0] %v530
      %545 = vst [vmem:[#allocation2 + $0x88] sm:$0xf0] %v531
      %546 = vst [vmem:[#allocation2 + $0x90] sm:$0xf0] %v532
      %547 = vst [vmem:[#allocation2 + $0x98] sm:$0xf0] %v533
      %548 = vst [vmem:[#allocation2 + $0xa0] sm:$0xf0] %v534
      %v549 = vld [vmem:[%s246] sm:$0xff]
      %v550 = vld [vmem:[%s246 + $0x8] sm:$0xff]
      %v551 = vld [vmem:[%s246 + $0x10] sm:$0xff]
      %v552 = vld [vmem:[%s246 + $0x18] sm:$0xff]
      %v557 = vcombine.high %v549, %v549
      %v558 = vcombine.high %v550, %v550
      %v559 = vcombine.high %v551, %v551
      %v560 = vcombine.high %v552, %v552
      %561 = vrot.lane.b32.xlu0 %v549, 108
      %v562 = vpop.permute.xlu0 %561
      %563 = vrot.lane.b32.xlu0 %v557, 108
      %v564 = vpop.permute.xlu0 %563
      %565 = vrot.lane.b32.xlu0 %v550, 108
      %v566 = vpop.permute.xlu0 %565
      %567 = vrot.lane.b32.xlu0 %v558, 108
      %v568 = vpop.permute.xlu0 %567
      %569 = vrot.lane.b32.xlu0 %v551, 108
      %v570 = vpop.permute.xlu0 %569
      %571 = vrot.lane.b32.xlu0 %v559, 108
      %v572 = vpop.permute.xlu0 %571
      %573 = vrot.lane.b32.xlu0 %v552, 108
      %v574 = vpop.permute.xlu0 %573
      %575 = vrot.lane.b32.xlu0 %v560, 108
      %v576 = vpop.permute.xlu0 %575
      %vm577 = vcmask 883712
      %v578 = vsel %vm577, %v562, %v564
      %v579 = vsel %vm577, %v564, %v566
      %v580 = vsel %vm577, %v566, %v568
      %v581 = vsel %vm577, %v568, %v570
      %v582 = vsel %vm577, %v570, %v572
      %v583 = vsel %vm577, %v572, %v574
      %v584 = vsel %vm577, %v574, %v576
      %592 = vst [vmem:[#allocation2 + $0xa8] sm:$0xf] %v578
      %593 = vst [vmem:[#allocation2 + $0xb0] sm:$0xf] %v579
      %594 = vst [vmem:[#allocation2 + $0xb8] sm:$0xf] %v580
      %595 = vst [vmem:[#allocation2 + $0xc0] sm:$0xf] %v581
      %596 = vst [vmem:[#allocation2 + $0xc8] sm:$0xf] %v582
      %597 = vst [vmem:[#allocation2 + $0xd0] sm:$0xf] %v583
      %598 = vst [vmem:[#allocation2 + $0xd8] sm:$0xf] %v584
      %v599 = vld [vmem:[%s246] sm:$0xff]
      %v600 = vld [vmem:[%s246 + $0x8] sm:$0xff]
      %v601 = vld [vmem:[%s246 + $0x10] sm:$0xff]
      %v602 = vld [vmem:[%s246 + $0x18] sm:$0xff]
      %v607 = vcombine.low %v599, %v599
      %v608 = vcombine.low %v600, %v600
      %v609 = vcombine.low %v601, %v601
      %v610 = vcombine.low %v602, %v602
      %611 = vrot.lane.b32.xlu0 %v607, 107
      %v612 = vpop.permute.xlu0 %611
      %613 = vrot.lane.b32.xlu0 %v599, 107
      %v614 = vpop.permute.xlu0 %613
      %615 = vrot.lane.b32.xlu0 %v608, 107
      %v616 = vpop.permute.xlu0 %615
      %617 = vrot.lane.b32.xlu0 %v600, 107
      %v618 = vpop.permute.xlu0 %617
      %619 = vrot.lane.b32.xlu0 %v609, 107
      %v620 = vpop.permute.xlu0 %619
      %621 = vrot.lane.b32.xlu0 %v601, 107
      %v622 = vpop.permute.xlu0 %621
      %623 = vrot.lane.b32.xlu0 %v610, 107
      %v624 = vpop.permute.xlu0 %623
      %625 = vrot.lane.b32.xlu0 %v602, 107
      %v626 = vpop.permute.xlu0 %625
      %vm627 = vcmask 875520
      %v628 = vsel %vm627, %v612, %v614
      %v629 = vsel %vm627, %v614, %v616
      %v630 = vsel %vm627, %v616, %v618
      %v631 = vsel %vm627, %v618, %v620
      %v632 = vsel %vm627, %v620, %v622
      %v633 = vsel %vm627, %v622, %v624
      %v634 = vsel %vm627, %v624, %v626
      %642 = vst [vmem:[#allocation2 + $0xa8] sm:$0xf0] %v628
      %643 = vst [vmem:[#allocation2 + $0xb0] sm:$0xf0] %v629
      %644 = vst [vmem:[#allocation2 + $0xb8] sm:$0xf0] %v630
      %645 = vst [vmem:[#allocation2 + $0xc0] sm:$0xf0] %v631
      %646 = vst [vmem:[#allocation2 + $0xc8] sm:$0xf0] %v632
      %647 = vst [vmem:[#allocation2 + $0xd0] sm:$0xf0] %v633
      %648 = vst [vmem:[#allocation2 + $0xd8] sm:$0xf0] %v634
      %v649 = vld [vmem:[%s246] sm:$0xff]
      %v650 = vld [vmem:[%s246 + $0x8] sm:$0xff]
      %v651 = vld [vmem:[%s246 + $0x10] sm:$0xff]
      %v652 = vld [vmem:[%s246 + $0x18] sm:$0xff]
      %v657 = vcombine.high %v649, %v649
      %v658 = vcombine.high %v650, %v650
      %v659 = vcombine.high %v651, %v651
      %v660 = vcombine.high %v652, %v652
      %661 = vrot.lane.b32.xlu0 %v649, 106
      %v662 = vpop.permute.xlu0 %661
      %663 = vrot.lane.b32.xlu0 %v657, 106
      %v664 = vpop.permute.xlu0 %663
      %665 = vrot.lane.b32.xlu0 %v650, 106
      %v666 = vpop.permute.xlu0 %665
      %667 = vrot.lane.b32.xlu0 %v658, 106
      %v668 = vpop.permute.xlu0 %667
      %669 = vrot.lane.b32.xlu0 %v651, 106
      %v670 = vpop.permute.xlu0 %669
      %671 = vrot.lane.b32.xlu0 %v659, 106
      %v672 = vpop.permute.xlu0 %671
      %673 = vrot.lane.b32.xlu0 %v652, 106
      %v674 = vpop.permute.xlu0 %673
      %675 = vrot.lane.b32.xlu0 %v660, 106
      %v676 = vpop.permute.xlu0 %675
      %vm677 = vcmask 867328
      %v678 = vsel %vm677, %v662, %v664
      %v679 = vsel %vm677, %v664, %v666
      %v680 = vsel %vm677, %v666, %v668
      %v681 = vsel %vm677, %v668, %v670
      %v682 = vsel %vm677, %v670, %v672
      %v683 = vsel %vm677, %v672, %v674
      %v684 = vsel %vm677, %v674, %v676
      %692 = vst [vmem:[#allocation2 + $0xe0] sm:$0xf] %v678
      %693 = vst [vmem:[#allocation2 + $0xe8] sm:$0xf] %v679
      %694 = vst [vmem:[#allocation2 + $0xf0] sm:$0xf] %v680
      %695 = vst [vmem:[#allocation2 + $0xf8] sm:$0xf] %v681
      %696 = vst [vmem:[#allocation2 + $0x100] sm:$0xf] %v682
      %697 = vst [vmem:[#allocation2 + $0x108] sm:$0xf] %v683
      %698 = vst [vmem:[#allocation2 + $0x110] sm:$0xf] %v684
      %v699 = vld [vmem:[%s246] sm:$0xff]
      %v700 = vld [vmem:[%s246 + $0x8] sm:$0xff]
      %v701 = vld [vmem:[%s246 + $0x10] sm:$0xff]
      %v702 = vld [vmem:[%s246 + $0x18] sm:$0xff]
      %v707 = vcombine.low %v699, %v699
      %v708 = vcombine.low %v700, %v700
      %v709 = vcombine.low %v701, %v701
      %v710 = vcombine.low %v702, %v702
      %711 = vrot.lane.b32.xlu0 %v707, 28
      %v712 = vpop.permute.xlu0 %711
      %713 = vrot.lane.b32.xlu0 %v699, 28
      %v714 = vpop.permute.xlu0 %713
      %715 = vrot.lane.b32.xlu0 %v708, 28
      %v716 = vpop.permute.xlu0 %715
      %717 = vrot.lane.b32.xlu0 %v700, 28
      %v718 = vpop.permute.xlu0 %717
      %719 = vrot.lane.b32.xlu0 %v709, 28
      %v720 = vpop.permute.xlu0 %719
      %721 = vrot.lane.b32.xlu0 %v701, 28
      %v722 = vpop.permute.xlu0 %721
      %723 = vrot.lane.b32.xlu0 %v710, 28
      %v724 = vpop.permute.xlu0 %723
      %725 = vrot.lane.b32.xlu0 %v702, 28
      %v726 = vpop.permute.xlu0 %725
      %vm727 = vcmask 228352
      %v728 = vsel %vm727, %v712, %v714
      %v729 = vsel %vm727, %v714, %v716
      %v730 = vsel %vm727, %v716, %v718
      %v731 = vsel %vm727, %v718, %v720
      %v732 = vsel %vm727, %v720, %v722
      %v733 = vsel %vm727, %v722, %v724
      %v734 = vsel %vm727, %v724, %v726
      %742 = vst [vmem:[#allocation2 + $0xe0] sm:$0xf0] %v728
      %743 = vst [vmem:[#allocation2 + $0xe8] sm:$0xf0] %v729
      %744 = vst [vmem:[#allocation2 + $0xf0] sm:$0xf0] %v730
      %745 = vst [vmem:[#allocation2 + $0xf8] sm:$0xf0] %v731
      %746 = vst [vmem:[#allocation2 + $0x100] sm:$0xf0] %v732
      %747 = vst [vmem:[#allocation2 + $0x108] sm:$0xf0] %v733
      %748 = vst [vmem:[#allocation2 + $0x110] sm:$0xf0] %v734
      %v749 = vld [vmem:[%s246] sm:$0xff]
      %v750 = vld [vmem:[%s246 + $0x8] sm:$0xff]
      %v751 = vld [vmem:[%s246 + $0x10] sm:$0xff]
      %v752 = vld [vmem:[%s246 + $0x18] sm:$0xff]
      %v757 = vcombine.high %v749, %v749
      %v758 = vcombine.high %v750, %v750
      %v759 = vcombine.high %v751, %v751
      %v760 = vcombine.high %v752, %v752
      %761 = vrot.lane.b32.xlu0 %v749, 27
      %v762 = vpop.permute.xlu0 %761
      %763 = vrot.lane.b32.xlu0 %v757, 27
      %v764 = vpop.permute.xlu0 %763
      %765 = vrot.lane.b32.xlu0 %v750, 27
      %v766 = vpop.permute.xlu0 %765
      %767 = vrot.lane.b32.xlu0 %v758, 27
      %v768 = vpop.permute.xlu0 %767
      %769 = vrot.lane.b32.xlu0 %v751, 27
      %v770 = vpop.permute.xlu0 %769
      %771 = vrot.lane.b32.xlu0 %v759, 27
      %v772 = vpop.permute.xlu0 %771
      %773 = vrot.lane.b32.xlu0 %v752, 27
      %v774 = vpop.permute.xlu0 %773
      %775 = vrot.lane.b32.xlu0 %v760, 27
      %v776 = vpop.permute.xlu0 %775
      %vm777 = vcmask 220160
      %v778 = vsel %vm777, %v762, %v764
      %v779 = vsel %vm777, %v764, %v766
      %v780 = vsel %vm777, %v766, %v768
      %v781 = vsel %vm777, %v768, %v770
      %v782 = vsel %vm777, %v770, %v772
      %v783 = vsel %vm777, %v772, %v774
      %v784 = vsel %vm777, %v774, %v776
      %792 = vst [vmem:[#allocation2 + $0x118] sm:$0xf] %v778
      %793 = vst [vmem:[#allocation2 + $0x120] sm:$0xf] %v779
      %794 = vst [vmem:[#allocation2 + $0x128] sm:$0xf] %v780
      %795 = vst [vmem:[#allocation2 + $0x130] sm:$0xf] %v781
      %796 = vst [vmem:[#allocation2 + $0x138] sm:$0xf] %v782
      %797 = vst [vmem:[#allocation2 + $0x140] sm:$0xf] %v783
      %798 = vst [vmem:[#allocation2 + $0x148] sm:$0xf] %v784
      %v799 = vld [vmem:[%s246] sm:$0xff]
      %v800 = vld [vmem:[%s246 + $0x8] sm:$0xff]
      %v801 = vld [vmem:[%s246 + $0x10] sm:$0xff]
      %v802 = vld [vmem:[%s246 + $0x18] sm:$0xff]
      %v807 = vcombine.low %v799, %v799
      %v808 = vcombine.low %v800, %v800
      %v809 = vcombine.low %v801, %v801
      %v810 = vcombine.low %v802, %v802
      %811 = vrot.lane.b32.xlu0 %v807, 26
      %v812 = vpop.permute.xlu0 %811
      %813 = vrot.lane.b32.xlu0 %v799, 26
      %v814 = vpop.permute.xlu0 %813
      %815 = vrot.lane.b32.xlu0 %v808, 26
      %v816 = vpop.permute.xlu0 %815
      %817 = vrot.lane.b32.xlu0 %v800, 26
      %v818 = vpop.permute.xlu0 %817
      %819 = vrot.lane.b32.xlu0 %v809, 26
      %v820 = vpop.permute.xlu0 %819
      %821 = vrot.lane.b32.xlu0 %v801, 26
      %v822 = vpop.permute.xlu0 %821
      %823 = vrot.lane.b32.xlu0 %v810, 26
      %v824 = vpop.permute.xlu0 %823
      %825 = vrot.lane.b32.xlu0 %v802, 26
      %v826 = vpop.permute.xlu0 %825
      %vm827 = vcmask 211968
      %v828 = vsel %vm827, %v812, %v814
      %v829 = vsel %vm827, %v814, %v816
      %v830 = vsel %vm827, %v816, %v818
      %v831 = vsel %vm827, %v818, %v820
      %v832 = vsel %vm827, %v820, %v822
      %v833 = vsel %vm827, %v822, %v824
      %v834 = vsel %vm827, %v824, %v826
      %842 = vst [vmem:[#allocation2 + $0x118] sm:$0xf0] %v828
      %843 = vst [vmem:[#allocation2 + $0x120] sm:$0xf0] %v829
      %844 = vst [vmem:[#allocation2 + $0x128] sm:$0xf0] %v830
      %845 = vst [vmem:[#allocation2 + $0x130] sm:$0xf0] %v831
      %846 = vst [vmem:[#allocation2 + $0x138] sm:$0xf0] %v832
      %847 = vst [vmem:[#allocation2 + $0x140] sm:$0xf0] %v833
      %848 = vst [vmem:[#allocation2 + $0x148] sm:$0xf0] %v834
      %v849 = vld [vmem:[%s246] sm:$0xff]
      %v850 = vld [vmem:[%s246 + $0x8] sm:$0xff]
      %v851 = vld [vmem:[%s246 + $0x10] sm:$0xff]
      %v852 = vld [vmem:[%s246 + $0x18] sm:$0xff]
      %v857 = vcombine.high %v849, %v849
      %v858 = vcombine.high %v850, %v850
      %v859 = vcombine.high %v851, %v851
      %v860 = vcombine.high %v852, %v852
      %861 = vrot.lane.b32.xlu0 %v849, 18
      %v862 = vpop.permute.xlu0 %861
      %863 = vrot.lane.b32.xlu0 %v857, 18
      %v864 = vpop.permute.xlu0 %863
      %865 = vrot.lane.b32.xlu0 %v850, 18
      %v866 = vpop.permute.xlu0 %865
      %867 = vrot.lane.b32.xlu0 %v858, 18
      %v868 = vpop.permute.xlu0 %867
      %869 = vrot.lane.b32.xlu0 %v851, 18
      %v870 = vpop.permute.xlu0 %869
      %871 = vrot.lane.b32.xlu0 %v859, 18
      %v872 = vpop.permute.xlu0 %871
      %873 = vrot.lane.b32.xlu0 %v852, 18
      %v874 = vpop.permute.xlu0 %873
      %875 = vrot.lane.b32.xlu0 %v860, 18
      %v876 = vpop.permute.xlu0 %875
      %vm877 = vcmask 146432
      %v878 = vsel %vm877, %v862, %v864
      %v879 = vsel %vm877, %v864, %v866
      %v880 = vsel %vm877, %v866, %v868
      %v881 = vsel %vm877, %v868, %v870
      %v882 = vsel %vm877, %v870, %v872
      %v883 = vsel %vm877, %v872, %v874
      %v884 = vsel %vm877, %v874, %v876
      %892 = vst [vmem:[#allocation2 + $0x150] sm:$0xf] %v878
      %893 = vst [vmem:[#allocation2 + $0x158] sm:$0xf] %v879
      %894 = vst [vmem:[#allocation2 + $0x160] sm:$0xf] %v880
      %895 = vst [vmem:[#allocation2 + $0x168] sm:$0xf] %v881
      %896 = vst [vmem:[#allocation2 + $0x170] sm:$0xf] %v882
      %897 = vst [vmem:[#allocation2 + $0x178] sm:$0xf] %v883
      %898 = vst [vmem:[#allocation2 + $0x180] sm:$0xf] %v884
      %v899 = vld [vmem:[%s246] sm:$0xff]
      %v900 = vld [vmem:[%s246 + $0x8] sm:$0xff]
      %v901 = vld [vmem:[%s246 + $0x10] sm:$0xff]
      %v902 = vld [vmem:[%s246 + $0x18] sm:$0xff]
      %v907 = vcombine.low %v899, %v899
      %v908 = vcombine.low %v900, %v900
      %v909 = vcombine.low %v901, %v901
      %v910 = vcombine.low %v902, %v902
      %911 = vrot.lane.b32.xlu0 %v907, 17
      %v912 = vpop.permute.xlu0 %911
      %913 = vrot.lane.b32.xlu0 %v899, 17
      %v914 = vpop.permute.xlu0 %913
      %915 = vrot.lane.b32.xlu0 %v908, 17
      %v916 = vpop.permute.xlu0 %915
      %917 = vrot.lane.b32.xlu0 %v900, 17
      %v918 = vpop.permute.xlu0 %917
      %919 = vrot.lane.b32.xlu0 %v909, 17
      %v920 = vpop.permute.xlu0 %919
      %921 = vrot.lane.b32.xlu0 %v901, 17
      %v922 = vpop.permute.xlu0 %921
      %923 = vrot.lane.b32.xlu0 %v910, 17
      %v924 = vpop.permute.xlu0 %923
      %925 = vrot.lane.b32.xlu0 %v902, 17
      %v926 = vpop.permute.xlu0 %925
      %vm927 = vcmask 138240
      %v928 = vsel %vm927, %v912, %v914
      %v929 = vsel %vm927, %v914, %v916
      %v930 = vsel %vm927, %v916, %v918
      %v931 = vsel %vm927, %v918, %v920
      %v932 = vsel %vm927, %v920, %v922
      %v933 = vsel %vm927, %v922, %v924
      %v934 = vsel %vm927, %v924, %v926
      %942 = vst [vmem:[#allocation2 + $0x150] sm:$0xf0] %v928
      %943 = vst [vmem:[#allocation2 + $0x158] sm:$0xf0] %v929
      %944 = vst [vmem:[#allocation2 + $0x160] sm:$0xf0] %v930
      %945 = vst [vmem:[#allocation2 + $0x168] sm:$0xf0] %v931
      %946 = vst [vmem:[#allocation2 + $0x170] sm:$0xf0] %v932
      %947 = vst [vmem:[#allocation2 + $0x178] sm:$0xf0] %v933
      %948 = vst [vmem:[#allocation2 + $0x180] sm:$0xf0] %v934
      %v949 = vld [vmem:[%s246] sm:$0xff]
      %v950 = vld [vmem:[%s246 + $0x8] sm:$0xff]
      %v951 = vld [vmem:[%s246 + $0x10] sm:$0xff]
      %v952 = vld [vmem:[%s246 + $0x18] sm:$0xff]
      %v957 = vcombine.high %v949, %v949
      %v958 = vcombine.high %v950, %v950
      %v959 = vcombine.high %v951, %v951
      %v960 = vcombine.high %v952, %v952
      %961 = vrot.lane.b32.xlu0 %v949, 16
      %v962 = vpop.permute.xlu0 %961
      %963 = vrot.lane.b32.xlu0 %v957, 16
      %v964 = vpop.permute.xlu0 %963
      %965 = vrot.lane.b32.xlu0 %v950, 16
      %v966 = vpop.permute.xlu0 %965
      %967 = vrot.lane.b32.xlu0 %v958, 16
      %v968 = vpop.permute.xlu0 %967
      %969 = vrot.lane.b32.xlu0 %v951, 16
      %v970 = vpop.permute.xlu0 %969
      %971 = vrot.lane.b32.xlu0 %v959, 16
      %v972 = vpop.permute.xlu0 %971
      %973 = vrot.lane.b32.xlu0 %v952, 16
      %v974 = vpop.permute.xlu0 %973
      %975 = vrot.lane.b32.xlu0 %v960, 16
      %v976 = vpop.permute.xlu0 %975
      %vm977 = vcmask 130048
      %v978 = vsel %vm977, %v962, %v964
      %v979 = vsel %vm977, %v964, %v966
      %v980 = vsel %vm977, %v966, %v968
      %v981 = vsel %vm977, %v968, %v970
      %v982 = vsel %vm977, %v970, %v972
      %v983 = vsel %vm977, %v972, %v974
      %v984 = vsel %vm977, %v974, %v976
      %992 = vst [vmem:[#allocation2 + $0x188] sm:$0xf] %v978
      %993 = vst [vmem:[#allocation2 + $0x190] sm:$0xf] %v979
      %994 = vst [vmem:[#allocation2 + $0x198] sm:$0xf] %v980
      %995 = vst [vmem:[#allocation2 + $0x1a0] sm:$0xf] %v981
      %996 = vst [vmem:[#allocation2 + $0x1a8] sm:$0xf] %v982
      %997 = vst [vmem:[#allocation2 + $0x1b0] sm:$0xf] %v983
      %998 = vst [vmem:[#allocation2 + $0x1b8] sm:$0xf] %v984
      %v999 = vld [vmem:[%s246] sm:$0xff]
      %v1000 = vld [vmem:[%s246 + $0x8] sm:$0xff]
      %v1001 = vld [vmem:[%s246 + $0x10] sm:$0xff]
      %v1002 = vld [vmem:[%s246 + $0x18] sm:$0xff]
      %v1007 = vcombine.low %v999, %v999
      %v1008 = vcombine.low %v1000, %v1000
      %v1009 = vcombine.low %v1001, %v1001
      %v1010 = vcombine.low %v1002, %v1002
      %1011 = vrot.lane.b32.xlu0 %v1007, 8
      %v1012 = vpop.permute.xlu0 %1011
      %1013 = vrot.lane.b32.xlu0 %v999, 8
      %v1014 = vpop.permute.xlu0 %1013
      %1015 = vrot.lane.b32.xlu0 %v1008, 8
      %v1016 = vpop.permute.xlu0 %1015
      %1017 = vrot.lane.b32.xlu0 %v1000, 8
      %v1018 = vpop.permute.xlu0 %1017
      %1019 = vrot.lane.b32.xlu0 %v1009, 8
      %v1020 = vpop.permute.xlu0 %1019
      %1021 = vrot.lane.b32.xlu0 %v1001, 8
      %v1022 = vpop.permute.xlu0 %1021
      %1023 = vrot.lane.b32.xlu0 %v1010, 8
      %v1024 = vpop.permute.xlu0 %1023
      %1025 = vrot.lane.b32.xlu0 %v1002, 8
      %v1026 = vpop.permute.xlu0 %1025
      %vm1027 = vcmask 64512
      %v1028 = vsel %vm1027, %v1012, %v1014
      %v1029 = vsel %vm1027, %v1014, %v1016
      %v1030 = vsel %vm1027, %v1016, %v1018
      %v1031 = vsel %vm1027, %v1018, %v1020
      %v1032 = vsel %vm1027, %v1020, %v1022
      %v1033 = vsel %vm1027, %v1022, %v1024
      %v1034 = vsel %vm1027, %v1024, %v1026
      %1042 = vst [vmem:[#allocation2 + $0x188] sm:$0xf0] %v1028
      %1043 = vst [vmem:[#allocation2 + $0x190] sm:$0xf0] %v1029
      %1044 = vst [vmem:[#allocation2 + $0x198] sm:$0xf0] %v1030
      %1045 = vst [vmem:[#allocation2 + $0x1a0] sm:$0xf0] %v1031
      %1046 = vst [vmem:[#allocation2 + $0x1a8] sm:$0xf0] %v1032
      %1047 = vst [vmem:[#allocation2 + $0x1b0] sm:$0xf0] %v1033
      %1048 = vst [vmem:[#allocation2 + $0x1b8] sm:$0xf0] %v1034
      %v1049 = vld [vmem:[%s246] sm:$0xff]
      %v1050 = vld [vmem:[%s246 + $0x8] sm:$0xff]
      %v1051 = vld [vmem:[%s246 + $0x10] sm:$0xff]
      %v1052 = vld [vmem:[%s246 + $0x18] sm:$0xff]
      %v1057 = vcombine.high %v1049, %v1049
      %v1058 = vcombine.high %v1050, %v1050
      %v1059 = vcombine.high %v1051, %v1051
      %v1060 = vcombine.high %v1052, %v1052
      %1061 = vrot.lane.b32.xlu0 %v1049, 7
      %v1062 = vpop.permute.xlu0 %1061
      %1063 = vrot.lane.b32.xlu0 %v1057, 7
      %v1064 = vpop.permute.xlu0 %1063
      %1065 = vrot.lane.b32.xlu0 %v1050, 7
      %v1066 = vpop.permute.xlu0 %1065
      %1067 = vrot.lane.b32.xlu0 %v1058, 7
      %v1068 = vpop.permute.xlu0 %1067
      %1069 = vrot.lane.b32.xlu0 %v1051, 7
      %v1070 = vpop.permute.xlu0 %1069
      %1071 = vrot.lane.b32.xlu0 %v1059, 7
      %v1072 = vpop.permute.xlu0 %1071
      %1073 = vrot.lane.b32.xlu0 %v1052, 7
      %v1074 = vpop.permute.xlu0 %1073
      %1075 = vrot.lane.b32.xlu0 %v1060, 7
      %v1076 = vpop.permute.xlu0 %1075
      %vm1077 = vcmask 56320
      %v1078 = vsel %vm1077, %v1062, %v1064
      %v1079 = vsel %vm1077, %v1064, %v1066
      %v1080 = vsel %vm1077, %v1066, %v1068
      %v1081 = vsel %vm1077, %v1068, %v1070
      %v1082 = vsel %vm1077, %v1070, %v1072
      %v1083 = vsel %vm1077, %v1072, %v1074
      %v1084 = vsel %vm1077, %v1074, %v1076
      %1092 = vst [vmem:[#allocation2 + $0x1c0] sm:$0xf] %v1078
      %1093 = vst [vmem:[#allocation2 + $0x1c8] sm:$0xf] %v1079
      %1094 = vst [vmem:[#allocation2 + $0x1d0] sm:$0xf] %v1080
      %1095 = vst [vmem:[#allocation2 + $0x1d8] sm:$0xf] %v1081
      %1096 = vst [vmem:[#allocation2 + $0x1e0] sm:$0xf] %v1082
      %1097 = vst [vmem:[#allocation2 + $0x1e8] sm:$0xf] %v1083
      %1098 = vst [vmem:[#allocation2 + $0x1f0] sm:$0xf] %v1084
      %v1099 = vld [vmem:[%s246] sm:$0xff]
      %v1100 = vld [vmem:[%s246 + $0x8] sm:$0xff]
      %v1101 = vld [vmem:[%s246 + $0x10] sm:$0xff]
      %v1102 = vld [vmem:[%s246 + $0x18] sm:$0xff]
      %v1107 = vcombine.low %v1099, %v1099
      %v1108 = vcombine.low %v1100, %v1100
      %v1109 = vcombine.low %v1101, %v1101
      %v1110 = vcombine.low %v1102, %v1102
      %1111 = vrot.lane.b32.xlu0 %v1107, 6
      %v1112 = vpop.permute.xlu0 %1111
      %1113 = vrot.lane.b32.xlu0 %v1099, 6
      %v1114 = vpop.permute.xlu0 %1113
      %1115 = vrot.lane.b32.xlu0 %v1108, 6
      %v1116 = vpop.permute.xlu0 %1115
      %1117 = vrot.lane.b32.xlu0 %v1100, 6
      %v1118 = vpop.permute.xlu0 %1117
      %1119 = vrot.lane.b32.xlu0 %v1109, 6
      %v1120 = vpop.permute.xlu0 %1119
      %1121 = vrot.lane.b32.xlu0 %v1101, 6
      %v1122 = vpop.permute.xlu0 %1121
      %1123 = vrot.lane.b32.xlu0 %v1110, 6
      %v1124 = vpop.permute.xlu0 %1123
      %1125 = vrot.lane.b32.xlu0 %v1102, 6
      %v1126 = vpop.permute.xlu0 %1125
      %vm1127 = vcmask 48128
      %v1128 = vsel %vm1127, %v1112, %v1114
      %v1129 = vsel %vm1127, %v1114, %v1116
      %v1130 = vsel %vm1127, %v1116, %v1118
      %v1131 = vsel %vm1127, %v1118, %v1120
      %v1132 = vsel %vm1127, %v1120, %v1122
      %v1133 = vsel %vm1127, %v1122, %v1124
      %v1134 = vsel %vm1127, %v1124, %v1126
      %1142 = vst [vmem:[#allocation2 + $0x1c0] sm:$0xf0] %v1128
      %1143 = vst [vmem:[#allocation2 + $0x1c8] sm:$0xf0] %v1129
      %1144 = vst [vmem:[#allocation2 + $0x1d0] sm:$0xf0] %v1130
      %1145 = vst [vmem:[#allocation2 + $0x1d8] sm:$0xf0] %v1131
      %1146 = vst [vmem:[#allocation2 + $0x1e0] sm:$0xf0] %v1132
      %1147 = vst [vmem:[#allocation2 + $0x1e8] sm:$0xf0] %v1133
      %1148 = vst [vmem:[#allocation2 + $0x1f0] sm:$0xf0] %v1134
      %v1149 = vld [vmem:[%s246 + $0x4] sm:$0xff]
      %v1150 = vld [vmem:[%s246 + $0xc] sm:$0xff]
      %v1151 = vld [vmem:[%s246 + $0x14] sm:$0xff]
      %v1152 = vld [vmem:[%s246 + $0x1c] sm:$0xff]
      %v1157 = vcombine.high %v1149, %v1149
      %v1158 = vcombine.high %v1150, %v1150
      %v1159 = vcombine.high %v1151, %v1151
      %v1160 = vcombine.high %v1152, %v1152
      %1161 = vrot.lane.b32.xlu0 %v1149, 56
      %v1162 = vpop.permute.xlu0 %1161
      %1163 = vrot.lane.b32.xlu0 %v1157, 56
      %v1164 = vpop.permute.xlu0 %1163
      %1165 = vrot.lane.b32.xlu0 %v1150, 56
      %v1166 = vpop.permute.xlu0 %1165
      %1167 = vrot.lane.b32.xlu0 %v1158, 56
      %v1168 = vpop.permute.xlu0 %1167
      %1169 = vrot.lane.b32.xlu0 %v1151, 56
      %v1170 = vpop.permute.xlu0 %1169
      %1171 = vrot.lane.b32.xlu0 %v1159, 56
      %v1172 = vpop.permute.xlu0 %1171
      %1173 = vrot.lane.b32.xlu0 %v1152, 56
      %v1174 = vpop.permute.xlu0 %1173
      %1175 = vrot.lane.b32.xlu0 %v1160, 56
      %v1176 = vpop.permute.xlu0 %1175
      %vm1177 = vcmask 457728
      %v1178 = vsel %vm1177, %v1162, %v1164
      %v1179 = vsel %vm1177, %v1164, %v1166
      %v1180 = vsel %vm1177, %v1166, %v1168
      %v1181 = vsel %vm1177, %v1168, %v1170
      %v1182 = vsel %vm1177, %v1170, %v1172
      %v1183 = vsel %vm1177, %v1172, %v1174
      %v1184 = vsel %vm1177, %v1174, %v1176
      %1192 = vst [vmem:[#allocation2 + $0x1f8] sm:$0xf] %v1178
      %1193 = vst [vmem:[#allocation2 + $0x200] sm:$0xf] %v1179
      %1194 = vst [vmem:[#allocation2 + $0x208] sm:$0xf] %v1180
      %1195 = vst [vmem:[#allocation2 + $0x210] sm:$0xf] %v1181
      %1196 = vst [vmem:[#allocation2 + $0x218] sm:$0xf] %v1182
      %1197 = vst [vmem:[#allocation2 + $0x220] sm:$0xf] %v1183
      %1198 = vst [vmem:[#allocation2 + $0x228] sm:$0xf] %v1184
      %v1199 = vld [vmem:[%s246 + $0x4] sm:$0xff]
      %v1200 = vld [vmem:[%s246 + $0xc] sm:$0xff]
      %v1201 = vld [vmem:[%s246 + $0x14] sm:$0xff]
      %v1202 = vld [vmem:[%s246 + $0x1c] sm:$0xff]
      %v1207 = vcombine.low %v1199, %v1199
      %v1208 = vcombine.low %v1200, %v1200
      %v1209 = vcombine.low %v1201, %v1201
      %v1210 = vcombine.low %v1202, %v1202
      %1211 = vrot.lane.b32.xlu0 %v1207, 55
      %v1212 = vpop.permute.xlu0 %1211
      %1213 = vrot.lane.b32.xlu0 %v1199, 55
      %v1214 = vpop.permute.xlu0 %1213
      %1215 = vrot.lane.b32.xlu0 %v1208, 55
      %v1216 = vpop.permute.xlu0 %1215
      %1217 = vrot.lane.b32.xlu0 %v1200, 55
      %v1218 = vpop.permute.xlu0 %1217
      %1219 = vrot.lane.b32.xlu0 %v1209, 55
      %v1220 = vpop.permute.xlu0 %1219
      %1221 = vrot.lane.b32.xlu0 %v1201, 55
      %v1222 = vpop.permute.xlu0 %1221
      %1223 = vrot.lane.b32.xlu0 %v1210, 55
      %v1224 = vpop.permute.xlu0 %1223
      %1225 = vrot.lane.b32.xlu0 %v1202, 55
      %v1226 = vpop.permute.xlu0 %1225
      %vm1227 = vcmask 449536
      %v1228 = vsel %vm1227, %v1212, %v1214
      %v1229 = vsel %vm1227, %v1214, %v1216
      %v1230 = vsel %vm1227, %v1216, %v1218
      %v1231 = vsel %vm1227, %v1218, %v1220
      %v1232 = vsel %vm1227, %v1220, %v1222
      %v1233 = vsel %vm1227, %v1222, %v1224
      %v1234 = vsel %vm1227, %v1224, %v1226
      %1242 = vst [vmem:[#allocation2 + $0x1f8] sm:$0xf0] %v1228
      %1243 = vst [vmem:[#allocation2 + $0x200] sm:$0xf0] %v1229
      %1244 = vst [vmem:[#allocation2 + $0x208] sm:$0xf0] %v1230
      %1245 = vst [vmem:[#allocation2 + $0x210] sm:$0xf0] %v1231
      %1246 = vst [vmem:[#allocation2 + $0x218] sm:$0xf0] %v1232
      %1247 = vst [vmem:[#allocation2 + $0x220] sm:$0xf0] %v1233
      %1248 = vst [vmem:[#allocation2 + $0x228] sm:$0xf0] %v1234
      %v1249 = vld [vmem:[%s246 + $0x4] sm:$0xff]
      %v1250 = vld [vmem:[%s246 + $0xc] sm:$0xff]
      %v1251 = vld [vmem:[%s246 + $0x14] sm:$0xff]
      %v1252 = vld [vmem:[%s246 + $0x1c] sm:$0xff]
      %v1257 = vcombine.high %v1249, %v1249
      %v1258 = vcombine.high %v1250, %v1250
      %v1259 = vcombine.high %v1251, %v1251
      %v1260 = vcombine.high %v1252, %v1252
      %1261 = vrot.lane.b32.xlu0 %v1249, 54
      %v1262 = vpop.permute.xlu0 %1261
      %1263 = vrot.lane.b32.xlu0 %v1257, 54
      %v1264 = vpop.permute.xlu0 %1263
      %1265 = vrot.lane.b32.xlu0 %v1250, 54
      %v1266 = vpop.permute.xlu0 %1265
      %1267 = vrot.lane.b32.xlu0 %v1258, 54
      %v1268 = vpop.permute.xlu0 %1267
      %1269 = vrot.lane.b32.xlu0 %v1251, 54
      %v1270 = vpop.permute.xlu0 %1269
      %1271 = vrot.lane.b32.xlu0 %v1259, 54
      %v1272 = vpop.permute.xlu0 %1271
      %1273 = vrot.lane.b32.xlu0 %v1252, 54
      %v1274 = vpop.permute.xlu0 %1273
      %1275 = vrot.lane.b32.xlu0 %v1260, 54
      %v1276 = vpop.permute.xlu0 %1275
      %vm1277 = vcmask 441344
      %v1278 = vsel %vm1277, %v1262, %v1264
      %v1279 = vsel %vm1277, %v1264, %v1266
      %v1280 = vsel %vm1277, %v1266, %v1268
      %v1281 = vsel %vm1277, %v1268, %v1270
      %v1282 = vsel %vm1277, %v1270, %v1272
      %v1283 = vsel %vm1277, %v1272, %v1274
      %v1284 = vsel %vm1277, %v1274, %v1276
      %1292 = vst [vmem:[#allocation2 + $0x230] sm:$0xf] %v1278
      %1293 = vst [vmem:[#allocation2 + $0x238] sm:$0xf] %v1279
      %1294 = vst [vmem:[#allocation2 + $0x240] sm:$0xf] %v1280
      %1295 = vst [vmem:[#allocation2 + $0x248] sm:$0xf] %v1281
      %1296 = vst [vmem:[#allocation2 + $0x250] sm:$0xf] %v1282
      %1297 = vst [vmem:[#allocation2 + $0x258] sm:$0xf] %v1283
      %1298 = vst [vmem:[#allocation2 + $0x260] sm:$0xf] %v1284
      %v1299 = vld [vmem:[%s246 + $0x4] sm:$0xff]
      %v1300 = vld [vmem:[%s246 + $0xc] sm:$0xff]
      %v1301 = vld [vmem:[%s246 + $0x14] sm:$0xff]
      %v1302 = vld [vmem:[%s246 + $0x1c] sm:$0xff]
      %v1307 = vcombine.low %v1299, %v1299
      %v1308 = vcombine.low %v1300, %v1300
      %v1309 = vcombine.low %v1301, %v1301
      %v1310 = vcombine.low %v1302, %v1302
      %1311 = vrot.lane.b32.xlu0 %v1307, 46
      %v1312 = vpop.permute.xlu0 %1311
      %1313 = vrot.lane.b32.xlu0 %v1299, 46
      %v1314 = vpop.permute.xlu0 %1313
      %1315 = vrot.lane.b32.xlu0 %v1308, 46
      %v1316 = vpop.permute.xlu0 %1315
      %1317 = vrot.lane.b32.xlu0 %v1300, 46
      %v1318 = vpop.permute.xlu0 %1317
      %1319 = vrot.lane.b32.xlu0 %v1309, 46
      %v1320 = vpop.permute.xlu0 %1319
      %1321 = vrot.lane.b32.xlu0 %v1301, 46
      %v1322 = vpop.permute.xlu0 %1321
      %1323 = vrot.lane.b32.xlu0 %v1310, 46
      %v1324 = vpop.permute.xlu0 %1323
      %1325 = vrot.lane.b32.xlu0 %v1302, 46
      %v1326 = vpop.permute.xlu0 %1325
      %vm1327 = vcmask 375808
      %v1328 = vsel %vm1327, %v1312, %v1314
      %v1329 = vsel %vm1327, %v1314, %v1316
      %v1330 = vsel %vm1327, %v1316, %v1318
      %v1331 = vsel %vm1327, %v1318, %v1320
      %v1332 = vsel %vm1327, %v1320, %v1322
      %v1333 = vsel %vm1327, %v1322, %v1324
      %v1334 = vsel %vm1327, %v1324, %v1326
      %1342 = vst [vmem:[#allocation2 + $0x230] sm:$0xf0] %v1328
      %1343 = vst [vmem:[#allocation2 + $0x238] sm:$0xf0] %v1329
      %1344 = vst [vmem:[#allocation2 + $0x240] sm:$0xf0] %v1330
      %1345 = vst [vmem:[#allocation2 + $0x248] sm:$0xf0] %v1331
      %1346 = vst [vmem:[#allocation2 + $0x250] sm:$0xf0] %v1332
      %1347 = vst [vmem:[#allocation2 + $0x258] sm:$0xf0] %v1333
      %1348 = vst [vmem:[#allocation2 + $0x260] sm:$0xf0] %v1334
      %v1349 = vld [vmem:[%s246 + $0x4] sm:$0xff]
      %v1350 = vld [vmem:[%s246 + $0xc] sm:$0xff]
      %v1351 = vld [vmem:[%s246 + $0x14] sm:$0xff]
      %v1352 = vld [vmem:[%s246 + $0x1c] sm:$0xff]
      %v1357 = vcombine.high %v1349, %v1349
      %v1358 = vcombine.high %v1350, %v1350
      %v1359 = vcombine.high %v1351, %v1351
      %v1360 = vcombine.high %v1352, %v1352
      %1361 = vrot.lane.b32.xlu0 %v1349, 45
      %v1362 = vpop.permute.xlu0 %1361
      %1363 = vrot.lane.b32.xlu0 %v1357, 45
      %v1364 = vpop.permute.xlu0 %1363
      %1365 = vrot.lane.b32.xlu0 %v1350, 45
      %v1366 = vpop.permute.xlu0 %1365
      %1367 = vrot.lane.b32.xlu0 %v1358, 45
      %v1368 = vpop.permute.xlu0 %1367
      %1369 = vrot.lane.b32.xlu0 %v1351, 45
      %v1370 = vpop.permute.xlu0 %1369
      %1371 = vrot.lane.b32.xlu0 %v1359, 45
      %v1372 = vpop.permute.xlu0 %1371
      %1373 = vrot.lane.b32.xlu0 %v1352, 45
      %v1374 = vpop.permute.xlu0 %1373
      %1375 = vrot.lane.b32.xlu0 %v1360, 45
      %v1376 = vpop.permute.xlu0 %1375
      %vm1377 = vcmask 367616
      %v1378 = vsel %vm1377, %v1362, %v1364
      %v1379 = vsel %vm1377, %v1364, %v1366
      %v1380 = vsel %vm1377, %v1366, %v1368
      %v1381 = vsel %vm1377, %v1368, %v1370
      %v1382 = vsel %vm1377, %v1370, %v1372
      %v1383 = vsel %vm1377, %v1372, %v1374
      %v1384 = vsel %vm1377, %v1374, %v1376
      %1392 = vst [vmem:[#allocation2 + $0x268] sm:$0xf] %v1378
      %1393 = vst [vmem:[#allocation2 + $0x270] sm:$0xf] %v1379
      %1394 = vst [vmem:[#allocation2 + $0x278] sm:$0xf] %v1380
      %1395 = vst [vmem:[#allocation2 + $0x280] sm:$0xf] %v1381
      %1396 = vst [vmem:[#allocation2 + $0x288] sm:$0xf] %v1382
      %1397 = vst [vmem:[#allocation2 + $0x290] sm:$0xf] %v1383
      %1398 = vst [vmem:[#allocation2 + $0x298] sm:$0xf] %v1384
      %v1399 = vld [vmem:[%s246 + $0x4] sm:$0xff]
      %v1400 = vld [vmem:[%s246 + $0xc] sm:$0xff]
      %v1401 = vld [vmem:[%s246 + $0x14] sm:$0xff]
      %v1402 = vld [vmem:[%s246 + $0x1c] sm:$0xff]
      %v1407 = vcombine.low %v1399, %v1399
      %v1408 = vcombine.low %v1400, %v1400
      %v1409 = vcombine.low %v1401, %v1401
      %v1410 = vcombine.low %v1402, %v1402
      %1411 = vrot.lane.b32.xlu0 %v1407, 44
      %v1412 = vpop.permute.xlu0 %1411
      %1413 = vrot.lane.b32.xlu0 %v1399, 44
      %v1414 = vpop.permute.xlu0 %1413
      %1415 = vrot.lane.b32.xlu0 %v1408, 44
      %v1416 = vpop.permute.xlu0 %1415
      %1417 = vrot.lane.b32.xlu0 %v1400, 44
      %v1418 = vpop.permute.xlu0 %1417
      %1419 = vrot.lane.b32.xlu0 %v1409, 44
      %v1420 = vpop.permute.xlu0 %1419
      %1421 = vrot.lane.b32.xlu0 %v1401, 44
      %v1422 = vpop.permute.xlu0 %1421
      %1423 = vrot.lane.b32.xlu0 %v1410, 44
      %v1424 = vpop.permute.xlu0 %1423
      %1425 = vrot.lane.b32.xlu0 %v1402, 44
      %v1426 = vpop.permute.xlu0 %1425
      %vm1427 = vcmask 359424
      %v1428 = vsel %vm1427, %v1412, %v1414
      %v1429 = vsel %vm1427, %v1414, %v1416
      %v1430 = vsel %vm1427, %v1416, %v1418
      %v1431 = vsel %vm1427, %v1418, %v1420
      %v1432 = vsel %vm1427, %v1420, %v1422
      %v1433 = vsel %vm1427, %v1422, %v1424
      %v1434 = vsel %vm1427, %v1424, %v1426
      %1442 = vst [vmem:[#allocation2 + $0x268] sm:$0xf0] %v1428
      %1443 = vst [vmem:[#allocation2 + $0x270] sm:$0xf0] %v1429
      %1444 = vst [vmem:[#allocation2 + $0x278] sm:$0xf0] %v1430
      %1445 = vst [vmem:[#allocation2 + $0x280] sm:$0xf0] %v1431
      %1446 = vst [vmem:[#allocation2 + $0x288] sm:$0xf0] %v1432
      %1447 = vst [vmem:[#allocation2 + $0x290] sm:$0xf0] %v1433
      %1448 = vst [vmem:[#allocation2 + $0x298] sm:$0xf0] %v1434
      %v1449 = vld [vmem:[%s246 + $0x4] sm:$0xff]
      %v1450 = vld [vmem:[%s246 + $0xc] sm:$0xff]
      %v1451 = vld [vmem:[%s246 + $0x14] sm:$0xff]
      %v1452 = vld [vmem:[%s246 + $0x1c] sm:$0xff]
      %v1457 = vcombine.high %v1449, %v1449
      %v1458 = vcombine.high %v1450, %v1450
      %v1459 = vcombine.high %v1451, %v1451
      %v1460 = vcombine.high %v1452, %v1452
      %1461 = vrot.lane.b32.xlu0 %v1449, 36
      %v1462 = vpop.permute.xlu0 %1461
      %1463 = vrot.lane.b32.xlu0 %v1457, 36
      %v1464 = vpop.permute.xlu0 %1463
      %1465 = vrot.lane.b32.xlu0 %v1450, 36
      %v1466 = vpop.permute.xlu0 %1465
      %1467 = vrot.lane.b32.xlu0 %v1458, 36
      %v1468 = vpop.permute.xlu0 %1467
      %1469 = vrot.lane.b32.xlu0 %v1451, 36
      %v1470 = vpop.permute.xlu0 %1469
      %1471 = vrot.lane.b32.xlu0 %v1459, 36
      %v1472 = vpop.permute.xlu0 %1471
      %1473 = vrot.lane.b32.xlu0 %v1452, 36
      %v1474 = vpop.permute.xlu0 %1473
      %1475 = vrot.lane.b32.xlu0 %v1460, 36
      %v1476 = vpop.permute.xlu0 %1475
      %vm1477 = vcmask 293888
      %v1478 = vsel %vm1477, %v1462, %v1464
      %v1479 = vsel %vm1477, %v1464, %v1466
      %v1480 = vsel %vm1477, %v1466, %v1468
      %v1481 = vsel %vm1477, %v1468, %v1470
      %v1482 = vsel %vm1477, %v1470, %v1472
      %v1483 = vsel %vm1477, %v1472, %v1474
      %v1484 = vsel %vm1477, %v1474, %v1476
      %1492 = vst [vmem:[#allocation2 + $0x2a0] sm:$0xf] %v1478
      %1493 = vst [vmem:[#allocation2 + $0x2a8] sm:$0xf] %v1479
      %1494 = vst [vmem:[#allocation2 + $0x2b0] sm:$0xf] %v1480
      %1495 = vst [vmem:[#allocation2 + $0x2b8] sm:$0xf] %v1481
      %1496 = vst [vmem:[#allocation2 + $0x2c0] sm:$0xf] %v1482
      %1497 = vst [vmem:[#allocation2 + $0x2c8] sm:$0xf] %v1483
      %1498 = vst [vmem:[#allocation2 + $0x2d0] sm:$0xf] %v1484
      %v1499 = vld [vmem:[%s246 + $0x4] sm:$0xff]
      %v1500 = vld [vmem:[%s246 + $0xc] sm:$0xff]
      %v1501 = vld [vmem:[%s246 + $0x14] sm:$0xff]
      %v1502 = vld [vmem:[%s246 + $0x1c] sm:$0xff]
      %v1507 = vcombine.low %v1499, %v1499
      %v1508 = vcombine.low %v1500, %v1500
      %v1509 = vcombine.low %v1501, %v1501
      %v1510 = vcombine.low %v1502, %v1502
      %1511 = vrot.lane.b32.xlu0 %v1507, 35
      %v1512 = vpop.permute.xlu0 %1511
      %1513 = vrot.lane.b32.xlu0 %v1499, 35
      %v1514 = vpop.permute.xlu0 %1513
      %1515 = vrot.lane.b32.xlu0 %v1508, 35
      %v1516 = vpop.permute.xlu0 %1515
      %1517 = vrot.lane.b32.xlu0 %v1500, 35
      %v1518 = vpop.permute.xlu0 %1517
      %1519 = vrot.lane.b32.xlu0 %v1509, 35
      %v1520 = vpop.permute.xlu0 %1519
      %1521 = vrot.lane.b32.xlu0 %v1501, 35
      %v1522 = vpop.permute.xlu0 %1521
      %1523 = vrot.lane.b32.xlu0 %v1510, 35
      %v1524 = vpop.permute.xlu0 %1523
      %1525 = vrot.lane.b32.xlu0 %v1502, 35
      %v1526 = vpop.permute.xlu0 %1525
      %vm1527 = vcmask 285696
      %v1528 = vsel %vm1527, %v1512, %v1514
      %v1529 = vsel %vm1527, %v1514, %v1516
      %v1530 = vsel %vm1527, %v1516, %v1518
      %v1531 = vsel %vm1527, %v1518, %v1520
      %v1532 = vsel %vm1527, %v1520, %v1522
      %v1533 = vsel %vm1527, %v1522, %v1524
      %v1534 = vsel %vm1527, %v1524, %v1526
      %1542 = vst [vmem:[#allocation2 + $0x2a0] sm:$0xf0] %v1528
      %1543 = vst [vmem:[#allocation2 + $0x2a8] sm:$0xf0] %v1529
      %1544 = vst [vmem:[#allocation2 + $0x2b0] sm:$0xf0] %v1530
      %1545 = vst [vmem:[#allocation2 + $0x2b8] sm:$0xf0] %v1531
      %1546 = vst [vmem:[#allocation2 + $0x2c0] sm:$0xf0] %v1532
      %1547 = vst [vmem:[#allocation2 + $0x2c8] sm:$0xf0] %v1533
      %1548 = vst [vmem:[#allocation2 + $0x2d0] sm:$0xf0] %v1534
      %v1549 = vld [vmem:[%s246 + $0x4] sm:$0xff]
      %v1550 = vld [vmem:[%s246 + $0xc] sm:$0xff]
      %v1551 = vld [vmem:[%s246 + $0x14] sm:$0xff]
      %v1552 = vld [vmem:[%s246 + $0x1c] sm:$0xff]
      %v1557 = vcombine.high %v1549, %v1549
      %v1558 = vcombine.high %v1550, %v1550
      %v1559 = vcombine.high %v1551, %v1551
      %v1560 = vcombine.high %v1552, %v1552
      %1561 = vrot.lane.b32.xlu0 %v1549, 34
      %v1562 = vpop.permute.xlu0 %1561
      %1563 = vrot.lane.b32.xlu0 %v1557, 34
      %v1564 = vpop.permute.xlu0 %1563
      %1565 = vrot.lane.b32.xlu0 %v1550, 34
      %v1566 = vpop.permute.xlu0 %1565
      %1567 = vrot.lane.b32.xlu0 %v1558, 34
      %v1568 = vpop.permute.xlu0 %1567
      %1569 = vrot.lane.b32.xlu0 %v1551, 34
      %v1570 = vpop.permute.xlu0 %1569
      %1571 = vrot.lane.b32.xlu0 %v1559, 34
      %v1572 = vpop.permute.xlu0 %1571
      %1573 = vrot.lane.b32.xlu0 %v1552, 34
      %v1574 = vpop.permute.xlu0 %1573
      %1575 = vrot.lane.b32.xlu0 %v1560, 34
      %v1576 = vpop.permute.xlu0 %1575
      %vm1577 = vcmask 277504
      %v1578 = vsel %vm1577, %v1562, %v1564
      %v1579 = vsel %vm1577, %v1564, %v1566
      %v1580 = vsel %vm1577, %v1566, %v1568
      %v1581 = vsel %vm1577, %v1568, %v1570
      %v1582 = vsel %vm1577, %v1570, %v1572
      %v1583 = vsel %vm1577, %v1572, %v1574
      %v1584 = vsel %vm1577, %v1574, %v1576
      %1592 = vst [vmem:[#allocation2 + $0x2d8] sm:$0xf] %v1578
      %1593 = vst [vmem:[#allocation2 + $0x2e0] sm:$0xf] %v1579
      %1594 = vst [vmem:[#allocation2 + $0x2e8] sm:$0xf] %v1580
      %1595 = vst [vmem:[#allocation2 + $0x2f0] sm:$0xf] %v1581
      %1596 = vst [vmem:[#allocation2 + $0x2f8] sm:$0xf] %v1582
      %1597 = vst [vmem:[#allocation2 + $0x300] sm:$0xf] %v1583
      %1598 = vst [vmem:[#allocation2 + $0x308] sm:$0xf] %v1584
      %v1599 = vld [vmem:[%s1] sm:$0xf]
      %v1600 = vld [vmem:[#allocation2] sm:$0xff]
      %v1601 = vld [vmem:[#allocation2 + $0x8] sm:$0xff]
      %v1602 = vld [vmem:[#allocation2 + $0x10] sm:$0xff]
      %v1603 = vld [vmem:[#allocation2 + $0x18] sm:$0xff]
      %v1604 = vld [vmem:[#allocation2 + $0x20] sm:$0xff]
      %v1605 = vld [vmem:[#allocation2 + $0x28] sm:$0xff]
      %v1606 = vld [vmem:[#allocation2 + $0x30] sm:$0xff]
      %v1607 = vld [vmem:[#allocation2 + $0x38] sm:$0xff]
      %v1608 = vld [vmem:[#allocation2 + $0x40] sm:$0xff]
      %v1609 = vld [vmem:[#allocation2 + $0x48] sm:$0xff]
      %v1610 = vld [vmem:[#allocation2 + $0x50] sm:$0xff]
      %v1611 = vld [vmem:[#allocation2 + $0x58] sm:$0xff]
      %v1612 = vld [vmem:[#allocation2 + $0x60] sm:$0xff]
      %v1613 = vld [vmem:[#allocation2 + $0x68] sm:$0xff]
      %v1614 = vld [vmem:[#allocation2 + $0x70] sm:$0xff]
      %v1615 = vld [vmem:[#allocation2 + $0x78] sm:$0xff]
      %v1616 = vld [vmem:[#allocation2 + $0x80] sm:$0xff]
      %v1617 = vld [vmem:[#allocation2 + $0x88] sm:$0xff]
      %v1618 = vld [vmem:[#allocation2 + $0x90] sm:$0xff]
      %v1619 = vld [vmem:[#allocation2 + $0x98] sm:$0xff]
      %v1620 = vld [vmem:[#allocation2 + $0xa0] sm:$0xff]
      %v1621 = vld [vmem:[#allocation2 + $0xa8] sm:$0xff]
      %v1622 = vld [vmem:[#allocation2 + $0xb0] sm:$0xff]
      %v1623 = vld [vmem:[#allocation2 + $0xb8] sm:$0xff]
      %v1624 = vld [vmem:[#allocation2 + $0xc0] sm:$0xff]
      %v1625 = vld [vmem:[#allocation2 + $0xc8] sm:$0xff]
      %v1626 = vld [vmem:[#allocation2 + $0xd0] sm:$0xff]
      %v1627 = vld [vmem:[#allocation2 + $0xd8] sm:$0xff]
      %v1628 = vld [vmem:[#allocation2 + $0xe0] sm:$0xff]
      %v1629 = vld [vmem:[#allocation2 + $0xe8] sm:$0xff]
      %v1630 = vld [vmem:[#allocation2 + $0xf0] sm:$0xff]
      %v1631 = vld [vmem:[#allocation2 + $0xf8] sm:$0xff]
      %v1632 = vld [vmem:[#allocation2 + $0x100] sm:$0xff]
      %v1633 = vld [vmem:[#allocation2 + $0x108] sm:$0xff]
      %v1634 = vld [vmem:[#allocation2 + $0x110] sm:$0xff]
      %v1635 = vld [vmem:[#allocation2 + $0x118] sm:$0xff]
      %v1636 = vld [vmem:[#allocation2 + $0x120] sm:$0xff]
      %v1637 = vld [vmem:[#allocation2 + $0x128] sm:$0xff]
      %v1638 = vld [vmem:[#allocation2 + $0x130] sm:$0xff]
      %v1639 = vld [vmem:[#allocation2 + $0x138] sm:$0xff]
      %v1640 = vld [vmem:[#allocation2 + $0x140] sm:$0xff]
      %v1641 = vld [vmem:[#allocation2 + $0x148] sm:$0xff]
      %v1642 = vld [vmem:[#allocation2 + $0x150] sm:$0xff]
      %v1643 = vld [vmem:[#allocation2 + $0x158] sm:$0xff]
      %v1644 = vld [vmem:[#allocation2 + $0x160] sm:$0xff]
      %v1645 = vld [vmem:[#allocation2 + $0x168] sm:$0xff]
      %v1646 = vld [vmem:[#allocation2 + $0x170] sm:$0xff]
      %v1647 = vld [vmem:[#allocation2 + $0x178] sm:$0xff]
      %v1648 = vld [vmem:[#allocation2 + $0x180] sm:$0xff]
      %v1649 = vld [vmem:[#allocation2 + $0x188] sm:$0xff]
      %v1650 = vld [vmem:[#allocation2 + $0x190] sm:$0xff]
      %v1651 = vld [vmem:[#allocation2 + $0x198] sm:$0xff]
      %v1652 = vld [vmem:[#allocation2 + $0x1a0] sm:$0xff]
      %v1653 = vld [vmem:[#allocation2 + $0x1a8] sm:$0xff]
      %v1654 = vld [vmem:[#allocation2 + $0x1b0] sm:$0xff]
      %v1655 = vld [vmem:[#allocation2 + $0x1b8] sm:$0xff]
      %v1656 = vld [vmem:[#allocation2 + $0x1c0] sm:$0xff]
      %v1657 = vld [vmem:[#allocation2 + $0x1c8] sm:$0xff]
      %v1658 = vld [vmem:[#allocation2 + $0x1d0] sm:$0xff]
      %v1659 = vld [vmem:[#allocation2 + $0x1d8] sm:$0xff]
      %v1660 = vld [vmem:[#allocation2 + $0x1e0] sm:$0xff]
      %v1661 = vld [vmem:[#allocation2 + $0x1e8] sm:$0xff]
      %v1662 = vld [vmem:[#allocation2 + $0x1f0] sm:$0xff]
      %v1663 = vld [vmem:[#allocation2 + $0x1f8] sm:$0xff]
      %v1664 = vld [vmem:[#allocation2 + $0x200] sm:$0xff]
      %v1665 = vld [vmem:[#allocation2 + $0x208] sm:$0xff]
      %v1666 = vld [vmem:[#allocation2 + $0x210] sm:$0xff]
      %v1667 = vld [vmem:[#allocation2 + $0x218] sm:$0xff]
      %v1668 = vld [vmem:[#allocation2 + $0x220] sm:$0xff]
      %v1669 = vld [vmem:[#allocation2 + $0x228] sm:$0xff]
      %v1670 = vld [vmem:[#allocation2 + $0x230] sm:$0xff]
      %v1671 = vld [vmem:[#allocation2 + $0x238] sm:$0xff]
      %v1672 = vld [vmem:[#allocation2 + $0x240] sm:$0xff]
      %v1673 = vld [vmem:[#allocation2 + $0x248] sm:$0xff]
      %v1674 = vld [vmem:[#allocation2 + $0x250] sm:$0xff]
      %v1675 = vld [vmem:[#allocation2 + $0x258] sm:$0xff]
      %v1676 = vld [vmem:[#allocation2 + $0x260] sm:$0xff]
      %v1677 = vld [vmem:[#allocation2 + $0x268] sm:$0xff]
      %v1678 = vld [vmem:[#allocation2 + $0x270] sm:$0xff]
      %v1679 = vld [vmem:[#allocation2 + $0x278] sm:$0xff]
      %v1680 = vld [vmem:[#allocation2 + $0x280] sm:$0xff]
      %v1681 = vld [vmem:[#allocation2 + $0x288] sm:$0xff]
      %v1682 = vld [vmem:[#allocation2 + $0x290] sm:$0xff]
      %v1683 = vld [vmem:[#allocation2 + $0x298] sm:$0xff]
      %v1684 = vld [vmem:[#allocation2 + $0x2a0] sm:$0xff]
      %v1685 = vld [vmem:[#allocation2 + $0x2a8] sm:$0xff]
      %v1686 = vld [vmem:[#allocation2 + $0x2b0] sm:$0xff]
      %v1687 = vld [vmem:[#allocation2 + $0x2b8] sm:$0xff]
      %v1688 = vld [vmem:[#allocation2 + $0x2c0] sm:$0xff]
      %v1689 = vld [vmem:[#allocation2 + $0x2c8] sm:$0xff]
      %v1690 = vld [vmem:[#allocation2 + $0x2d0] sm:$0xff]
      %v1691 = vld [vmem:[#allocation2 + $0x2d8] sm:$0xff]
      %v1692 = vld [vmem:[#allocation2 + $0x2e0] sm:$0xff]
      %v1693 = vld [vmem:[#allocation2 + $0x2e8] sm:$0xff]
      %v1694 = vld [vmem:[#allocation2 + $0x2f0] sm:$0xff]
      %v1695 = vld [vmem:[#allocation2 + $0x2f8] sm:$0xff]
      %v1696 = vld [vmem:[#allocation2 + $0x300] sm:$0xff]
      %v1697 = vld [vmem:[#allocation2 + $0x308] sm:$0xff]
      %v1698 = vld [vmem:[#allocation2 + $0x310] sm:$0xff]
      %v1699 = vld [vmem:[#allocation2 + $0x318] sm:$0xff]
      %v1700 = vld [vmem:[#allocation2 + $0x320] sm:$0xff]
      %v1701 = vld [vmem:[#allocation2 + $0x328] sm:$0xff]
      %v1702 = vld [vmem:[#allocation2 + $0x330] sm:$0xff]
      %v1703 = vld [vmem:[#allocation2 + $0x338] sm:$0xff]
      %v1704 = vld [vmem:[#allocation2 + $0x340] sm:$0xff]
      %v1705 = vld [vmem:[#allocation2 + $0x348] sm:$0xff]
      %v1706 = vld [vmem:[#allocation2 + $0x350] sm:$0xff]
      %v1707 = vld [vmem:[#allocation2 + $0x358] sm:$0xff]
      %v1708 = vld [vmem:[#allocation2 + $0x360] sm:$0xff]
      %v1709 = vld [vmem:[#allocation2 + $0x368] sm:$0xff]
      %v1710 = vld [vmem:[#allocation2 + $0x370] sm:$0xff]
      %v1711 = vld [vmem:[#allocation2 + $0x378] sm:$0xff]
      %v1712 = vld [vmem:[%s2] sm:$0xf]
      %1714 = vset.pattern.permute.xlu0 0
      %1715 = vperm.xlu0 %1714, %v1712
      %v1716 = vpop.permute.xlu0 %1715
      %1718 = vmatprep.subr.mxu0 %v1601
      %1719 = vmatpush1.msra.mxu0 %v1600
      %1720 = vmatprep.subr.mxu0 %v1608
      %1721 = vmatpush1.msra.mxu0 %v1607
      %1722 = vmatprep.subr.mxu0 %v1615
      %1723 = vmatpush1.msra.mxu0 %v1614
      %1724 = vmatprep.subr.mxu0 %v1622
      %1725 = vmatpush1.msra.mxu0 %v1621
      %1726 = vmatprep.subr.mxu0 %v1629
      %1727 = vmatpush1.msra.mxu0 %v1628
      %1728 = vmatprep.subr.mxu0 %v1636
      %1729 = vmatpush1.msra.mxu0 %v1635
      %1730 = vmatprep.subr.mxu0 %v1643
      %1731 = vmatpush1.msra.mxu0 %v1642
      %1732 = vmatprep.subr.mxu0 %v1650
      %1733 = vmatpush1.msra.mxu0 %v1649
      %1734 = vmatprep.subr.mxu0 %v1657
      %1735 = vmatpush1.msra.mxu0 %v1656
      %1736 = vmatprep.subr.mxu0 %v1664
      %1737 = vmatpush1.msra.mxu0 %v1663
      %1738 = vmatprep.subr.mxu0 %v1671
      %1739 = vmatpush1.msra.mxu0 %v1670
      %1740 = vmatprep.subr.mxu0 %v1678
      %1741 = vmatpush1.msra.mxu0 %v1677
      %1742 = vmatprep.subr.mxu0 %v1685
      %1743 = vmatpush1.msra.mxu0 %v1684
      %1744 = vmatprep.subr.mxu0 %v1692
      %1745 = vmatpush1.msra.mxu0 %v1691
      %1746 = vmatprep.subr.mxu0 %v1699
      %1747 = vmatpush1.msra.mxu0 %v1698
      %1748 = vmatprep.subr.mxu0 %v1706
      %1749 = vmatpush1.msra.mxu0 %v1705
      %1750 = vmatprep.subr.mxu0 0.0
      %1751 = vmatpush1.msra.mxu0 0.0
      %1752 = vmatprep.subr.mxu0 0.0
      %1753 = vmatpush1.msra.mxu0 0.0
      %1754 = vmatprep.subr.mxu0 0.0
      %1755 = vmatpush1.msra.mxu0 0.0
      %1756 = vmatprep.subr.mxu0 0.0
      %1757 = vmatpush1.msra.mxu0 0.0
      %1758 = vmatprep.subr.mxu0 0.0
      %1759 = vmatpush1.msra.mxu0 0.0
      %1760 = vmatprep.subr.mxu0 0.0
      %1761 = vmatpush1.msra.mxu0 0.0
      %1762 = vmatprep.subr.mxu0 0.0
      %1763 = vmatpush1.msra.mxu0 0.0
      %1764 = vmatprep.subr.mxu0 0.0
      %1765 = vmatpush1.msra.mxu0 0.0
      %1766 = vmatprep.subr.mxu0 0.0
      %1767 = vmatpush1.msra.mxu0 0.0
      %1768 = vmatprep.subr.mxu0 0.0
      %1769 = vmatpush1.msra.mxu0 0.0
      %1770 = vmatprep.subr.mxu0 0.0
      %1771 = vmatpush1.msra.mxu0 0.0
      %1772 = vmatprep.subr.mxu0 0.0
      %1773 = vmatpush1.msra.mxu0 0.0
      %1774 = vmatprep.subr.mxu0 0.0
      %1775 = vmatpush1.msra.mxu0 0.0
      %1776 = vmatprep.subr.mxu0 0.0
      %1777 = vmatpush1.msra.mxu0 0.0
      %1778 = vmatprep.subr.mxu0 0.0
      %1779 = vmatpush1.msra.mxu0 0.0
      %1780 = vmatprep.subr.mxu0 0.0
      %1781 = vmatpush1.msra.mxu0 0.0
      %1782 = vmatprep.mubr.f32.mxu0 0.0
      %1783 = vmatmul.mubr.f32.gmra.mrb[0].mxu0 %v1599
      %v1784 = vpop.f32.mrb[0].mxu0
      %v1785 = vadd.f32 %v1716, %v1784
      %v1786 = vpop.f32.mrb[0].mxu0
      %v1787 = vadd.f32 %v1716, %v1786
      %1788 = vdwg.mxu0
      %1789 = vmatprep.subr.mxu0 %v1603
      %1790 = vmatpush1.msra.mxu0 %v1602
      %1791 = vmatprep.subr.mxu0 %v1610
      %1792 = vmatpush1.msra.mxu0 %v1609
      %1793 = vmatprep.subr.mxu0 %v1617
      %1794 = vmatpush1.msra.mxu0 %v1616
      %1795 = vmatprep.subr.mxu0 %v1624
      %1796 = vmatpush1.msra.mxu0 %v1623
      %1797 = vmatprep.subr.mxu0 %v1631
      %1798 = vmatpush1.msra.mxu0 %v1630
      %1799 = vmatprep.subr.mxu0 %v1638
      %1800 = vmatpush1.msra.mxu0 %v1637
      %1801 = vmatprep.subr.mxu0 %v1645
      %1802 = vmatpush1.msra.mxu0 %v1644
      %1803 = vmatprep.subr.mxu0 %v1652
      %1804 = vmatpush1.msra.mxu0 %v1651
      %1805 = vmatprep.subr.mxu0 %v1659
      %1806 = vmatpush1.msra.mxu0 %v1658
      %1807 = vmatprep.subr.mxu0 %v1666
      %1808 = vmatpush1.msra.mxu0 %v1665
      %1809 = vmatprep.subr.mxu0 %v1673
      %1810 = vmatpush1.msra.mxu0 %v1672
      %1811 = vmatprep.subr.mxu0 %v1680
      %1812 = vmatpush1.msra.mxu0 %v1679
      %1813 = vmatprep.subr.mxu0 %v1687
      %1814 = vmatpush1.msra.mxu0 %v1686
      %1815 = vmatprep.subr.mxu0 %v1694
      %1816 = vmatpush1.msra.mxu0 %v1693
      %1817 = vmatprep.subr.mxu0 %v1701
      %1818 = vmatpush1.msra.mxu0 %v1700
      %1819 = vmatprep.subr.mxu0 %v1708
      %1820 = vmatpush1.msra.mxu0 %v1707
      %1821 = vmatprep.subr.mxu0 0.0
      %1822 = vmatpush1.msra.mxu0 0.0
      %1823 = vmatprep.subr.mxu0 0.0
      %1824 = vmatpush1.msra.mxu0 0.0
      %1825 = vmatprep.subr.mxu0 0.0
      %1826 = vmatpush1.msra.mxu0 0.0
      %1827 = vmatprep.subr.mxu0 0.0
      %1828 = vmatpush1.msra.mxu0 0.0
      %1829 = vmatprep.subr.mxu0 0.0
      %1830 = vmatpush1.msra.mxu0 0.0
      %1831 = vmatprep.subr.mxu0 0.0
      %1832 = vmatpush1.msra.mxu0 0.0
      %1833 = vmatprep.subr.mxu0 0.0
      %1834 = vmatpush1.msra.mxu0 0.0
      %1835 = vmatprep.subr.mxu0 0.0
      %1836 = vmatpush1.msra.mxu0 0.0
      %1837 = vmatprep.subr.mxu0 0.0
      %1838 = vmatpush1.msra.mxu0 0.0
      %1839 = vmatprep.subr.mxu0 0.0
      %1840 = vmatpush1.msra.mxu0 0.0
      %1841 = vmatprep.subr.mxu0 0.0
      %1842 = vmatpush1.msra.mxu0 0.0
      %1843 = vmatprep.subr.mxu0 0.0
      %1844 = vmatpush1.msra.mxu0 0.0
      %1845 = vmatprep.subr.mxu0 0.0
      %1846 = vmatpush1.msra.mxu0 0.0
      %1847 = vmatprep.subr.mxu0 0.0
      %1848 = vmatpush1.msra.mxu0 0.0
      %1849 = vmatprep.subr.mxu0 0.0
      %1850 = vmatpush1.msra.mxu0 0.0
      %1851 = vmatprep.subr.mxu0 0.0
      %1852 = vmatpush1.msra.mxu0 0.0
      %1853 = vmatprep.mubr.f32.mxu0 0.0
      %1854 = vmatmul.mubr.f32.gmra.mrb[0].mxu0 %v1599
      %v1855 = vpop.f32.mrb[0].mxu0
      %v1856 = vadd.f32 %v1716, %v1855
      %v1857 = vpop.f32.mrb[0].mxu0
      %v1858 = vadd.f32 %v1716, %v1857
      %1859 = vdwg.mxu0
      %1860 = vmatprep.subr.mxu0 %v1605
      %1861 = vmatpush1.msra.mxu0 %v1604
      %1862 = vmatprep.subr.mxu0 %v1612
      %1863 = vmatpush1.msra.mxu0 %v1611
      %1864 = vmatprep.subr.mxu0 %v1619
      %1865 = vmatpush1.msra.mxu0 %v1618
      %1866 = vmatprep.subr.mxu0 %v1626
      %1867 = vmatpush1.msra.mxu0 %v1625
      %1868 = vmatprep.subr.mxu0 %v1633
      %1869 = vmatpush1.msra.mxu0 %v1632
      %1870 = vmatprep.subr.mxu0 %v1640
      %1871 = vmatpush1.msra.mxu0 %v1639
      %1872 = vmatprep.subr.mxu0 %v1647
      %1873 = vmatpush1.msra.mxu0 %v1646
      %1874 = vmatprep.subr.mxu0 %v1654
      %1875 = vmatpush1.msra.mxu0 %v1653
      %1876 = vmatprep.subr.mxu0 %v1661
      %1877 = vmatpush1.msra.mxu0 %v1660
      %1878 = vmatprep.subr.mxu0 %v1668
      %1879 = vmatpush1.msra.mxu0 %v1667
      %1880 = vmatprep.subr.mxu0 %v1675
      %1881 = vmatpush1.msra.mxu0 %v1674
      %1882 = vmatprep.subr.mxu0 %v1682
      %1883 = vmatpush1.msra.mxu0 %v1681
      %1884 = vmatprep.subr.mxu0 %v1689
      %1885 = vmatpush1.msra.mxu0 %v1688
      %1886 = vmatprep.subr.mxu0 %v1696
      %1887 = vmatpush1.msra.mxu0 %v1695
      %1888 = vmatprep.subr.mxu0 %v1703
      %1889 = vmatpush1.msra.mxu0 %v1702
      %1890 = vmatprep.subr.mxu0 %v1710
      %1891 = vmatpush1.msra.mxu0 %v1709
      %1892 = vmatprep.subr.mxu0 0.0
      %1893 = vmatpush1.msra.mxu0 0.0
      %1894 = vmatprep.subr.mxu0 0.0
      %1895 = vmatpush1.msra.mxu0 0.0
      %1896 = vmatprep.subr.mxu0 0.0
      %1897 = vmatpush1.msra.mxu0 0.0
      %1898 = vmatprep.subr.mxu0 0.0
      %1899 = vmatpush1.msra.mxu0 0.0
      %1900 = vmatprep.subr.mxu0 0.0
      %1901 = vmatpush1.msra.mxu0 0.0
      %1902 = vmatprep.subr.mxu0 0.0
      %1903 = vmatpush1.msra.mxu0 0.0
      %1904 = vmatprep.subr.mxu0 0.0
      %1905 = vmatpush1.msra.mxu0 0.0
      %1906 = vmatprep.subr.mxu0 0.0
      %1907 = vmatpush1.msra.mxu0 0.0
      %1908 = vmatprep.subr.mxu0 0.0
      %1909 = vmatpush1.msra.mxu0 0.0
      %1910 = vmatprep.subr.mxu0 0.0
      %1911 = vmatpush1.msra.mxu0 0.0
      %1912 = vmatprep.subr.mxu0 0.0
      %1913 = vmatpush1.msra.mxu0 0.0
      %1914 = vmatprep.subr.mxu0 0.0
      %1915 = vmatpush1.msra.mxu0 0.0
      %1916 = vmatprep.subr.mxu0 0.0
      %1917 = vmatpush1.msra.mxu0 0.0
      %1918 = vmatprep.subr.mxu0 0.0
      %1919 = vmatpush1.msra.mxu0 0.0
      %1920 = vmatprep.subr.mxu0 0.0
      %1921 = vmatpush1.msra.mxu0 0.0
      %1922 = vmatprep.subr.mxu0 0.0
      %1923 = vmatpush1.msra.mxu0 0.0
      %1924 = vmatprep.mubr.f32.mxu0 0.0
      %1925 = vmatmul.mubr.f32.gmra.mrb[0].mxu0 %v1599
      %v1926 = vpop.f32.mrb[0].mxu0
      %v1927 = vadd.f32 %v1716, %v1926
      %v1928 = vpop.f32.mrb[0].mxu0
      %v1929 = vadd.f32 %v1716, %v1928
      %1930 = vdwg.mxu0
      %1931 = vmatprep.subr.mxu0 0.0
      %1932 = vmatpush1.msra.mxu0 %v1606
      %1933 = vmatprep.subr.mxu0 0.0
      %1934 = vmatpush1.msra.mxu0 %v1613
      %1935 = vmatprep.subr.mxu0 0.0
      %1936 = vmatpush1.msra.mxu0 %v1620
      %1937 = vmatprep.subr.mxu0 0.0
      %1938 = vmatpush1.msra.mxu0 %v1627
      %1939 = vmatprep.subr.mxu0 0.0
      %1940 = vmatpush1.msra.mxu0 %v1634
      %1941 = vmatprep.subr.mxu0 0.0
      %1942 = vmatpush1.msra.mxu0 %v1641
      %1943 = vmatprep.subr.mxu0 0.0
      %1944 = vmatpush1.msra.mxu0 %v1648
      %1945 = vmatprep.subr.mxu0 0.0
      %1946 = vmatpush1.msra.mxu0 %v1655
      %1947 = vmatprep.subr.mxu0 0.0
      %1948 = vmatpush1.msra.mxu0 %v1662
      %1949 = vmatprep.subr.mxu0 0.0
      %1950 = vmatpush1.msra.mxu0 %v1669
      %1951 = vmatprep.subr.mxu0 0.0
      %1952 = vmatpush1.msra.mxu0 %v1676
      %1953 = vmatprep.subr.mxu0 0.0
      %1954 = vmatpush1.msra.mxu0 %v1683
      %1955 = vmatprep.subr.mxu0 0.0
      %1956 = vmatpush1.msra.mxu0 %v1690
      %1957 = vmatprep.subr.mxu0 0.0
      %1958 = vmatpush1.msra.mxu0 %v1697
      %1959 = vmatprep.subr.mxu0 0.0
      %1960 = vmatpush1.msra.mxu0 %v1704
      %1961 = vmatprep.subr.mxu0 0.0
      %1962 = vmatpush1.msra.mxu0 %v1711
      %1963 = vmatprep.subr.mxu0 0.0
      %1964 = vmatpush1.msra.mxu0 0.0
      %1965 = vmatprep.subr.mxu0 0.0
      %1966 = vmatpush1.msra.mxu0 0.0
      %1967 = vmatprep.subr.mxu0 0.0
      %1968 = vmatpush1.msra.mxu0 0.0
      %1969 = vmatprep.subr.mxu0 0.0
      %1970 = vmatpush1.msra.mxu0 0.0
      %1971 = vmatprep.subr.mxu0 0.0
      %1972 = vmatpush1.msra.mxu0 0.0
      %1973 = vmatprep.subr.mxu0 0.0
      %1974 = vmatpush1.msra.mxu0 0.0
      %1975 = vmatprep.subr.mxu0 0.0
      %1976 = vmatpush1.msra.mxu0 0.0
      %1977 = vmatprep.subr.mxu0 0.0
      %1978 = vmatpush1.msra.mxu0 0.0
      %1979 = vmatprep.subr.mxu0 0.0
      %1980 = vmatpush1.msra.mxu0 0.0
      %1981 = vmatprep.subr.mxu0 0.0
      %1982 = vmatpush1.msra.mxu0 0.0
      %1983 = vmatprep.subr.mxu0 0.0
      %1984 = vmatpush1.msra.mxu0 0.0
      %1985 = vmatprep.subr.mxu0 0.0
      %1986 = vmatpush1.msra.mxu0 0.0
      %1987 = vmatprep.subr.mxu0 0.0
      %1988 = vmatpush1.msra.mxu0 0.0
      %1989 = vmatprep.subr.mxu0 0.0
      %1990 = vmatpush1.msra.mxu0 0.0
      %1991 = vmatprep.subr.mxu0 0.0
      %1992 = vmatpush1.msra.mxu0 0.0
      %1993 = vmatprep.subr.mxu0 0.0
      %1994 = vmatpush1.msra.mxu0 0.0
      %1995 = vmatprep.mubr.f32.mxu0 0.0
      %1996 = vmatmul.mubr.f32.gmra.mrb[0].mxu0 %v1599
      %v1997 = vpop.f32.mrb[0].mxu0
      %v1998 = vadd.f32 %v1716, %v1997
      %v1999 = vpop.f32.mrb[0].mxu0
      %2000 = vdwg.mxu0
      %v2001 = vmax.f32 %v1785, 0.0
      %v2002 = vmax.f32 %v1787, 0.0
      %v2003 = vmax.f32 %v1856, 0.0
      %v2004 = vmax.f32 %v1858, 0.0
      %v2005 = vmax.f32 %v1927, 0.0
      %v2006 = vmax.f32 %v1929, 0.0
      %v2007 = vmax.f32 %v1998, 0.0
      %v2009 = vlaneseq
      %v2010 = vshrl.u32 %v2009, 7
      %v2011 = vsub.s32 0, %v2010
      %v2012 = vrot.slane %v278, %v2011
      %v2013 = vlaneseq
      %v2014 = vshrl.u32 %v2013, 7
      %v2015 = vsub.s32 1, %v2014
      %v2016 = vrot.slane %v278, %v2015
      %v2017 = vlaneseq
      %v2018 = vshrl.u32 %v2017, 7
      %v2019 = vsub.s32 2, %v2018
      %v2020 = vrot.slane %v278, %v2019
      %v2021 = vlaneseq
      %v2022 = vshrl.u32 %v2021, 7
      %v2023 = vsub.s32 3, %v2022
      %v2024 = vrot.slane %v278, %v2023
      %v2025 = vlaneseq
      %v2026 = vshrl.u32 %v2025, 7
      %v2027 = vsub.s32 4, %v2026
      %v2028 = vrot.slane %v278, %v2027
      %v2029 = vlaneseq
      %v2030 = vshrl.u32 %v2029, 7
      %v2031 = vsub.s32 5, %v2030
      %v2032 = vrot.slane %v278, %v2031
      %v2033 = vlaneseq
      %v2034 = vshrl.u32 %v2033, 7
      %v2035 = vsub.s32 6, %v2034
      %v2036 = vrot.slane %v278, %v2035
      %v2044 = vmul.f32 %v2001, %v2012
      %v2045 = vmul.f32 %v2002, %v2016
      %v2046 = vmul.f32 %v2003, %v2020
      %v2047 = vmul.f32 %v2004, %v2024
      %v2048 = vmul.f32 %v2005, %v2028
      %v2049 = vmul.f32 %v2006, %v2032
      %v2050 = vmul.f32 %v2007, %v2036
      %v2058 = vcombine.low %v2044, %v2045
      %v2059 = vcombine.low %v2046, %v2047
      %v2060 = vcombine.low %v2048, %v2049
      %2061 = vrot.lane.b32.xlu0 %v2058, 111
      %v2062 = vpop.permute.xlu0 %2061
      %2063 = vrot.lane.b32.xlu0 %v2059, 111
      %v2064 = vpop.permute.xlu0 %2063
      %2065 = vrot.lane.b32.xlu0 %v2060, 111
      %v2066 = vpop.permute.xlu0 %2065
      %2067 = vrot.lane.b32.xlu0 %v2050, 111
      %v2068 = vpop.permute.xlu0 %2067
      %v2069 = vrot.slane %v2062, 4
      %v2070 = vrot.slane %v2064, 4
      %v2071 = vrot.slane %v2066, 4
      %v2072 = vrot.slane %v2068, 4
      %vm2073 = vcmask 908288
      %v2074 = vsel %vm2073, %v2069, %v2062
      %vm2075 = vcmask 1043456
      %v2076 = vsel %vm2075, %v2069, %v2070
      %v2077 = vsel %vm2073, %v2076, %v2064
      %v2078 = vsel %vm2075, %v2070, %v2071
      %v2079 = vsel %vm2073, %v2078, %v2066
      %v2080 = vsel %vm2075, %v2071, %v2072
      %v2081 = vsel %vm2073, %v2080, %v2068
      %vm2086 = vcmask 1044344
      %vm2087 = vcmask 1047556
      %vm2088 = vmor %vm2087, %vm2086
      %2089 = vst.msk [vmem:[#allocation3] sm:$0xff] %vm2088, %v2074
      %2090 = vst [vmem:[#allocation3 + $0x8] sm:$0xff] %v2077
      %2091 = vst [vmem:[#allocation3 + $0x10] sm:$0xff] %v2079
      %vm2092 = vcmask 908292
      %vm2093 = vmor %vm2092, %vm2075
      %2094 = vst.msk [vmem:[#allocation3 + $0x18] sm:$0xff] %vm2093, %v2081
      %v2095 = vld [vmem:[#allocation3] sm:$0xff]
      %v2096 = vld [vmem:[#allocation3 + $0x8] sm:$0xff]
      %v2097 = vld [vmem:[#allocation3 + $0x10] sm:$0xff]
      %v2098 = vld [vmem:[#allocation3 + $0x18] sm:$0xf]
      %v2102 = vcombine.high %v2095, %v2095
      %v2103 = vcombine.high %v2096, %v2096
      %v2104 = vcombine.high %v2097, %v2097
      %2108 = vst [vmem:[#allocation2] sm:$0xf] %v2095
      %2109 = vst [vmem:[#allocation2 + $0x8] sm:$0xf] %v2102
      %2110 = vst [vmem:[#allocation2 + $0x10] sm:$0xf] %v2096
      %2111 = vst [vmem:[#allocation2 + $0x18] sm:$0xf] %v2103
      %2112 = vst [vmem:[#allocation2 + $0x20] sm:$0xf] %v2097
      %2113 = vst [vmem:[#allocation2 + $0x28] sm:$0xf] %v2104
      %2114 = vst [vmem:[#allocation2 + $0x30] sm:$0xf] %v2098
      %v2115 = vld [vmem:[#allocation3] sm:$0xff]
      %v2116 = vld [vmem:[#allocation3 + $0x8] sm:$0xff]
      %v2117 = vld [vmem:[#allocation3 + $0x10] sm:$0xff]
      %v2118 = vld [vmem:[#allocation3 + $0x18] sm:$0xff]
      %v2123 = vcombine.low %v2115, %v2115
      %v2124 = vcombine.low %v2116, %v2116
      %v2125 = vcombine.low %v2117, %v2117
      %v2126 = vcombine.low %v2118, %v2118
      %2127 = vrot.lane.b32.xlu0 %v2123, 127
      %v2128 = vpop.permute.xlu0 %2127
      %2129 = vrot.lane.b32.xlu0 %v2115, 127
      %v2130 = vpop.permute.xlu0 %2129
      %2131 = vrot.lane.b32.xlu0 %v2124, 127
      %v2132 = vpop.permute.xlu0 %2131
      %2133 = vrot.lane.b32.xlu0 %v2116, 127
      %v2134 = vpop.permute.xlu0 %2133
      %2135 = vrot.lane.b32.xlu0 %v2125, 127
      %v2136 = vpop.permute.xlu0 %2135
      %2137 = vrot.lane.b32.xlu0 %v2117, 127
      %v2138 = vpop.permute.xlu0 %2137
      %2139 = vrot.lane.b32.xlu0 %v2126, 127
      %v2140 = vpop.permute.xlu0 %2139
      %2141 = vrot.lane.b32.xlu0 %v2118, 127
      %v2142 = vpop.permute.xlu0 %2141
      %v2143 = vsel %vm327, %v2128, %v2130
      %v2144 = vsel %vm327, %v2130, %v2132
      %v2145 = vsel %vm327, %v2132, %v2134
      %v2146 = vsel %vm327, %v2134, %v2136
      %v2147 = vsel %vm327, %v2136, %v2138
      %v2148 = vsel %vm327, %v2138, %v2140
      %v2149 = vsel %vm327, %v2140, %v2142
      %2157 = vst [vmem:[#allocation2] sm:$0xf0] %v2143
      %2158 = vst [vmem:[#allocation2 + $0x8] sm:$0xf0] %v2144
      %2159 = vst [vmem:[#allocation2 + $0x10] sm:$0xf0] %v2145
      %2160 = vst [vmem:[#allocation2 + $0x18] sm:$0xf0] %v2146
      %2161 = vst [vmem:[#allocation2 + $0x20] sm:$0xf0] %v2147
      %2162 = vst [vmem:[#allocation2 + $0x28] sm:$0xf0] %v2148
      %2163 = vst [vmem:[#allocation2 + $0x30] sm:$0xf0] %v2149
      %v2164 = vld [vmem:[#allocation3] sm:$0xff]
      %v2165 = vld [vmem:[#allocation3 + $0x8] sm:$0xff]
      %v2166 = vld [vmem:[#allocation3 + $0x10] sm:$0xff]
      %v2167 = vld [vmem:[#allocation3 + $0x18] sm:$0xff]
      %v2172 = vcombine.high %v2164, %v2164
      %v2173 = vcombine.high %v2165, %v2165
      %v2174 = vcombine.high %v2166, %v2166
      %v2175 = vcombine.high %v2167, %v2167
      %2176 = vrot.lane.b32.xlu0 %v2164, 126
      %v2177 = vpop.permute.xlu0 %2176
      %2178 = vrot.lane.b32.xlu0 %v2172, 126
      %v2179 = vpop.permute.xlu0 %2178
      %2180 = vrot.lane.b32.xlu0 %v2165, 126
      %v2181 = vpop.permute.xlu0 %2180
      %2182 = vrot.lane.b32.xlu0 %v2173, 126
      %v2183 = vpop.permute.xlu0 %2182
      %2184 = vrot.lane.b32.xlu0 %v2166, 126
      %v2185 = vpop.permute.xlu0 %2184
      %2186 = vrot.lane.b32.xlu0 %v2174, 126
      %v2187 = vpop.permute.xlu0 %2186
      %2188 = vrot.lane.b32.xlu0 %v2167, 126
      %v2189 = vpop.permute.xlu0 %2188
      %2190 = vrot.lane.b32.xlu0 %v2175, 126
      %v2191 = vpop.permute.xlu0 %2190
      %v2192 = vsel %vm377, %v2177, %v2179
      %v2193 = vsel %vm377, %v2179, %v2181
      %v2194 = vsel %vm377, %v2181, %v2183
      %v2195 = vsel %vm377, %v2183, %v2185
      %v2196 = vsel %vm377, %v2185, %v2187
      %v2197 = vsel %vm377, %v2187, %v2189
      %v2198 = vsel %vm377, %v2189, %v2191
      %2206 = vst [vmem:[#allocation2 + $0x38] sm:$0xf] %v2192
      %2207 = vst [vmem:[#allocation2 + $0x40] sm:$0xf] %v2193
      %2208 = vst [vmem:[#allocation2 + $0x48] sm:$0xf] %v2194
      %2209 = vst [vmem:[#allocation2 + $0x50] sm:$0xf] %v2195
      %2210 = vst [vmem:[#allocation2 + $0x58] sm:$0xf] %v2196
      %2211 = vst [vmem:[#allocation2 + $0x60] sm:$0xf] %v2197
      %2212 = vst [vmem:[#allocation2 + $0x68] sm:$0xf] %v2198
      %v2213 = vld [vmem:[#allocation3] sm:$0xff]
      %v2214 = vld [vmem:[#allocation3 + $0x8] sm:$0xff]
      %v2215 = vld [vmem:[#allocation3 + $0x10] sm:$0xff]
      %v2216 = vld [vmem:[#allocation3 + $0x18] sm:$0xff]
      %v2221 = vcombine.low %v2213, %v2213
      %v2222 = vcombine.low %v2214, %v2214
      %v2223 = vcombine.low %v2215, %v2215
      %v2224 = vcombine.low %v2216, %v2216
      %2225 = vrot.lane.b32.xlu0 %v2221, 118
      %v2226 = vpop.permute.xlu0 %2225
      %2227 = vrot.lane.b32.xlu0 %v2213, 118
      %v2228 = vpop.permute.xlu0 %2227
      %2229 = vrot.lane.b32.xlu0 %v2222, 118
      %v2230 = vpop.permute.xlu0 %2229
      %2231 = vrot.lane.b32.xlu0 %v2214, 118
      %v2232 = vpop.permute.xlu0 %2231
      %2233 = vrot.lane.b32.xlu0 %v2223, 118
      %v2234 = vpop.permute.xlu0 %2233
      %2235 = vrot.lane.b32.xlu0 %v2215, 118
      %v2236 = vpop.permute.xlu0 %2235
      %2237 = vrot.lane.b32.xlu0 %v2224, 118
      %v2238 = vpop.permute.xlu0 %2237
      %2239 = vrot.lane.b32.xlu0 %v2216, 118
      %v2240 = vpop.permute.xlu0 %2239
      %v2241 = vsel %vm427, %v2226, %v2228
      %v2242 = vsel %vm427, %v2228, %v2230
      %v2243 = vsel %vm427, %v2230, %v2232
      %v2244 = vsel %vm427, %v2232, %v2234
      %v2245 = vsel %vm427, %v2234, %v2236
      %v2246 = vsel %vm427, %v2236, %v2238
      %v2247 = vsel %vm427, %v2238, %v2240
      %2255 = vst [vmem:[#allocation2 + $0x38] sm:$0xf0] %v2241
      %2256 = vst [vmem:[#allocation2 + $0x40] sm:$0xf0] %v2242
      %2257 = vst [vmem:[#allocation2 + $0x48] sm:$0xf0] %v2243
      %2258 = vst [vmem:[#allocation2 + $0x50] sm:$0xf0] %v2244
      %2259 = vst [vmem:[#allocation2 + $0x58] sm:$0xf0] %v2245
      %2260 = vst [vmem:[#allocation2 + $0x60] sm:$0xf0] %v2246
      %2261 = vst [vmem:[#allocation2 + $0x68] sm:$0xf0] %v2247
      %v2262 = vld [vmem:[#allocation3] sm:$0xff]
      %v2263 = vld [vmem:[#allocation3 + $0x8] sm:$0xff]
      %v2264 = vld [vmem:[#allocation3 + $0x10] sm:$0xff]
      %v2265 = vld [vmem:[#allocation3 + $0x18] sm:$0xff]
      %v2270 = vcombine.high %v2262, %v2262
      %v2271 = vcombine.high %v2263, %v2263
      %v2272 = vcombine.high %v2264, %v2264
      %v2273 = vcombine.high %v2265, %v2265
      %2274 = vrot.lane.b32.xlu0 %v2262, 117
      %v2275 = vpop.permute.xlu0 %2274
      %2276 = vrot.lane.b32.xlu0 %v2270, 117
      %v2277 = vpop.permute.xlu0 %2276
      %2278 = vrot.lane.b32.xlu0 %v2263, 117
      %v2279 = vpop.permute.xlu0 %2278
      %2280 = vrot.lane.b32.xlu0 %v2271, 117
      %v2281 = vpop.permute.xlu0 %2280
      %2282 = vrot.lane.b32.xlu0 %v2264, 117
      %v2283 = vpop.permute.xlu0 %2282
      %2284 = vrot.lane.b32.xlu0 %v2272, 117
      %v2285 = vpop.permute.xlu0 %2284
      %2286 = vrot.lane.b32.xlu0 %v2265, 117
      %v2287 = vpop.permute.xlu0 %2286
      %2288 = vrot.lane.b32.xlu0 %v2273, 117
      %v2289 = vpop.permute.xlu0 %2288
      %v2290 = vsel %vm477, %v2275, %v2277
      %v2291 = vsel %vm477, %v2277, %v2279
      %v2292 = vsel %vm477, %v2279, %v2281
      %v2293 = vsel %vm477, %v2281, %v2283
      %v2294 = vsel %vm477, %v2283, %v2285
      %v2295 = vsel %vm477, %v2285, %v2287
      %v2296 = vsel %vm477, %v2287, %v2289
      %2304 = vst [vmem:[#allocation2 + $0x70] sm:$0xf] %v2290
      %2305 = vst [vmem:[#allocation2 + $0x78] sm:$0xf] %v2291
      %2306 = vst [vmem:[#allocation2 + $0x80] sm:$0xf] %v2292
      %2307 = vst [vmem:[#allocation2 + $0x88] sm:$0xf] %v2293
      %2308 = vst [vmem:[#allocation2 + $0x90] sm:$0xf] %v2294
      %2309 = vst [vmem:[#allocation2 + $0x98] sm:$0xf] %v2295
      %2310 = vst [vmem:[#allocation2 + $0xa0] sm:$0xf] %v2296
      %v2311 = vld [vmem:[#allocation3] sm:$0xff]
      %v2312 = vld [vmem:[#allocation3 + $0x8] sm:$0xff]
      %v2313 = vld [vmem:[#allocation3 + $0x10] sm:$0xff]
      %v2314 = vld [vmem:[#allocation3 + $0x18] sm:$0xff]
      %v2319 = vcombine.low %v2311, %v2311
      %v2320 = vcombine.low %v2312, %v2312
      %v2321 = vcombine.low %v2313, %v2313
      %v2322 = vcombine.low %v2314, %v2314
      %2323 = vrot.lane.b32.xlu0 %v2319, 116
      %v2324 = vpop.permute.xlu0 %2323
      %2325 = vrot.lane.b32.xlu0 %v2311, 116
      %v2326 = vpop.permute.xlu0 %2325
      %2327 = vrot.lane.b32.xlu0 %v2320, 116
      %v2328 = vpop.permute.xlu0 %2327
      %2329 = vrot.lane.b32.xlu0 %v2312, 116
      %v2330 = vpop.permute.xlu0 %2329
      %2331 = vrot.lane.b32.xlu0 %v2321, 116
      %v2332 = vpop.permute.xlu0 %2331
      %2333 = vrot.lane.b32.xlu0 %v2313, 116
      %v2334 = vpop.permute.xlu0 %2333
      %2335 = vrot.lane.b32.xlu0 %v2322, 116
      %v2336 = vpop.permute.xlu0 %2335
      %2337 = vrot.lane.b32.xlu0 %v2314, 116
      %v2338 = vpop.permute.xlu0 %2337
      %v2339 = vsel %vm527, %v2324, %v2326
      %v2340 = vsel %vm527, %v2326, %v2328
      %v2341 = vsel %vm527, %v2328, %v2330
      %v2342 = vsel %vm527, %v2330, %v2332
      %v2343 = vsel %vm527, %v2332, %v2334
      %v2344 = vsel %vm527, %v2334, %v2336
      %v2345 = vsel %vm527, %v2336, %v2338
      %2353 = vst [vmem:[#allocation2 + $0x70] sm:$0xf0] %v2339
      %2354 = vst [vmem:[#allocation2 + $0x78] sm:$0xf0] %v2340
      %2355 = vst [vmem:[#allocation2 + $0x80] sm:$0xf0] %v2341
      %2356 = vst [vmem:[#allocation2 + $0x88] sm:$0xf0] %v2342
      %2357 = vst [vmem:[#allocation2 + $0x90] sm:$0xf0] %v2343
      %2358 = vst [vmem:[#allocation2 + $0x98] sm:$0xf0] %v2344
      %2359 = vst [vmem:[#allocation2 + $0xa0] sm:$0xf0] %v2345
      %v2360 = vld [vmem:[#allocation3] sm:$0xff]
      %v2361 = vld [vmem:[#allocation3 + $0x8] sm:$0xff]
      %v2362 = vld [vmem:[#allocation3 + $0x10] sm:$0xff]
      %v2363 = vld [vmem:[#allocation3 + $0x18] sm:$0xff]
      %v2368 = vcombine.high %v2360, %v2360
      %v2369 = vcombine.high %v2361, %v2361
      %v2370 = vcombine.high %v2362, %v2362
      %v2371 = vcombine.high %v2363, %v2363
      %2372 = vrot.lane.b32.xlu0 %v2360, 108
      %v2373 = vpop.permute.xlu0 %2372
      %2374 = vrot.lane.b32.xlu0 %v2368, 108
      %v2375 = vpop.permute.xlu0 %2374
      %2376 = vrot.lane.b32.xlu0 %v2361, 108
      %v2377 = vpop.permute.xlu0 %2376
      %2378 = vrot.lane.b32.xlu0 %v2369, 108
      %v2379 = vpop.permute.xlu0 %2378
      %2380 = vrot.lane.b32.xlu0 %v2362, 108
      %v2381 = vpop.permute.xlu0 %2380
      %2382 = vrot.lane.b32.xlu0 %v2370, 108
      %v2383 = vpop.permute.xlu0 %2382
      %2384 = vrot.lane.b32.xlu0 %v2363, 108
      %v2385 = vpop.permute.xlu0 %2384
      %2386 = vrot.lane.b32.xlu0 %v2371, 108
      %v2387 = vpop.permute.xlu0 %2386
      %v2388 = vsel %vm577, %v2373, %v2375
      %v2389 = vsel %vm577, %v2375, %v2377
      %v2390 = vsel %vm577, %v2377, %v2379
      %v2391 = vsel %vm577, %v2379, %v2381
      %v2392 = vsel %vm577, %v2381, %v2383
      %v2393 = vsel %vm577, %v2383, %v2385
      %v2394 = vsel %vm577, %v2385, %v2387
      %2402 = vst [vmem:[#allocation2 + $0xa8] sm:$0xf] %v2388
      %2403 = vst [vmem:[#allocation2 + $0xb0] sm:$0xf] %v2389
      %2404 = vst [vmem:[#allocation2 + $0xb8] sm:$0xf] %v2390
      %2405 = vst [vmem:[#allocation2 + $0xc0] sm:$0xf] %v2391
      %2406 = vst [vmem:[#allocation2 + $0xc8] sm:$0xf] %v2392
      %2407 = vst [vmem:[#allocation2 + $0xd0] sm:$0xf] %v2393
      %2408 = vst [vmem:[#allocation2 + $0xd8] sm:$0xf] %v2394
      %v2409 = vld [vmem:[#allocation3] sm:$0xff]
      %v2410 = vld [vmem:[#allocation3 + $0x8] sm:$0xff]
      %v2411 = vld [vmem:[#allocation3 + $0x10] sm:$0xff]
      %v2412 = vld [vmem:[#allocation3 + $0x18] sm:$0xff]
      %v2417 = vcombine.low %v2409, %v2409
      %v2418 = vcombine.low %v2410, %v2410
      %v2419 = vcombine.low %v2411, %v2411
      %v2420 = vcombine.low %v2412, %v2412
      %2421 = vrot.lane.b32.xlu0 %v2417, 107
      %v2422 = vpop.permute.xlu0 %2421
      %2423 = vrot.lane.b32.xlu0 %v2409, 107
      %v2424 = vpop.permute.xlu0 %2423
      %2425 = vrot.lane.b32.xlu0 %v2418, 107
      %v2426 = vpop.permute.xlu0 %2425
      %2427 = vrot.lane.b32.xlu0 %v2410, 107
      %v2428 = vpop.permute.xlu0 %2427
      %2429 = vrot.lane.b32.xlu0 %v2419, 107
      %v2430 = vpop.permute.xlu0 %2429
      %2431 = vrot.lane.b32.xlu0 %v2411, 107
      %v2432 = vpop.permute.xlu0 %2431
      %2433 = vrot.lane.b32.xlu0 %v2420, 107
      %v2434 = vpop.permute.xlu0 %2433
      %2435 = vrot.lane.b32.xlu0 %v2412, 107
      %v2436 = vpop.permute.xlu0 %2435
      %v2437 = vsel %vm627, %v2422, %v2424
      %v2438 = vsel %vm627, %v2424, %v2426
      %v2439 = vsel %vm627, %v2426, %v2428
      %v2440 = vsel %vm627, %v2428, %v2430
      %v2441 = vsel %vm627, %v2430, %v2432
      %v2442 = vsel %vm627, %v2432, %v2434
      %v2443 = vsel %vm627, %v2434, %v2436
      %2451 = vst [vmem:[#allocation2 + $0xa8] sm:$0xf0] %v2437
      %2452 = vst [vmem:[#allocation2 + $0xb0] sm:$0xf0] %v2438
      %2453 = vst [vmem:[#allocation2 + $0xb8] sm:$0xf0] %v2439
      %2454 = vst [vmem:[#allocation2 + $0xc0] sm:$0xf0] %v2440
      %2455 = vst [vmem:[#allocation2 + $0xc8] sm:$0xf0] %v2441
      %2456 = vst [vmem:[#allocation2 + $0xd0] sm:$0xf0] %v2442
      %2457 = vst [vmem:[#allocation2 + $0xd8] sm:$0xf0] %v2443
      %v2458 = vld [vmem:[#allocation3] sm:$0xff]
      %v2459 = vld [vmem:[#allocation3 + $0x8] sm:$0xff]
      %v2460 = vld [vmem:[#allocation3 + $0x10] sm:$0xff]
      %v2461 = vld [vmem:[#allocation3 + $0x18] sm:$0xff]
      %v2466 = vcombine.high %v2458, %v2458
      %v2467 = vcombine.high %v2459, %v2459
      %v2468 = vcombine.high %v2460, %v2460
      %v2469 = vcombine.high %v2461, %v2461
      %2470 = vrot.lane.b32.xlu0 %v2458, 106
      %v2471 = vpop.permute.xlu0 %2470
      %2472 = vrot.lane.b32.xlu0 %v2466, 106
      %v2473 = vpop.permute.xlu0 %2472
      %2474 = vrot.lane.b32.xlu0 %v2459, 106
      %v2475 = vpop.permute.xlu0 %2474
      %2476 = vrot.lane.b32.xlu0 %v2467, 106
      %v2477 = vpop.permute.xlu0 %2476
      %2478 = vrot.lane.b32.xlu0 %v2460, 106
      %v2479 = vpop.permute.xlu0 %2478
      %2480 = vrot.lane.b32.xlu0 %v2468, 106
      %v2481 = vpop.permute.xlu0 %2480
      %2482 = vrot.lane.b32.xlu0 %v2461, 106
      %v2483 = vpop.permute.xlu0 %2482
      %2484 = vrot.lane.b32.xlu0 %v2469, 106
      %v2485 = vpop.permute.xlu0 %2484
      %v2486 = vsel %vm677, %v2471, %v2473
      %v2487 = vsel %vm677, %v2473, %v2475
      %v2488 = vsel %vm677, %v2475, %v2477
      %v2489 = vsel %vm677, %v2477, %v2479
      %v2490 = vsel %vm677, %v2479, %v2481
      %v2491 = vsel %vm677, %v2481, %v2483
      %v2492 = vsel %vm677, %v2483, %v2485
      %2500 = vst [vmem:[#allocation2 + $0xe0] sm:$0xf] %v2486
      %2501 = vst [vmem:[#allocation2 + $0xe8] sm:$0xf] %v2487
      %2502 = vst [vmem:[#allocation2 + $0xf0] sm:$0xf] %v2488
      %2503 = vst [vmem:[#allocation2 + $0xf8] sm:$0xf] %v2489
      %2504 = vst [vmem:[#allocation2 + $0x100] sm:$0xf] %v2490
      %2505 = vst [vmem:[#allocation2 + $0x108] sm:$0xf] %v2491
      %2506 = vst [vmem:[#allocation2 + $0x110] sm:$0xf] %v2492
      %v2507 = vld [vmem:[#allocation3] sm:$0xff]
      %v2508 = vld [vmem:[#allocation3 + $0x8] sm:$0xff]
      %v2509 = vld [vmem:[#allocation3 + $0x10] sm:$0xff]
      %v2510 = vld [vmem:[#allocation3 + $0x18] sm:$0xff]
      %v2515 = vcombine.low %v2507, %v2507
      %v2516 = vcombine.low %v2508, %v2508
      %v2517 = vcombine.low %v2509, %v2509
      %v2518 = vcombine.low %v2510, %v2510
      %2519 = vrot.lane.b32.xlu0 %v2515, 28
      %v2520 = vpop.permute.xlu0 %2519
      %2521 = vrot.lane.b32.xlu0 %v2507, 28
      %v2522 = vpop.permute.xlu0 %2521
      %2523 = vrot.lane.b32.xlu0 %v2516, 28
      %v2524 = vpop.permute.xlu0 %2523
      %2525 = vrot.lane.b32.xlu0 %v2508, 28
      %v2526 = vpop.permute.xlu0 %2525
      %2527 = vrot.lane.b32.xlu0 %v2517, 28
      %v2528 = vpop.permute.xlu0 %2527
      %2529 = vrot.lane.b32.xlu0 %v2509, 28
      %v2530 = vpop.permute.xlu0 %2529
      %2531 = vrot.lane.b32.xlu0 %v2518, 28
      %v2532 = vpop.permute.xlu0 %2531
      %2533 = vrot.lane.b32.xlu0 %v2510, 28
      %v2534 = vpop.permute.xlu0 %2533
      %v2535 = vsel %vm727, %v2520, %v2522
      %v2536 = vsel %vm727, %v2522, %v2524
      %v2537 = vsel %vm727, %v2524, %v2526
      %v2538 = vsel %vm727, %v2526, %v2528
      %v2539 = vsel %vm727, %v2528, %v2530
      %v2540 = vsel %vm727, %v2530, %v2532
      %v2541 = vsel %vm727, %v2532, %v2534
      %2549 = vst [vmem:[#allocation2 + $0xe0] sm:$0xf0] %v2535
      %2550 = vst [vmem:[#allocation2 + $0xe8] sm:$0xf0] %v2536
      %2551 = vst [vmem:[#allocation2 + $0xf0] sm:$0xf0] %v2537
      %2552 = vst [vmem:[#allocation2 + $0xf8] sm:$0xf0] %v2538
      %2553 = vst [vmem:[#allocation2 + $0x100] sm:$0xf0] %v2539
      %2554 = vst [vmem:[#allocation2 + $0x108] sm:$0xf0] %v2540
      %2555 = vst [vmem:[#allocation2 + $0x110] sm:$0xf0] %v2541
      %v2556 = vld [vmem:[#allocation3] sm:$0xff]
      %v2557 = vld [vmem:[#allocation3 + $0x8] sm:$0xff]
      %v2558 = vld [vmem:[#allocation3 + $0x10] sm:$0xff]
      %v2559 = vld [vmem:[#allocation3 + $0x18] sm:$0xff]
      %v2564 = vcombine.high %v2556, %v2556
      %v2565 = vcombine.high %v2557, %v2557
      %v2566 = vcombine.high %v2558, %v2558
      %v2567 = vcombine.high %v2559, %v2559
      %2568 = vrot.lane.b32.xlu0 %v2556, 27
      %v2569 = vpop.permute.xlu0 %2568
      %2570 = vrot.lane.b32.xlu0 %v2564, 27
      %v2571 = vpop.permute.xlu0 %2570
      %2572 = vrot.lane.b32.xlu0 %v2557, 27
      %v2573 = vpop.permute.xlu0 %2572
      %2574 = vrot.lane.b32.xlu0 %v2565, 27
      %v2575 = vpop.permute.xlu0 %2574
      %2576 = vrot.lane.b32.xlu0 %v2558, 27
      %v2577 = vpop.permute.xlu0 %2576
      %2578 = vrot.lane.b32.xlu0 %v2566, 27
      %v2579 = vpop.permute.xlu0 %2578
      %2580 = vrot.lane.b32.xlu0 %v2559, 27
      %v2581 = vpop.permute.xlu0 %2580
      %2582 = vrot.lane.b32.xlu0 %v2567, 27
      %v2583 = vpop.permute.xlu0 %2582
      %v2584 = vsel %vm777, %v2569, %v2571
      %v2585 = vsel %vm777, %v2571, %v2573
      %v2586 = vsel %vm777, %v2573, %v2575
      %v2587 = vsel %vm777, %v2575, %v2577
      %v2588 = vsel %vm777, %v2577, %v2579
      %v2589 = vsel %vm777, %v2579, %v2581
      %v2590 = vsel %vm777, %v2581, %v2583
      %2598 = vst [vmem:[#allocation2 + $0x118] sm:$0xf] %v2584
      %2599 = vst [vmem:[#allocation2 + $0x120] sm:$0xf] %v2585
      %2600 = vst [vmem:[#allocation2 + $0x128] sm:$0xf] %v2586
      %2601 = vst [vmem:[#allocation2 + $0x130] sm:$0xf] %v2587
      %2602 = vst [vmem:[#allocation2 + $0x138] sm:$0xf] %v2588
      %2603 = vst [vmem:[#allocation2 + $0x140] sm:$0xf] %v2589
      %2604 = vst [vmem:[#allocation2 + $0x148] sm:$0xf] %v2590
      %v2605 = vld [vmem:[#allocation3] sm:$0xff]
      %v2606 = vld [vmem:[#allocation3 + $0x8] sm:$0xff]
      %v2607 = vld [vmem:[#allocation3 + $0x10] sm:$0xff]
      %v2608 = vld [vmem:[#allocation3 + $0x18] sm:$0xff]
      %v2613 = vcombine.low %v2605, %v2605
      %v2614 = vcombine.low %v2606, %v2606
      %v2615 = vcombine.low %v2607, %v2607
      %v2616 = vcombine.low %v2608, %v2608
      %2617 = vrot.lane.b32.xlu0 %v2613, 26
      %v2618 = vpop.permute.xlu0 %2617
      %2619 = vrot.lane.b32.xlu0 %v2605, 26
      %v2620 = vpop.permute.xlu0 %2619
      %2621 = vrot.lane.b32.xlu0 %v2614, 26
      %v2622 = vpop.permute.xlu0 %2621
      %2623 = vrot.lane.b32.xlu0 %v2606, 26
      %v2624 = vpop.permute.xlu0 %2623
      %2625 = vrot.lane.b32.xlu0 %v2615, 26
      %v2626 = vpop.permute.xlu0 %2625
      %2627 = vrot.lane.b32.xlu0 %v2607, 26
      %v2628 = vpop.permute.xlu0 %2627
      %2629 = vrot.lane.b32.xlu0 %v2616, 26
      %v2630 = vpop.permute.xlu0 %2629
      %2631 = vrot.lane.b32.xlu0 %v2608, 26
      %v2632 = vpop.permute.xlu0 %2631
      %v2633 = vsel %vm827, %v2618, %v2620
      %v2634 = vsel %vm827, %v2620, %v2622
      %v2635 = vsel %vm827, %v2622, %v2624
      %v2636 = vsel %vm827, %v2624, %v2626
      %v2637 = vsel %vm827, %v2626, %v2628
      %v2638 = vsel %vm827, %v2628, %v2630
      %v2639 = vsel %vm827, %v2630, %v2632
      %2647 = vst [vmem:[#allocation2 + $0x118] sm:$0xf0] %v2633
      %2648 = vst [vmem:[#allocation2 + $0x120] sm:$0xf0] %v2634
      %2649 = vst [vmem:[#allocation2 + $0x128] sm:$0xf0] %v2635
      %2650 = vst [vmem:[#allocation2 + $0x130] sm:$0xf0] %v2636
      %2651 = vst [vmem:[#allocation2 + $0x138] sm:$0xf0] %v2637
      %2652 = vst [vmem:[#allocation2 + $0x140] sm:$0xf0] %v2638
      %2653 = vst [vmem:[#allocation2 + $0x148] sm:$0xf0] %v2639
      %v2654 = vld [vmem:[#allocation3] sm:$0xff]
      %v2655 = vld [vmem:[#allocation3 + $0x8] sm:$0xff]
      %v2656 = vld [vmem:[#allocation3 + $0x10] sm:$0xff]
      %v2657 = vld [vmem:[#allocation3 + $0x18] sm:$0xff]
      %v2662 = vcombine.high %v2654, %v2654
      %v2663 = vcombine.high %v2655, %v2655
      %v2664 = vcombine.high %v2656, %v2656
      %v2665 = vcombine.high %v2657, %v2657
      %2666 = vrot.lane.b32.xlu0 %v2654, 18
      %v2667 = vpop.permute.xlu0 %2666
      %2668 = vrot.lane.b32.xlu0 %v2662, 18
      %v2669 = vpop.permute.xlu0 %2668
      %2670 = vrot.lane.b32.xlu0 %v2655, 18
      %v2671 = vpop.permute.xlu0 %2670
      %2672 = vrot.lane.b32.xlu0 %v2663, 18
      %v2673 = vpop.permute.xlu0 %2672
      %2674 = vrot.lane.b32.xlu0 %v2656, 18
      %v2675 = vpop.permute.xlu0 %2674
      %2676 = vrot.lane.b32.xlu0 %v2664, 18
      %v2677 = vpop.permute.xlu0 %2676
      %2678 = vrot.lane.b32.xlu0 %v2657, 18
      %v2679 = vpop.permute.xlu0 %2678
      %2680 = vrot.lane.b32.xlu0 %v2665, 18
      %v2681 = vpop.permute.xlu0 %2680
      %v2682 = vsel %vm877, %v2667, %v2669
      %v2683 = vsel %vm877, %v2669, %v2671
      %v2684 = vsel %vm877, %v2671, %v2673
      %v2685 = vsel %vm877, %v2673, %v2675
      %v2686 = vsel %vm877, %v2675, %v2677
      %v2687 = vsel %vm877, %v2677, %v2679
      %v2688 = vsel %vm877, %v2679, %v2681
      %2696 = vst [vmem:[#allocation2 + $0x150] sm:$0xf] %v2682
      %2697 = vst [vmem:[#allocation2 + $0x158] sm:$0xf] %v2683
      %2698 = vst [vmem:[#allocation2 + $0x160] sm:$0xf] %v2684
      %2699 = vst [vmem:[#allocation2 + $0x168] sm:$0xf] %v2685
      %2700 = vst [vmem:[#allocation2 + $0x170] sm:$0xf] %v2686
      %2701 = vst [vmem:[#allocation2 + $0x178] sm:$0xf] %v2687
      %2702 = vst [vmem:[#allocation2 + $0x180] sm:$0xf] %v2688
      %v2703 = vld [vmem:[#allocation3] sm:$0xff]
      %v2704 = vld [vmem:[#allocation3 + $0x8] sm:$0xff]
      %v2705 = vld [vmem:[#allocation3 + $0x10] sm:$0xff]
      %v2706 = vld [vmem:[#allocation3 + $0x18] sm:$0xff]
      %v2711 = vcombine.low %v2703, %v2703
      %v2712 = vcombine.low %v2704, %v2704
      %v2713 = vcombine.low %v2705, %v2705
      %v2714 = vcombine.low %v2706, %v2706
      %2715 = vrot.lane.b32.xlu0 %v2711, 17
      %v2716 = vpop.permute.xlu0 %2715
      %2717 = vrot.lane.b32.xlu0 %v2703, 17
      %v2718 = vpop.permute.xlu0 %2717
      %2719 = vrot.lane.b32.xlu0 %v2712, 17
      %v2720 = vpop.permute.xlu0 %2719
      %2721 = vrot.lane.b32.xlu0 %v2704, 17
      %v2722 = vpop.permute.xlu0 %2721
      %2723 = vrot.lane.b32.xlu0 %v2713, 17
      %v2724 = vpop.permute.xlu0 %2723
      %2725 = vrot.lane.b32.xlu0 %v2705, 17
      %v2726 = vpop.permute.xlu0 %2725
      %2727 = vrot.lane.b32.xlu0 %v2714, 17
      %v2728 = vpop.permute.xlu0 %2727
      %2729 = vrot.lane.b32.xlu0 %v2706, 17
      %v2730 = vpop.permute.xlu0 %2729
      %v2731 = vsel %vm927, %v2716, %v2718
      %v2732 = vsel %vm927, %v2718, %v2720
      %v2733 = vsel %vm927, %v2720, %v2722
      %v2734 = vsel %vm927, %v2722, %v2724
      %v2735 = vsel %vm927, %v2724, %v2726
      %v2736 = vsel %vm927, %v2726, %v2728
      %v2737 = vsel %vm927, %v2728, %v2730
      %2745 = vst [vmem:[#allocation2 + $0x150] sm:$0xf0] %v2731
      %2746 = vst [vmem:[#allocation2 + $0x158] sm:$0xf0] %v2732
      %2747 = vst [vmem:[#allocation2 + $0x160] sm:$0xf0] %v2733
      %2748 = vst [vmem:[#allocation2 + $0x168] sm:$0xf0] %v2734
      %2749 = vst [vmem:[#allocation2 + $0x170] sm:$0xf0] %v2735
      %2750 = vst [vmem:[#allocation2 + $0x178] sm:$0xf0] %v2736
      %2751 = vst [vmem:[#allocation2 + $0x180] sm:$0xf0] %v2737
      %v2752 = vld [vmem:[#allocation3] sm:$0xff]
      %v2753 = vld [vmem:[#allocation3 + $0x8] sm:$0xff]
      %v2754 = vld [vmem:[#allocation3 + $0x10] sm:$0xff]
      %v2755 = vld [vmem:[#allocation3 + $0x18] sm:$0xff]
      %v2760 = vcombine.high %v2752, %v2752
      %v2761 = vcombine.high %v2753, %v2753
      %v2762 = vcombine.high %v2754, %v2754
      %v2763 = vcombine.high %v2755, %v2755
      %2764 = vrot.lane.b32.xlu0 %v2752, 16
      %v2765 = vpop.permute.xlu0 %2764
      %2766 = vrot.lane.b32.xlu0 %v2760, 16
      %v2767 = vpop.permute.xlu0 %2766
      %2768 = vrot.lane.b32.xlu0 %v2753, 16
      %v2769 = vpop.permute.xlu0 %2768
      %2770 = vrot.lane.b32.xlu0 %v2761, 16
      %v2771 = vpop.permute.xlu0 %2770
      %2772 = vrot.lane.b32.xlu0 %v2754, 16
      %v2773 = vpop.permute.xlu0 %2772
      %2774 = vrot.lane.b32.xlu0 %v2762, 16
      %v2775 = vpop.permute.xlu0 %2774
      %2776 = vrot.lane.b32.xlu0 %v2755, 16
      %v2777 = vpop.permute.xlu0 %2776
      %2778 = vrot.lane.b32.xlu0 %v2763, 16
      %v2779 = vpop.permute.xlu0 %2778
      %v2780 = vsel %vm977, %v2765, %v2767
      %v2781 = vsel %vm977, %v2767, %v2769
      %v2782 = vsel %vm977, %v2769, %v2771
      %v2783 = vsel %vm977, %v2771, %v2773
      %v2784 = vsel %vm977, %v2773, %v2775
      %v2785 = vsel %vm977, %v2775, %v2777
      %v2786 = vsel %vm977, %v2777, %v2779
      %2794 = vst [vmem:[#allocation2 + $0x188] sm:$0xf] %v2780
      %2795 = vst [vmem:[#allocation2 + $0x190] sm:$0xf] %v2781
      %2796 = vst [vmem:[#allocation2 + $0x198] sm:$0xf] %v2782
      %2797 = vst [vmem:[#allocation2 + $0x1a0] sm:$0xf] %v2783
      %2798 = vst [vmem:[#allocation2 + $0x1a8] sm:$0xf] %v2784
      %2799 = vst [vmem:[#allocation2 + $0x1b0] sm:$0xf] %v2785
      %2800 = vst [vmem:[#allocation2 + $0x1b8] sm:$0xf] %v2786
      %v2801 = vld [vmem:[#allocation3] sm:$0xff]
      %v2802 = vld [vmem:[#allocation3 + $0x8] sm:$0xff]
      %v2803 = vld [vmem:[#allocation3 + $0x10] sm:$0xff]
      %v2804 = vld [vmem:[#allocation3 + $0x18] sm:$0xff]
      %v2809 = vcombine.low %v2801, %v2801
      %v2810 = vcombine.low %v2802, %v2802
      %v2811 = vcombine.low %v2803, %v2803
      %v2812 = vcombine.low %v2804, %v2804
      %2813 = vrot.lane.b32.xlu0 %v2809, 8
      %v2814 = vpop.permute.xlu0 %2813
      %2815 = vrot.lane.b32.xlu0 %v2801, 8
      %v2816 = vpop.permute.xlu0 %2815
      %2817 = vrot.lane.b32.xlu0 %v2810, 8
      %v2818 = vpop.permute.xlu0 %2817
      %2819 = vrot.lane.b32.xlu0 %v2802, 8
      %v2820 = vpop.permute.xlu0 %2819
      %2821 = vrot.lane.b32.xlu0 %v2811, 8
      %v2822 = vpop.permute.xlu0 %2821
      %2823 = vrot.lane.b32.xlu0 %v2803, 8
      %v2824 = vpop.permute.xlu0 %2823
      %2825 = vrot.lane.b32.xlu0 %v2812, 8
      %v2826 = vpop.permute.xlu0 %2825
      %2827 = vrot.lane.b32.xlu0 %v2804, 8
      %v2828 = vpop.permute.xlu0 %2827
      %v2829 = vsel %vm1027, %v2814, %v2816
      %v2830 = vsel %vm1027, %v2816, %v2818
      %v2831 = vsel %vm1027, %v2818, %v2820
      %v2832 = vsel %vm1027, %v2820, %v2822
      %v2833 = vsel %vm1027, %v2822, %v2824
      %v2834 = vsel %vm1027, %v2824, %v2826
      %v2835 = vsel %vm1027, %v2826, %v2828
      %2843 = vst [vmem:[#allocation2 + $0x188] sm:$0xf0] %v2829
      %2844 = vst [vmem:[#allocation2 + $0x190] sm:$0xf0] %v2830
      %2845 = vst [vmem:[#allocation2 + $0x198] sm:$0xf0] %v2831
      %2846 = vst [vmem:[#allocation2 + $0x1a0] sm:$0xf0] %v2832
      %2847 = vst [vmem:[#allocation2 + $0x1a8] sm:$0xf0] %v2833
      %2848 = vst [vmem:[#allocation2 + $0x1b0] sm:$0xf0] %v2834
      %2849 = vst [vmem:[#allocation2 + $0x1b8] sm:$0xf0] %v2835
      %v2850 = vld [vmem:[#allocation3] sm:$0xff]
      %v2851 = vld [vmem:[#allocation3 + $0x8] sm:$0xff]
      %v2852 = vld [vmem:[#allocation3 + $0x10] sm:$0xff]
      %v2853 = vld [vmem:[#allocation3 + $0x18] sm:$0xff]
      %v2858 = vcombine.high %v2850, %v2850
      %v2859 = vcombine.high %v2851, %v2851
      %v2860 = vcombine.high %v2852, %v2852
      %v2861 = vcombine.high %v2853, %v2853
      %2862 = vrot.lane.b32.xlu0 %v2850, 7
      %v2863 = vpop.permute.xlu0 %2862
      %2864 = vrot.lane.b32.xlu0 %v2858, 7
      %v2865 = vpop.permute.xlu0 %2864
      %2866 = vrot.lane.b32.xlu0 %v2851, 7
      %v2867 = vpop.permute.xlu0 %2866
      %2868 = vrot.lane.b32.xlu0 %v2859, 7
      %v2869 = vpop.permute.xlu0 %2868
      %2870 = vrot.lane.b32.xlu0 %v2852, 7
      %v2871 = vpop.permute.xlu0 %2870
      %2872 = vrot.lane.b32.xlu0 %v2860, 7
      %v2873 = vpop.permute.xlu0 %2872
      %2874 = vrot.lane.b32.xlu0 %v2853, 7
      %v2875 = vpop.permute.xlu0 %2874
      %2876 = vrot.lane.b32.xlu0 %v2861, 7
      %v2877 = vpop.permute.xlu0 %2876
      %v2878 = vsel %vm1077, %v2863, %v2865
      %v2879 = vsel %vm1077, %v2865, %v2867
      %v2880 = vsel %vm1077, %v2867, %v2869
      %v2881 = vsel %vm1077, %v2869, %v2871
      %v2882 = vsel %vm1077, %v2871, %v2873
      %v2883 = vsel %vm1077, %v2873, %v2875
      %v2884 = vsel %vm1077, %v2875, %v2877
      %2892 = vst [vmem:[#allocation2 + $0x1c0] sm:$0xf] %v2878
      %2893 = vst [vmem:[#allocation2 + $0x1c8] sm:$0xf] %v2879
      %2894 = vst [vmem:[#allocation2 + $0x1d0] sm:$0xf] %v2880
      %2895 = vst [vmem:[#allocation2 + $0x1d8] sm:$0xf] %v2881
      %2896 = vst [vmem:[#allocation2 + $0x1e0] sm:$0xf] %v2882
      %2897 = vst [vmem:[#allocation2 + $0x1e8] sm:$0xf] %v2883
      %2898 = vst [vmem:[#allocation2 + $0x1f0] sm:$0xf] %v2884
      %v2899 = vld [vmem:[#allocation3] sm:$0xff]
      %v2900 = vld [vmem:[#allocation3 + $0x8] sm:$0xff]
      %v2901 = vld [vmem:[#allocation3 + $0x10] sm:$0xff]
      %v2902 = vld [vmem:[#allocation3 + $0x18] sm:$0xff]
      %v2907 = vcombine.low %v2899, %v2899
      %v2908 = vcombine.low %v2900, %v2900
      %v2909 = vcombine.low %v2901, %v2901
      %v2910 = vcombine.low %v2902, %v2902
      %2911 = vrot.lane.b32.xlu0 %v2907, 6
      %v2912 = vpop.permute.xlu0 %2911
      %2913 = vrot.lane.b32.xlu0 %v2899, 6
      %v2914 = vpop.permute.xlu0 %2913
      %2915 = vrot.lane.b32.xlu0 %v2908, 6
      %v2916 = vpop.permute.xlu0 %2915
      %2917 = vrot.lane.b32.xlu0 %v2900, 6
      %v2918 = vpop.permute.xlu0 %2917
      %2919 = vrot.lane.b32.xlu0 %v2909, 6
      %v2920 = vpop.permute.xlu0 %2919
      %2921 = vrot.lane.b32.xlu0 %v2901, 6
      %v2922 = vpop.permute.xlu0 %2921
      %2923 = vrot.lane.b32.xlu0 %v2910, 6
      %v2924 = vpop.permute.xlu0 %2923
      %2925 = vrot.lane.b32.xlu0 %v2902, 6
      %v2926 = vpop.permute.xlu0 %2925
      %v2927 = vsel %vm1127, %v2912, %v2914
      %v2928 = vsel %vm1127, %v2914, %v2916
      %v2929 = vsel %vm1127, %v2916, %v2918
      %v2930 = vsel %vm1127, %v2918, %v2920
      %v2931 = vsel %vm1127, %v2920, %v2922
      %v2932 = vsel %vm1127, %v2922, %v2924
      %v2933 = vsel %vm1127, %v2924, %v2926
      %2941 = vst [vmem:[#allocation2 + $0x1c0] sm:$0xf0] %v2927
      %2942 = vst [vmem:[#allocation2 + $0x1c8] sm:$0xf0] %v2928
      %2943 = vst [vmem:[#allocation2 + $0x1d0] sm:$0xf0] %v2929
      %2944 = vst [vmem:[#allocation2 + $0x1d8] sm:$0xf0] %v2930
      %2945 = vst [vmem:[#allocation2 + $0x1e0] sm:$0xf0] %v2931
      %2946 = vst [vmem:[#allocation2 + $0x1e8] sm:$0xf0] %v2932
      %2947 = vst [vmem:[#allocation2 + $0x1f0] sm:$0xf0] %v2933
      %v2948 = vld [vmem:[#allocation3 + $0x4] sm:$0xff]
      %v2949 = vld [vmem:[#allocation3 + $0xc] sm:$0xff]
      %v2950 = vld [vmem:[#allocation3 + $0x14] sm:$0xff]
      %v2951 = vld [vmem:[#allocation3 + $0x1c] sm:$0xff]
      %v2956 = vcombine.high %v2948, %v2948
      %v2957 = vcombine.high %v2949, %v2949
      %v2958 = vcombine.high %v2950, %v2950
      %v2959 = vcombine.high %v2951, %v2951
      %2960 = vrot.lane.b32.xlu0 %v2948, 56
      %v2961 = vpop.permute.xlu0 %2960
      %2962 = vrot.lane.b32.xlu0 %v2956, 56
      %v2963 = vpop.permute.xlu0 %2962
      %2964 = vrot.lane.b32.xlu0 %v2949, 56
      %v2965 = vpop.permute.xlu0 %2964
      %2966 = vrot.lane.b32.xlu0 %v2957, 56
      %v2967 = vpop.permute.xlu0 %2966
      %2968 = vrot.lane.b32.xlu0 %v2950, 56
      %v2969 = vpop.permute.xlu0 %2968
      %2970 = vrot.lane.b32.xlu0 %v2958, 56
      %v2971 = vpop.permute.xlu0 %2970
      %2972 = vrot.lane.b32.xlu0 %v2951, 56
      %v2973 = vpop.permute.xlu0 %2972
      %2974 = vrot.lane.b32.xlu0 %v2959, 56
      %v2975 = vpop.permute.xlu0 %2974
      %v2976 = vsel %vm1177, %v2961, %v2963
      %v2977 = vsel %vm1177, %v2963, %v2965
      %v2978 = vsel %vm1177, %v2965, %v2967
      %v2979 = vsel %vm1177, %v2967, %v2969
      %v2980 = vsel %vm1177, %v2969, %v2971
      %v2981 = vsel %vm1177, %v2971, %v2973
      %v2982 = vsel %vm1177, %v2973, %v2975
      %2990 = vst [vmem:[#allocation2 + $0x1f8] sm:$0xf] %v2976
      %2991 = vst [vmem:[#allocation2 + $0x200] sm:$0xf] %v2977
      %2992 = vst [vmem:[#allocation2 + $0x208] sm:$0xf] %v2978
      %2993 = vst [vmem:[#allocation2 + $0x210] sm:$0xf] %v2979
      %2994 = vst [vmem:[#allocation2 + $0x218] sm:$0xf] %v2980
      %2995 = vst [vmem:[#allocation2 + $0x220] sm:$0xf] %v2981
      %2996 = vst [vmem:[#allocation2 + $0x228] sm:$0xf] %v2982
      %v2997 = vld [vmem:[#allocation3 + $0x4] sm:$0xff]
      %v2998 = vld [vmem:[#allocation3 + $0xc] sm:$0xff]
      %v2999 = vld [vmem:[#allocation3 + $0x14] sm:$0xff]
      %v3000 = vld [vmem:[#allocation3 + $0x1c] sm:$0xff]
      %v3005 = vcombine.low %v2997, %v2997
      %v3006 = vcombine.low %v2998, %v2998
      %v3007 = vcombine.low %v2999, %v2999
      %v3008 = vcombine.low %v3000, %v3000
      %3009 = vrot.lane.b32.xlu0 %v3005, 55
      %v3010 = vpop.permute.xlu0 %3009
      %3011 = vrot.lane.b32.xlu0 %v2997, 55
      %v3012 = vpop.permute.xlu0 %3011
      %3013 = vrot.lane.b32.xlu0 %v3006, 55
      %v3014 = vpop.permute.xlu0 %3013
      %3015 = vrot.lane.b32.xlu0 %v2998, 55
      %v3016 = vpop.permute.xlu0 %3015
      %3017 = vrot.lane.b32.xlu0 %v3007, 55
      %v3018 = vpop.permute.xlu0 %3017
      %3019 = vrot.lane.b32.xlu0 %v2999, 55
      %v3020 = vpop.permute.xlu0 %3019
      %3021 = vrot.lane.b32.xlu0 %v3008, 55
      %v3022 = vpop.permute.xlu0 %3021
      %3023 = vrot.lane.b32.xlu0 %v3000, 55
      %v3024 = vpop.permute.xlu0 %3023
      %v3025 = vsel %vm1227, %v3010, %v3012
      %v3026 = vsel %vm1227, %v3012, %v3014
      %v3027 = vsel %vm1227, %v3014, %v3016
      %v3028 = vsel %vm1227, %v3016, %v3018
      %v3029 = vsel %vm1227, %v3018, %v3020
      %v3030 = vsel %vm1227, %v3020, %v3022
      %v3031 = vsel %vm1227, %v3022, %v3024
      %3039 = vst [vmem:[#allocation2 + $0x1f8] sm:$0xf0] %v3025
      %3040 = vst [vmem:[#allocation2 + $0x200] sm:$0xf0] %v3026
      %3041 = vst [vmem:[#allocation2 + $0x208] sm:$0xf0] %v3027
      %3042 = vst [vmem:[#allocation2 + $0x210] sm:$0xf0] %v3028
      %3043 = vst [vmem:[#allocation2 + $0x218] sm:$0xf0] %v3029
      %3044 = vst [vmem:[#allocation2 + $0x220] sm:$0xf0] %v3030
      %3045 = vst [vmem:[#allocation2 + $0x228] sm:$0xf0] %v3031
      %v3046 = vld [vmem:[#allocation3 + $0x4] sm:$0xff]
      %v3047 = vld [vmem:[#allocation3 + $0xc] sm:$0xff]
      %v3048 = vld [vmem:[#allocation3 + $0x14] sm:$0xff]
      %v3049 = vld [vmem:[#allocation3 + $0x1c] sm:$0xff]
      %v3054 = vcombine.high %v3046, %v3046
      %v3055 = vcombine.high %v3047, %v3047
      %v3056 = vcombine.high %v3048, %v3048
      %v3057 = vcombine.high %v3049, %v3049
      %3058 = vrot.lane.b32.xlu0 %v3046, 54
      %v3059 = vpop.permute.xlu0 %3058
      %3060 = vrot.lane.b32.xlu0 %v3054, 54
      %v3061 = vpop.permute.xlu0 %3060
      %3062 = vrot.lane.b32.xlu0 %v3047, 54
      %v3063 = vpop.permute.xlu0 %3062
      %3064 = vrot.lane.b32.xlu0 %v3055, 54
      %v3065 = vpop.permute.xlu0 %3064
      %3066 = vrot.lane.b32.xlu0 %v3048, 54
      %v3067 = vpop.permute.xlu0 %3066
      %3068 = vrot.lane.b32.xlu0 %v3056, 54
      %v3069 = vpop.permute.xlu0 %3068
      %3070 = vrot.lane.b32.xlu0 %v3049, 54
      %v3071 = vpop.permute.xlu0 %3070
      %3072 = vrot.lane.b32.xlu0 %v3057, 54
      %v3073 = vpop.permute.xlu0 %3072
      %v3074 = vsel %vm1277, %v3059, %v3061
      %v3075 = vsel %vm1277, %v3061, %v3063
      %v3076 = vsel %vm1277, %v3063, %v3065
      %v3077 = vsel %vm1277, %v3065, %v3067
      %v3078 = vsel %vm1277, %v3067, %v3069
      %v3079 = vsel %vm1277, %v3069, %v3071
      %v3080 = vsel %vm1277, %v3071, %v3073
      %3088 = vst [vmem:[#allocation2 + $0x230] sm:$0xf] %v3074
      %3089 = vst [vmem:[#allocation2 + $0x238] sm:$0xf] %v3075
      %3090 = vst [vmem:[#allocation2 + $0x240] sm:$0xf] %v3076
      %3091 = vst [vmem:[#allocation2 + $0x248] sm:$0xf] %v3077
      %3092 = vst [vmem:[#allocation2 + $0x250] sm:$0xf] %v3078
      %3093 = vst [vmem:[#allocation2 + $0x258] sm:$0xf] %v3079
      %3094 = vst [vmem:[#allocation2 + $0x260] sm:$0xf] %v3080
      %v3095 = vld [vmem:[#allocation3 + $0x4] sm:$0xff]
      %v3096 = vld [vmem:[#allocation3 + $0xc] sm:$0xff]
      %v3097 = vld [vmem:[#allocation3 + $0x14] sm:$0xff]
      %v3098 = vld [vmem:[#allocation3 + $0x1c] sm:$0xff]
      %v3103 = vcombine.low %v3095, %v3095
      %v3104 = vcombine.low %v3096, %v3096
      %v3105 = vcombine.low %v3097, %v3097
      %v3106 = vcombine.low %v3098, %v3098
      %3107 = vrot.lane.b32.xlu0 %v3103, 46
      %v3108 = vpop.permute.xlu0 %3107
      %3109 = vrot.lane.b32.xlu0 %v3095, 46
      %v3110 = vpop.permute.xlu0 %3109
      %3111 = vrot.lane.b32.xlu0 %v3104, 46
      %v3112 = vpop.permute.xlu0 %3111
      %3113 = vrot.lane.b32.xlu0 %v3096, 46
      %v3114 = vpop.permute.xlu0 %3113
      %3115 = vrot.lane.b32.xlu0 %v3105, 46
      %v3116 = vpop.permute.xlu0 %3115
      %3117 = vrot.lane.b32.xlu0 %v3097, 46
      %v3118 = vpop.permute.xlu0 %3117
      %3119 = vrot.lane.b32.xlu0 %v3106, 46
      %v3120 = vpop.permute.xlu0 %3119
      %3121 = vrot.lane.b32.xlu0 %v3098, 46
      %v3122 = vpop.permute.xlu0 %3121
      %v3123 = vsel %vm1327, %v3108, %v3110
      %v3124 = vsel %vm1327, %v3110, %v3112
      %v3125 = vsel %vm1327, %v3112, %v3114
      %v3126 = vsel %vm1327, %v3114, %v3116
      %v3127 = vsel %vm1327, %v3116, %v3118
      %v3128 = vsel %vm1327, %v3118, %v3120
      %v3129 = vsel %vm1327, %v3120, %v3122
      %3137 = vst [vmem:[#allocation2 + $0x230] sm:$0xf0] %v3123
      %3138 = vst [vmem:[#allocation2 + $0x238] sm:$0xf0] %v3124
      %3139 = vst [vmem:[#allocation2 + $0x240] sm:$0xf0] %v3125
      %3140 = vst [vmem:[#allocation2 + $0x248] sm:$0xf0] %v3126
      %3141 = vst [vmem:[#allocation2 + $0x250] sm:$0xf0] %v3127
      %3142 = vst [vmem:[#allocation2 + $0x258] sm:$0xf0] %v3128
      %3143 = vst [vmem:[#allocation2 + $0x260] sm:$0xf0] %v3129
      %v3144 = vld [vmem:[#allocation3 + $0x4] sm:$0xff]
      %v3145 = vld [vmem:[#allocation3 + $0xc] sm:$0xff]
      %v3146 = vld [vmem:[#allocation3 + $0x14] sm:$0xff]
      %v3147 = vld [vmem:[#allocation3 + $0x1c] sm:$0xff]
      %v3152 = vcombine.high %v3144, %v3144
      %v3153 = vcombine.high %v3145, %v3145
      %v3154 = vcombine.high %v3146, %v3146
      %v3155 = vcombine.high %v3147, %v3147
      %3156 = vrot.lane.b32.xlu0 %v3144, 45
      %v3157 = vpop.permute.xlu0 %3156
      %3158 = vrot.lane.b32.xlu0 %v3152, 45
      %v3159 = vpop.permute.xlu0 %3158
      %3160 = vrot.lane.b32.xlu0 %v3145, 45
      %v3161 = vpop.permute.xlu0 %3160
      %3162 = vrot.lane.b32.xlu0 %v3153, 45
      %v3163 = vpop.permute.xlu0 %3162
      %3164 = vrot.lane.b32.xlu0 %v3146, 45
      %v3165 = vpop.permute.xlu0 %3164
      %3166 = vrot.lane.b32.xlu0 %v3154, 45
      %v3167 = vpop.permute.xlu0 %3166
      %3168 = vrot.lane.b32.xlu0 %v3147, 45
      %v3169 = vpop.permute.xlu0 %3168
      %3170 = vrot.lane.b32.xlu0 %v3155, 45
      %v3171 = vpop.permute.xlu0 %3170
      %v3172 = vsel %vm1377, %v3157, %v3159
      %v3173 = vsel %vm1377, %v3159, %v3161
      %v3174 = vsel %vm1377, %v3161, %v3163
      %v3175 = vsel %vm1377, %v3163, %v3165
      %v3176 = vsel %vm1377, %v3165, %v3167
      %v3177 = vsel %vm1377, %v3167, %v3169
      %v3178 = vsel %vm1377, %v3169, %v3171
      %3186 = vst [vmem:[#allocation2 + $0x268] sm:$0xf] %v3172
      %3187 = vst [vmem:[#allocation2 + $0x270] sm:$0xf] %v3173
      %3188 = vst [vmem:[#allocation2 + $0x278] sm:$0xf] %v3174
      %3189 = vst [vmem:[#allocation2 + $0x280] sm:$0xf] %v3175
      %3190 = vst [vmem:[#allocation2 + $0x288] sm:$0xf] %v3176
      %3191 = vst [vmem:[#allocation2 + $0x290] sm:$0xf] %v3177
      %3192 = vst [vmem:[#allocation2 + $0x298] sm:$0xf] %v3178
      %v3193 = vld [vmem:[#allocation3 + $0x4] sm:$0xff]
      %v3194 = vld [vmem:[#allocation3 + $0xc] sm:$0xff]
      %v3195 = vld [vmem:[#allocation3 + $0x14] sm:$0xff]
      %v3196 = vld [vmem:[#allocation3 + $0x1c] sm:$0xff]
      %v3201 = vcombine.low %v3193, %v3193
      %v3202 = vcombine.low %v3194, %v3194
      %v3203 = vcombine.low %v3195, %v3195
      %v3204 = vcombine.low %v3196, %v3196
      %3205 = vrot.lane.b32.xlu0 %v3201, 44
      %v3206 = vpop.permute.xlu0 %3205
      %3207 = vrot.lane.b32.xlu0 %v3193, 44
      %v3208 = vpop.permute.xlu0 %3207
      %3209 = vrot.lane.b32.xlu0 %v3202, 44
      %v3210 = vpop.permute.xlu0 %3209
      %3211 = vrot.lane.b32.xlu0 %v3194, 44
      %v3212 = vpop.permute.xlu0 %3211
      %3213 = vrot.lane.b32.xlu0 %v3203, 44
      %v3214 = vpop.permute.xlu0 %3213
      %3215 = vrot.lane.b32.xlu0 %v3195, 44
      %v3216 = vpop.permute.xlu0 %3215
      %3217 = vrot.lane.b32.xlu0 %v3204, 44
      %v3218 = vpop.permute.xlu0 %3217
      %3219 = vrot.lane.b32.xlu0 %v3196, 44
      %v3220 = vpop.permute.xlu0 %3219
      %v3221 = vsel %vm1427, %v3206, %v3208
      %v3222 = vsel %vm1427, %v3208, %v3210
      %v3223 = vsel %vm1427, %v3210, %v3212
      %v3224 = vsel %vm1427, %v3212, %v3214
      %v3225 = vsel %vm1427, %v3214, %v3216
      %v3226 = vsel %vm1427, %v3216, %v3218
      %v3227 = vsel %vm1427, %v3218, %v3220
      %3235 = vst [vmem:[#allocation2 + $0x268] sm:$0xf0] %v3221
      %3236 = vst [vmem:[#allocation2 + $0x270] sm:$0xf0] %v3222
      %3237 = vst [vmem:[#allocation2 + $0x278] sm:$0xf0] %v3223
      %3238 = vst [vmem:[#allocation2 + $0x280] sm:$0xf0] %v3224
      %3239 = vst [vmem:[#allocation2 + $0x288] sm:$0xf0] %v3225
      %3240 = vst [vmem:[#allocation2 + $0x290] sm:$0xf0] %v3226
      %3241 = vst [vmem:[#allocation2 + $0x298] sm:$0xf0] %v3227
      %v3242 = vld [vmem:[#allocation3 + $0x4] sm:$0xff]
      %v3243 = vld [vmem:[#allocation3 + $0xc] sm:$0xff]
      %v3244 = vld [vmem:[#allocation3 + $0x14] sm:$0xff]
      %v3245 = vld [vmem:[#allocation3 + $0x1c] sm:$0xff]
      %v3250 = vcombine.high %v3242, %v3242
      %v3251 = vcombine.high %v3243, %v3243
      %v3252 = vcombine.high %v3244, %v3244
      %v3253 = vcombine.high %v3245, %v3245
      %3254 = vrot.lane.b32.xlu0 %v3242, 36
      %v3255 = vpop.permute.xlu0 %3254
      %3256 = vrot.lane.b32.xlu0 %v3250, 36
      %v3257 = vpop.permute.xlu0 %3256
      %3258 = vrot.lane.b32.xlu0 %v3243, 36
      %v3259 = vpop.permute.xlu0 %3258
      %3260 = vrot.lane.b32.xlu0 %v3251, 36
      %v3261 = vpop.permute.xlu0 %3260
      %3262 = vrot.lane.b32.xlu0 %v3244, 36
      %v3263 = vpop.permute.xlu0 %3262
      %3264 = vrot.lane.b32.xlu0 %v3252, 36
      %v3265 = vpop.permute.xlu0 %3264
      %3266 = vrot.lane.b32.xlu0 %v3245, 36
      %v3267 = vpop.permute.xlu0 %3266
      %3268 = vrot.lane.b32.xlu0 %v3253, 36
      %v3269 = vpop.permute.xlu0 %3268
      %v3270 = vsel %vm1477, %v3255, %v3257
      %v3271 = vsel %vm1477, %v3257, %v3259
      %v3272 = vsel %vm1477, %v3259, %v3261
      %v3273 = vsel %vm1477, %v3261, %v3263
      %v3274 = vsel %vm1477, %v3263, %v3265
      %v3275 = vsel %vm1477, %v3265, %v3267
      %v3276 = vsel %vm1477, %v3267, %v3269
      %3284 = vst [vmem:[#allocation2 + $0x2a0] sm:$0xf] %v3270
      %3285 = vst [vmem:[#allocation2 + $0x2a8] sm:$0xf] %v3271
      %3286 = vst [vmem:[#allocation2 + $0x2b0] sm:$0xf] %v3272
      %3287 = vst [vmem:[#allocation2 + $0x2b8] sm:$0xf] %v3273
      %3288 = vst [vmem:[#allocation2 + $0x2c0] sm:$0xf] %v3274
      %3289 = vst [vmem:[#allocation2 + $0x2c8] sm:$0xf] %v3275
      %3290 = vst [vmem:[#allocation2 + $0x2d0] sm:$0xf] %v3276
      %v3291 = vld [vmem:[#allocation3 + $0x4] sm:$0xff]
      %v3292 = vld [vmem:[#allocation3 + $0xc] sm:$0xff]
      %v3293 = vld [vmem:[#allocation3 + $0x14] sm:$0xff]
      %v3294 = vld [vmem:[#allocation3 + $0x1c] sm:$0xff]
      %v3299 = vcombine.low %v3291, %v3291
      %v3300 = vcombine.low %v3292, %v3292
      %v3301 = vcombine.low %v3293, %v3293
      %v3302 = vcombine.low %v3294, %v3294
      %3303 = vrot.lane.b32.xlu0 %v3299, 35
      %v3304 = vpop.permute.xlu0 %3303
      %3305 = vrot.lane.b32.xlu0 %v3291, 35
      %v3306 = vpop.permute.xlu0 %3305
      %3307 = vrot.lane.b32.xlu0 %v3300, 35
      %v3308 = vpop.permute.xlu0 %3307
      %3309 = vrot.lane.b32.xlu0 %v3292, 35
      %v3310 = vpop.permute.xlu0 %3309
      %3311 = vrot.lane.b32.xlu0 %v3301, 35
      %v3312 = vpop.permute.xlu0 %3311
      %3313 = vrot.lane.b32.xlu0 %v3293, 35
      %v3314 = vpop.permute.xlu0 %3313
      %3315 = vrot.lane.b32.xlu0 %v3302, 35
      %v3316 = vpop.permute.xlu0 %3315
      %3317 = vrot.lane.b32.xlu0 %v3294, 35
      %v3318 = vpop.permute.xlu0 %3317
      %v3319 = vsel %vm1527, %v3304, %v3306
      %v3320 = vsel %vm1527, %v3306, %v3308
      %v3321 = vsel %vm1527, %v3308, %v3310
      %v3322 = vsel %vm1527, %v3310, %v3312
      %v3323 = vsel %vm1527, %v3312, %v3314
      %v3324 = vsel %vm1527, %v3314, %v3316
      %v3325 = vsel %vm1527, %v3316, %v3318
      %3333 = vst [vmem:[#allocation2 + $0x2a0] sm:$0xf0] %v3319
      %3334 = vst [vmem:[#allocation2 + $0x2a8] sm:$0xf0] %v3320
      %3335 = vst [vmem:[#allocation2 + $0x2b0] sm:$0xf0] %v3321
      %3336 = vst [vmem:[#allocation2 + $0x2b8] sm:$0xf0] %v3322
      %3337 = vst [vmem:[#allocation2 + $0x2c0] sm:$0xf0] %v3323
      %3338 = vst [vmem:[#allocation2 + $0x2c8] sm:$0xf0] %v3324
      %3339 = vst [vmem:[#allocation2 + $0x2d0] sm:$0xf0] %v3325
      %v3340 = vld [vmem:[#allocation3 + $0x4] sm:$0xff]
      %v3341 = vld [vmem:[#allocation3 + $0xc] sm:$0xff]
      %v3342 = vld [vmem:[#allocation3 + $0x14] sm:$0xff]
      %v3343 = vld [vmem:[#allocation3 + $0x1c] sm:$0xff]
      %v3348 = vcombine.high %v3340, %v3340
      %v3349 = vcombine.high %v3341, %v3341
      %v3350 = vcombine.high %v3342, %v3342
      %v3351 = vcombine.high %v3343, %v3343
      %3352 = vrot.lane.b32.xlu0 %v3340, 34
      %v3353 = vpop.permute.xlu0 %3352
      %3354 = vrot.lane.b32.xlu0 %v3348, 34
      %v3355 = vpop.permute.xlu0 %3354
      %3356 = vrot.lane.b32.xlu0 %v3341, 34
      %v3357 = vpop.permute.xlu0 %3356
      %3358 = vrot.lane.b32.xlu0 %v3349, 34
      %v3359 = vpop.permute.xlu0 %3358
      %3360 = vrot.lane.b32.xlu0 %v3342, 34
      %v3361 = vpop.permute.xlu0 %3360
      %3362 = vrot.lane.b32.xlu0 %v3350, 34
      %v3363 = vpop.permute.xlu0 %3362
      %3364 = vrot.lane.b32.xlu0 %v3343, 34
      %v3365 = vpop.permute.xlu0 %3364
      %3366 = vrot.lane.b32.xlu0 %v3351, 34
      %v3367 = vpop.permute.xlu0 %3366
      %v3368 = vsel %vm1577, %v3353, %v3355
      %v3369 = vsel %vm1577, %v3355, %v3357
      %v3370 = vsel %vm1577, %v3357, %v3359
      %v3371 = vsel %vm1577, %v3359, %v3361
      %v3372 = vsel %vm1577, %v3361, %v3363
      %v3373 = vsel %vm1577, %v3363, %v3365
      %v3374 = vsel %vm1577, %v3365, %v3367
      %3382 = vst [vmem:[#allocation2 + $0x2d8] sm:$0xf] %v3368
      %3383 = vst [vmem:[#allocation2 + $0x2e0] sm:$0xf] %v3369
      %3384 = vst [vmem:[#allocation2 + $0x2e8] sm:$0xf] %v3370
      %3385 = vst [vmem:[#allocation2 + $0x2f0] sm:$0xf] %v3371
      %3386 = vst [vmem:[#allocation2 + $0x2f8] sm:$0xf] %v3372
      %3387 = vst [vmem:[#allocation2 + $0x300] sm:$0xf] %v3373
      %3388 = vst [vmem:[#allocation2 + $0x308] sm:$0xf] %v3374
      %v3389 = vld [vmem:[%s3] sm:$0xf]
      %v3390 = vld [vmem:[#allocation2] sm:$0xff]
      %v3391 = vld [vmem:[#allocation2 + $0x8] sm:$0xff]
      %v3392 = vld [vmem:[#allocation2 + $0x10] sm:$0xff]
      %v3393 = vld [vmem:[#allocation2 + $0x18] sm:$0xff]
      %v3394 = vld [vmem:[#allocation2 + $0x20] sm:$0xff]
      %v3395 = vld [vmem:[#allocation2 + $0x28] sm:$0xff]
      %v3396 = vld [vmem:[#allocation2 + $0x30] sm:$0xff]
      %v3397 = vld [vmem:[#allocation2 + $0x38] sm:$0xff]
      %v3398 = vld [vmem:[#allocation2 + $0x40] sm:$0xff]
      %v3399 = vld [vmem:[#allocation2 + $0x48] sm:$0xff]
      %v3400 = vld [vmem:[#allocation2 + $0x50] sm:$0xff]
      %v3401 = vld [vmem:[#allocation2 + $0x58] sm:$0xff]
      %v3402 = vld [vmem:[#allocation2 + $0x60] sm:$0xff]
      %v3403 = vld [vmem:[#allocation2 + $0x68] sm:$0xff]
      %v3404 = vld [vmem:[#allocation2 + $0x70] sm:$0xff]
      %v3405 = vld [vmem:[#allocation2 + $0x78] sm:$0xff]
      %v3406 = vld [vmem:[#allocation2 + $0x80] sm:$0xff]
      %v3407 = vld [vmem:[#allocation2 + $0x88] sm:$0xff]
      %v3408 = vld [vmem:[#allocation2 + $0x90] sm:$0xff]
      %v3409 = vld [vmem:[#allocation2 + $0x98] sm:$0xff]
      %v3410 = vld [vmem:[#allocation2 + $0xa0] sm:$0xff]
      %v3411 = vld [vmem:[#allocation2 + $0xa8] sm:$0xff]
      %v3412 = vld [vmem:[#allocation2 + $0xb0] sm:$0xff]
      %v3413 = vld [vmem:[#allocation2 + $0xb8] sm:$0xff]
      %v3414 = vld [vmem:[#allocation2 + $0xc0] sm:$0xff]
      %v3415 = vld [vmem:[#allocation2 + $0xc8] sm:$0xff]
      %v3416 = vld [vmem:[#allocation2 + $0xd0] sm:$0xff]
      %v3417 = vld [vmem:[#allocation2 + $0xd8] sm:$0xff]
      %v3418 = vld [vmem:[#allocation2 + $0xe0] sm:$0xff]
      %v3419 = vld [vmem:[#allocation2 + $0xe8] sm:$0xff]
      %v3420 = vld [vmem:[#allocation2 + $0xf0] sm:$0xff]
      %v3421 = vld [vmem:[#allocation2 + $0xf8] sm:$0xff]
      %v3422 = vld [vmem:[#allocation2 + $0x100] sm:$0xff]
      %v3423 = vld [vmem:[#allocation2 + $0x108] sm:$0xff]
      %v3424 = vld [vmem:[#allocation2 + $0x110] sm:$0xff]
      %v3425 = vld [vmem:[#allocation2 + $0x118] sm:$0xff]
      %v3426 = vld [vmem:[#allocation2 + $0x120] sm:$0xff]
      %v3427 = vld [vmem:[#allocation2 + $0x128] sm:$0xff]
      %v3428 = vld [vmem:[#allocation2 + $0x130] sm:$0xff]
      %v3429 = vld [vmem:[#allocation2 + $0x138] sm:$0xff]
      %v3430 = vld [vmem:[#allocation2 + $0x140] sm:$0xff]
      %v3431 = vld [vmem:[#allocation2 + $0x148] sm:$0xff]
      %v3432 = vld [vmem:[#allocation2 + $0x150] sm:$0xff]
      %v3433 = vld [vmem:[#allocation2 + $0x158] sm:$0xff]
      %v3434 = vld [vmem:[#allocation2 + $0x160] sm:$0xff]
      %v3435 = vld [vmem:[#allocation2 + $0x168] sm:$0xff]
      %v3436 = vld [vmem:[#allocation2 + $0x170] sm:$0xff]
      %v3437 = vld [vmem:[#allocation2 + $0x178] sm:$0xff]
      %v3438 = vld [vmem:[#allocation2 + $0x180] sm:$0xff]
      %v3439 = vld [vmem:[#allocation2 + $0x188] sm:$0xff]
      %v3440 = vld [vmem:[#allocation2 + $0x190] sm:$0xff]
      %v3441 = vld [vmem:[#allocation2 + $0x198] sm:$0xff]
      %v3442 = vld [vmem:[#allocation2 + $0x1a0] sm:$0xff]
      %v3443 = vld [vmem:[#allocation2 + $0x1a8] sm:$0xff]
      %v3444 = vld [vmem:[#allocation2 + $0x1b0] sm:$0xff]
      %v3445 = vld [vmem:[#allocation2 + $0x1b8] sm:$0xff]
      %v3446 = vld [vmem:[#allocation2 + $0x1c0] sm:$0xff]
      %v3447 = vld [vmem:[#allocation2 + $0x1c8] sm:$0xff]
      %v3448 = vld [vmem:[#allocation2 + $0x1d0] sm:$0xff]
      %v3449 = vld [vmem:[#allocation2 + $0x1d8] sm:$0xff]
      %v3450 = vld [vmem:[#allocation2 + $0x1e0] sm:$0xff]
      %v3451 = vld [vmem:[#allocation2 + $0x1e8] sm:$0xff]
      %v3452 = vld [vmem:[#allocation2 + $0x1f0] sm:$0xff]
      %v3453 = vld [vmem:[#allocation2 + $0x1f8] sm:$0xff]
      %v3454 = vld [vmem:[#allocation2 + $0x200] sm:$0xff]
      %v3455 = vld [vmem:[#allocation2 + $0x208] sm:$0xff]
      %v3456 = vld [vmem:[#allocation2 + $0x210] sm:$0xff]
      %v3457 = vld [vmem:[#allocation2 + $0x218] sm:$0xff]
      %v3458 = vld [vmem:[#allocation2 + $0x220] sm:$0xff]
      %v3459 = vld [vmem:[#allocation2 + $0x228] sm:$0xff]
      %v3460 = vld [vmem:[#allocation2 + $0x230] sm:$0xff]
      %v3461 = vld [vmem:[#allocation2 + $0x238] sm:$0xff]
      %v3462 = vld [vmem:[#allocation2 + $0x240] sm:$0xff]
      %v3463 = vld [vmem:[#allocation2 + $0x248] sm:$0xff]
      %v3464 = vld [vmem:[#allocation2 + $0x250] sm:$0xff]
      %v3465 = vld [vmem:[#allocation2 + $0x258] sm:$0xff]
      %v3466 = vld [vmem:[#allocation2 + $0x260] sm:$0xff]
      %v3467 = vld [vmem:[#allocation2 + $0x268] sm:$0xff]
      %v3468 = vld [vmem:[#allocation2 + $0x270] sm:$0xff]
      %v3469 = vld [vmem:[#allocation2 + $0x278] sm:$0xff]
      %v3470 = vld [vmem:[#allocation2 + $0x280] sm:$0xff]
      %v3471 = vld [vmem:[#allocation2 + $0x288] sm:$0xff]
      %v3472 = vld [vmem:[#allocation2 + $0x290] sm:$0xff]
      %v3473 = vld [vmem:[#allocation2 + $0x298] sm:$0xff]
      %v3474 = vld [vmem:[#allocation2 + $0x2a0] sm:$0xff]
      %v3475 = vld [vmem:[#allocation2 + $0x2a8] sm:$0xff]
      %v3476 = vld [vmem:[#allocation2 + $0x2b0] sm:$0xff]
      %v3477 = vld [vmem:[#allocation2 + $0x2b8] sm:$0xff]
      %v3478 = vld [vmem:[#allocation2 + $0x2c0] sm:$0xff]
      %v3479 = vld [vmem:[#allocation2 + $0x2c8] sm:$0xff]
      %v3480 = vld [vmem:[#allocation2 + $0x2d0] sm:$0xff]
      %v3481 = vld [vmem:[#allocation2 + $0x2d8] sm:$0xff]
      %v3482 = vld [vmem:[#allocation2 + $0x2e0] sm:$0xff]
      %v3483 = vld [vmem:[#allocation2 + $0x2e8] sm:$0xff]
      %v3484 = vld [vmem:[#allocation2 + $0x2f0] sm:$0xff]
      %v3485 = vld [vmem:[#allocation2 + $0x2f8] sm:$0xff]
      %v3486 = vld [vmem:[#allocation2 + $0x300] sm:$0xff]
      %v3487 = vld [vmem:[#allocation2 + $0x308] sm:$0xff]
      %v3488 = vld [vmem:[#allocation2 + $0x310] sm:$0xff]
      %v3489 = vld [vmem:[#allocation2 + $0x318] sm:$0xff]
      %v3490 = vld [vmem:[#allocation2 + $0x320] sm:$0xff]
      %v3491 = vld [vmem:[#allocation2 + $0x328] sm:$0xff]
      %v3492 = vld [vmem:[#allocation2 + $0x330] sm:$0xff]
      %v3493 = vld [vmem:[#allocation2 + $0x338] sm:$0xff]
      %v3494 = vld [vmem:[#allocation2 + $0x340] sm:$0xff]
      %v3495 = vld [vmem:[#allocation2 + $0x348] sm:$0xff]
      %v3496 = vld [vmem:[#allocation2 + $0x350] sm:$0xff]
      %v3497 = vld [vmem:[#allocation2 + $0x358] sm:$0xff]
      %v3498 = vld [vmem:[#allocation2 + $0x360] sm:$0xff]
      %v3499 = vld [vmem:[#allocation2 + $0x368] sm:$0xff]
      %v3500 = vld [vmem:[#allocation2 + $0x370] sm:$0xff]
      %v3501 = vld [vmem:[#allocation2 + $0x378] sm:$0xff]
      %v3502 = vld [vmem:[%s4] sm:$0xf]
      %3504 = vset.pattern.permute.xlu0 0
      %3505 = vperm.xlu0 %3504, %v3502
      %v3506 = vpop.permute.xlu0 %3505
      %3508 = vmatprep.subr.mxu0 %v3391
      %3509 = vmatpush1.msra.mxu0 %v3390
      %3510 = vmatprep.subr.mxu0 %v3398
      %3511 = vmatpush1.msra.mxu0 %v3397
      %3512 = vmatprep.subr.mxu0 %v3405
      %3513 = vmatpush1.msra.mxu0 %v3404
      %3514 = vmatprep.subr.mxu0 %v3412
      %3515 = vmatpush1.msra.mxu0 %v3411
      %3516 = vmatprep.subr.mxu0 %v3419
      %3517 = vmatpush1.msra.mxu0 %v3418
      %3518 = vmatprep.subr.mxu0 %v3426
      %3519 = vmatpush1.msra.mxu0 %v3425
      %3520 = vmatprep.subr.mxu0 %v3433
      %3521 = vmatpush1.msra.mxu0 %v3432
      %3522 = vmatprep.subr.mxu0 %v3440
      %3523 = vmatpush1.msra.mxu0 %v3439
      %3524 = vmatprep.subr.mxu0 %v3447
      %3525 = vmatpush1.msra.mxu0 %v3446
      %3526 = vmatprep.subr.mxu0 %v3454
      %3527 = vmatpush1.msra.mxu0 %v3453
      %3528 = vmatprep.subr.mxu0 %v3461
      %3529 = vmatpush1.msra.mxu0 %v3460
      %3530 = vmatprep.subr.mxu0 %v3468
      %3531 = vmatpush1.msra.mxu0 %v3467
      %3532 = vmatprep.subr.mxu0 %v3475
      %3533 = vmatpush1.msra.mxu0 %v3474
      %3534 = vmatprep.subr.mxu0 %v3482
      %3535 = vmatpush1.msra.mxu0 %v3481
      %3536 = vmatprep.subr.mxu0 %v3489
      %3537 = vmatpush1.msra.mxu0 %v3488
      %3538 = vmatprep.subr.mxu0 %v3496
      %3539 = vmatpush1.msra.mxu0 %v3495
      %3540 = vmatprep.subr.mxu0 0.0
      %3541 = vmatpush1.msra.mxu0 0.0
      %3542 = vmatprep.subr.mxu0 0.0
      %3543 = vmatpush1.msra.mxu0 0.0
      %3544 = vmatprep.subr.mxu0 0.0
      %3545 = vmatpush1.msra.mxu0 0.0
      %3546 = vmatprep.subr.mxu0 0.0
      %3547 = vmatpush1.msra.mxu0 0.0
      %3548 = vmatprep.subr.mxu0 0.0
      %3549 = vmatpush1.msra.mxu0 0.0
      %3550 = vmatprep.subr.mxu0 0.0
      %3551 = vmatpush1.msra.mxu0 0.0
      %3552 = vmatprep.subr.mxu0 0.0
      %3553 = vmatpush1.msra.mxu0 0.0
      %3554 = vmatprep.subr.mxu0 0.0
      %3555 = vmatpush1.msra.mxu0 0.0
      %3556 = vmatprep.subr.mxu0 0.0
      %3557 = vmatpush1.msra.mxu0 0.0
      %3558 = vmatprep.subr.mxu0 0.0
      %3559 = vmatpush1.msra.mxu0 0.0
      %3560 = vmatprep.subr.mxu0 0.0
      %3561 = vmatpush1.msra.mxu0 0.0
      %3562 = vmatprep.subr.mxu0 0.0
      %3563 = vmatpush1.msra.mxu0 0.0
      %3564 = vmatprep.subr.mxu0 0.0
      %3565 = vmatpush1.msra.mxu0 0.0
      %3566 = vmatprep.subr.mxu0 0.0
      %3567 = vmatpush1.msra.mxu0 0.0
      %3568 = vmatprep.subr.mxu0 0.0
      %3569 = vmatpush1.msra.mxu0 0.0
      %3570 = vmatprep.subr.mxu0 0.0
      %3571 = vmatpush1.msra.mxu0 0.0
      %3572 = vmatprep.mubr.f32.mxu0 0.0
      %3573 = vmatmul.mubr.f32.gmra.mrb[0].mxu0 %v3389
      %v3574 = vpop.f32.mrb[0].mxu0
      %v3575 = vadd.f32 %v3506, %v3574
      %v3576 = vpop.f32.mrb[0].mxu0
      %v3577 = vadd.f32 %v3506, %v3576
      %3578 = vdwg.mxu0
      %3579 = vmatprep.subr.mxu0 %v3393
      %3580 = vmatpush1.msra.mxu0 %v3392
      %3581 = vmatprep.subr.mxu0 %v3400
      %3582 = vmatpush1.msra.mxu0 %v3399
      %3583 = vmatprep.subr.mxu0 %v3407
      %3584 = vmatpush1.msra.mxu0 %v3406
      %3585 = vmatprep.subr.mxu0 %v3414
      %3586 = vmatpush1.msra.mxu0 %v3413
      %3587 = vmatprep.subr.mxu0 %v3421
      %3588 = vmatpush1.msra.mxu0 %v3420
      %3589 = vmatprep.subr.mxu0 %v3428
      %3590 = vmatpush1.msra.mxu0 %v3427
      %3591 = vmatprep.subr.mxu0 %v3435
      %3592 = vmatpush1.msra.mxu0 %v3434
      %3593 = vmatprep.subr.mxu0 %v3442
      %3594 = vmatpush1.msra.mxu0 %v3441
      %3595 = vmatprep.subr.mxu0 %v3449
      %3596 = vmatpush1.msra.mxu0 %v3448
      %3597 = vmatprep.subr.mxu0 %v3456
      %3598 = vmatpush1.msra.mxu0 %v3455
      %3599 = vmatprep.subr.mxu0 %v3463
      %3600 = vmatpush1.msra.mxu0 %v3462
      %3601 = vmatprep.subr.mxu0 %v3470
      %3602 = vmatpush1.msra.mxu0 %v3469
      %3603 = vmatprep.subr.mxu0 %v3477
      %3604 = vmatpush1.msra.mxu0 %v3476
      %3605 = vmatprep.subr.mxu0 %v3484
      %3606 = vmatpush1.msra.mxu0 %v3483
      %3607 = vmatprep.subr.mxu0 %v3491
      %3608 = vmatpush1.msra.mxu0 %v3490
      %3609 = vmatprep.subr.mxu0 %v3498
      %3610 = vmatpush1.msra.mxu0 %v3497
      %3611 = vmatprep.subr.mxu0 0.0
      %3612 = vmatpush1.msra.mxu0 0.0
      %3613 = vmatprep.subr.mxu0 0.0
      %3614 = vmatpush1.msra.mxu0 0.0
      %3615 = vmatprep.subr.mxu0 0.0
      %3616 = vmatpush1.msra.mxu0 0.0
      %3617 = vmatprep.subr.mxu0 0.0
      %3618 = vmatpush1.msra.mxu0 0.0
      %3619 = vmatprep.subr.mxu0 0.0
      %3620 = vmatpush1.msra.mxu0 0.0
      %3621 = vmatprep.subr.mxu0 0.0
      %3622 = vmatpush1.msra.mxu0 0.0
      %3623 = vmatprep.subr.mxu0 0.0
      %3624 = vmatpush1.msra.mxu0 0.0
      %3625 = vmatprep.subr.mxu0 0.0
      %3626 = vmatpush1.msra.mxu0 0.0
      %3627 = vmatprep.subr.mxu0 0.0
      %3628 = vmatpush1.msra.mxu0 0.0
      %3629 = vmatprep.subr.mxu0 0.0
      %3630 = vmatpush1.msra.mxu0 0.0
      %3631 = vmatprep.subr.mxu0 0.0
      %3632 = vmatpush1.msra.mxu0 0.0
      %3633 = vmatprep.subr.mxu0 0.0
      %3634 = vmatpush1.msra.mxu0 0.0
      %3635 = vmatprep.subr.mxu0 0.0
      %3636 = vmatpush1.msra.mxu0 0.0
      %3637 = vmatprep.subr.mxu0 0.0
      %3638 = vmatpush1.msra.mxu0 0.0
      %3639 = vmatprep.subr.mxu0 0.0
      %3640 = vmatpush1.msra.mxu0 0.0
      %3641 = vmatprep.subr.mxu0 0.0
      %3642 = vmatpush1.msra.mxu0 0.0
      %3643 = vmatprep.mubr.f32.mxu0 0.0
      %3644 = vmatmul.mubr.f32.gmra.mrb[0].mxu0 %v3389
      %v3645 = vpop.f32.mrb[0].mxu0
      %v3646 = vadd.f32 %v3506, %v3645
      %v3647 = vpop.f32.mrb[0].mxu0
      %v3648 = vadd.f32 %v3506, %v3647
      %3649 = vdwg.mxu0
      %3650 = vmatprep.subr.mxu0 %v3395
      %3651 = vmatpush1.msra.mxu0 %v3394
      %3652 = vmatprep.subr.mxu0 %v3402
      %3653 = vmatpush1.msra.mxu0 %v3401
      %3654 = vmatprep.subr.mxu0 %v3409
      %3655 = vmatpush1.msra.mxu0 %v3408
      %3656 = vmatprep.subr.mxu0 %v3416
      %3657 = vmatpush1.msra.mxu0 %v3415
      %3658 = vmatprep.subr.mxu0 %v3423
      %3659 = vmatpush1.msra.mxu0 %v3422
      %3660 = vmatprep.subr.mxu0 %v3430
      %3661 = vmatpush1.msra.mxu0 %v3429
      %3662 = vmatprep.subr.mxu0 %v3437
      %3663 = vmatpush1.msra.mxu0 %v3436
      %3664 = vmatprep.subr.mxu0 %v3444
      %3665 = vmatpush1.msra.mxu0 %v3443
      %3666 = vmatprep.subr.mxu0 %v3451
      %3667 = vmatpush1.msra.mxu0 %v3450
      %3668 = vmatprep.subr.mxu0 %v3458
      %3669 = vmatpush1.msra.mxu0 %v3457
      %3670 = vmatprep.subr.mxu0 %v3465
      %3671 = vmatpush1.msra.mxu0 %v3464
      %3672 = vmatprep.subr.mxu0 %v3472
      %3673 = vmatpush1.msra.mxu0 %v3471
      %3674 = vmatprep.subr.mxu0 %v3479
      %3675 = vmatpush1.msra.mxu0 %v3478
      %3676 = vmatprep.subr.mxu0 %v3486
      %3677 = vmatpush1.msra.mxu0 %v3485
      %3678 = vmatprep.subr.mxu0 %v3493
      %3679 = vmatpush1.msra.mxu0 %v3492
      %3680 = vmatprep.subr.mxu0 %v3500
      %3681 = vmatpush1.msra.mxu0 %v3499
      %3682 = vmatprep.subr.mxu0 0.0
      %3683 = vmatpush1.msra.mxu0 0.0
      %3684 = vmatprep.subr.mxu0 0.0
      %3685 = vmatpush1.msra.mxu0 0.0
      %3686 = vmatprep.subr.mxu0 0.0
      %3687 = vmatpush1.msra.mxu0 0.0
      %3688 = vmatprep.subr.mxu0 0.0
      %3689 = vmatpush1.msra.mxu0 0.0
      %3690 = vmatprep.subr.mxu0 0.0
      %3691 = vmatpush1.msra.mxu0 0.0
      %3692 = vmatprep.subr.mxu0 0.0
      %3693 = vmatpush1.msra.mxu0 0.0
      %3694 = vmatprep.subr.mxu0 0.0
      %3695 = vmatpush1.msra.mxu0 0.0
      %3696 = vmatprep.subr.mxu0 0.0
      %3697 = vmatpush1.msra.mxu0 0.0
      %3698 = vmatprep.subr.mxu0 0.0
      %3699 = vmatpush1.msra.mxu0 0.0
      %3700 = vmatprep.subr.mxu0 0.0
      %3701 = vmatpush1.msra.mxu0 0.0
      %3702 = vmatprep.subr.mxu0 0.0
      %3703 = vmatpush1.msra.mxu0 0.0
      %3704 = vmatprep.subr.mxu0 0.0
      %3705 = vmatpush1.msra.mxu0 0.0
      %3706 = vmatprep.subr.mxu0 0.0
      %3707 = vmatpush1.msra.mxu0 0.0
      %3708 = vmatprep.subr.mxu0 0.0
      %3709 = vmatpush1.msra.mxu0 0.0
      %3710 = vmatprep.subr.mxu0 0.0
      %3711 = vmatpush1.msra.mxu0 0.0
      %3712 = vmatprep.subr.mxu0 0.0
      %3713 = vmatpush1.msra.mxu0 0.0
      %3714 = vmatprep.mubr.f32.mxu0 0.0
      %3715 = vmatmul.mubr.f32.gmra.mrb[0].mxu0 %v3389
      %v3716 = vpop.f32.mrb[0].mxu0
      %v3717 = vadd.f32 %v3506, %v3716
      %v3718 = vpop.f32.mrb[0].mxu0
      %v3719 = vadd.f32 %v3506, %v3718
      %3720 = vdwg.mxu0
      %3721 = vmatprep.subr.mxu0 0.0
      %3722 = vmatpush1.msra.mxu0 %v3396
      %3723 = vmatprep.subr.mxu0 0.0
      %3724 = vmatpush1.msra.mxu0 %v3403
      %3725 = vmatprep.subr.mxu0 0.0
      %3726 = vmatpush1.msra.mxu0 %v3410
      %3727 = vmatprep.subr.mxu0 0.0
      %3728 = vmatpush1.msra.mxu0 %v3417
      %3729 = vmatprep.subr.mxu0 0.0
      %3730 = vmatpush1.msra.mxu0 %v3424
      %3731 = vmatprep.subr.mxu0 0.0
      %3732 = vmatpush1.msra.mxu0 %v3431
      %3733 = vmatprep.subr.mxu0 0.0
      %3734 = vmatpush1.msra.mxu0 %v3438
      %3735 = vmatprep.subr.mxu0 0.0
      %3736 = vmatpush1.msra.mxu0 %v3445
      %3737 = vmatprep.subr.mxu0 0.0
      %3738 = vmatpush1.msra.mxu0 %v3452
      %3739 = vmatprep.subr.mxu0 0.0
      %3740 = vmatpush1.msra.mxu0 %v3459
      %3741 = vmatprep.subr.mxu0 0.0
      %3742 = vmatpush1.msra.mxu0 %v3466
      %3743 = vmatprep.subr.mxu0 0.0
      %3744 = vmatpush1.msra.mxu0 %v3473
      %3745 = vmatprep.subr.mxu0 0.0
      %3746 = vmatpush1.msra.mxu0 %v3480
      %3747 = vmatprep.subr.mxu0 0.0
      %3748 = vmatpush1.msra.mxu0 %v3487
      %3749 = vmatprep.subr.mxu0 0.0
      %3750 = vmatpush1.msra.mxu0 %v3494
      %3751 = vmatprep.subr.mxu0 0.0
      %3752 = vmatpush1.msra.mxu0 %v3501
      %3753 = vmatprep.subr.mxu0 0.0
      %3754 = vmatpush1.msra.mxu0 0.0
      %3755 = vmatprep.subr.mxu0 0.0
      %3756 = vmatpush1.msra.mxu0 0.0
      %3757 = vmatprep.subr.mxu0 0.0
      %3758 = vmatpush1.msra.mxu0 0.0
      %3759 = vmatprep.subr.mxu0 0.0
      %3760 = vmatpush1.msra.mxu0 0.0
      %3761 = vmatprep.subr.mxu0 0.0
      %3762 = vmatpush1.msra.mxu0 0.0
      %3763 = vmatprep.subr.mxu0 0.0
      %3764 = vmatpush1.msra.mxu0 0.0
      %3765 = vmatprep.subr.mxu0 0.0
      %3766 = vmatpush1.msra.mxu0 0.0
      %3767 = vmatprep.subr.mxu0 0.0
      %3768 = vmatpush1.msra.mxu0 0.0
      %3769 = vmatprep.subr.mxu0 0.0
      %3770 = vmatpush1.msra.mxu0 0.0
      %3771 = vmatprep.subr.mxu0 0.0
      %3772 = vmatpush1.msra.mxu0 0.0
      %3773 = vmatprep.subr.mxu0 0.0
      %3774 = vmatpush1.msra.mxu0 0.0
      %3775 = vmatprep.subr.mxu0 0.0
      %3776 = vmatpush1.msra.mxu0 0.0
      %3777 = vmatprep.subr.mxu0 0.0
      %3778 = vmatpush1.msra.mxu0 0.0
      %3779 = vmatprep.subr.mxu0 0.0
      %3780 = vmatpush1.msra.mxu0 0.0
      %3781 = vmatprep.subr.mxu0 0.0
      %3782 = vmatpush1.msra.mxu0 0.0
      %3783 = vmatprep.subr.mxu0 0.0
      %3784 = vmatpush1.msra.mxu0 0.0
      %3785 = vmatprep.mubr.f32.mxu0 0.0
      %3786 = vmatmul.mubr.f32.gmra.mrb[0].mxu0 %v3389
      %v3787 = vpop.f32.mrb[0].mxu0
      %v3788 = vadd.f32 %v3506, %v3787
      %v3789 = vpop.f32.mrb[0].mxu0
      %3790 = vdwg.mxu0
      %v3791 = vld [vmem:[%s246] sm:$0xff]
      %v3792 = vld [vmem:[%s246 + $0x8] sm:$0xff]
      %v3793 = vld [vmem:[%s246 + $0x10] sm:$0xff]
      %v3794 = vld [vmem:[%s246 + $0x18] sm:$0xff]
      %v3799 = vcombine.high %v3791, %v3791
      %v3800 = vcombine.high %v3792, %v3792
      %v3801 = vcombine.high %v3793, %v3793
      %v3802 = vcombine.high %v3794, %v3794
      %3803 = vrot.lane.b32.xlu0 %v3791, 17
      %v3804 = vpop.permute.xlu0 %3803
      %3805 = vrot.lane.b32.xlu0 %v3799, 17
      %v3806 = vpop.permute.xlu0 %3805
      %3807 = vrot.lane.b32.xlu0 %v3792, 17
      %v3808 = vpop.permute.xlu0 %3807
      %3809 = vrot.lane.b32.xlu0 %v3800, 17
      %v3810 = vpop.permute.xlu0 %3809
      %3811 = vrot.lane.b32.xlu0 %v3793, 17
      %v3812 = vpop.permute.xlu0 %3811
      %3813 = vrot.lane.b32.xlu0 %v3801, 17
      %v3814 = vpop.permute.xlu0 %3813
      %3815 = vrot.lane.b32.xlu0 %v3794, 17
      %v3816 = vpop.permute.xlu0 %3815
      %3817 = vrot.lane.b32.xlu0 %v3802, 17
      %v3818 = vpop.permute.xlu0 %3817
      %v3819 = vsel %vm927, %v3804, %v3806
      %v3820 = vsel %vm927, %v3806, %v3808
      %v3821 = vsel %vm927, %v3808, %v3810
      %v3822 = vsel %vm927, %v3810, %v3812
      %v3823 = vsel %vm927, %v3812, %v3814
      %v3824 = vsel %vm927, %v3814, %v3816
      %v3825 = vsel %vm927, %v3816, %v3818
      %v3833 = vadd.f32 %v3575, %v3819
      %v3834 = vadd.f32 %v3577, %v3820
      %v3835 = vadd.f32 %v3646, %v3821
      %v3836 = vadd.f32 %v3648, %v3822
      %v3837 = vadd.f32 %v3717, %v3823
      %v3838 = vadd.f32 %v3719, %v3824
      %v3839 = vadd.f32 %v3788, %v3825
      %v3840 = vmax.f32 %v3833, 0.0
      %v3841 = vmax.f32 %v3834, 0.0
      %v3842 = vmax.f32 %v3835, 0.0
      %v3843 = vmax.f32 %v3836, 0.0
      %v3844 = vmax.f32 %v3837, 0.0
      %v3845 = vmax.f32 %v3838, 0.0
      %v3846 = vmax.f32 %v3839, 0.0
      %v3853 = vcombine.low %v3840, %v3841
      %v3854 = vcombine.low %v3842, %v3843
      %v3855 = vcombine.low %v3844, %v3845
      %3859 = vst [vmem:[%s251] sm:$0xff] %v3853
      %3860 = vst [vmem:[%s251 + $0x8] sm:$0xff] %v3854
      %3861 = vst [vmem:[%s251 + $0x10] sm:$0xff] %v3855
      %3862 = vst [vmem:[%s251 + $0x18] sm:$0xf] %v3846
      %p3863 = scmp.lt.s32.totalorder %s17, 1
      %s3864 = scalar_select %p3863, %s17, 1
      %s3865 = smul.addr %s3864, 7
      %s3866 = smul.addr %s3865, 4
      %s3867 = scalar_lea.vmem %s6, %s3866
      // Predicated region
      $region45: #{res_block_3d_no_bn.1} parent=43 // pred_check
        %p3868 = pneg %p166
      $region46: #{res_block_3d_no_bn.1} parent=43 // pred_check_branch
        %3870 = sbr.rel (%p3868) target = $region48
      $region47: #{res_block_3d_no_bn.1} parent=43 // pred_region
        _
      $region48: #{res_block_3d_no_bn.1} parent=43 // pred_fallthru
        _
    $region44: #{res_block_3d_no_bn.1} parent=5 // pred_fallthru
      _
    %p3871 = scmp.le.s32.totalorder 2, %s12
    // Predicated region
    $region49: #{res_block_3d_no_bn.1} parent=5 // pred_check
      %p3872 = pneg %p3871
    $region50: #{res_block_3d_no_bn.1} parent=5 // pred_check_branch
      %3874 = sbr.rel (%p3872) target = $region52
    $region51: #{res_block_3d_no_bn.1} parent=5 // pred_region
      %s3875 = ssub.s32 %s12, 2
      // Predicated region
      $region53: #{res_block_3d_no_bn.1} parent=51 // pred_check
        %p3876 = pneg %p172
      $region54: #{res_block_3d_no_bn.1} parent=51 // pred_check_branch
        %3878 = sbr.rel (%p3876) target = $region56
      $region55: #{res_block_3d_no_bn.1} parent=51 // pred_region
        %p3879 = scmp.lt.s32.totalorder %s18, 1
        %s3880 = scalar_select %p3879, %s18, 1
        %s3881 = smul.addr %s3880, 7
        %s3882 = smul.addr %s3881, 4
        %s3883 = scalar_lea.vmem %s6, %s3882
      $region56: #{res_block_3d_no_bn.1} parent=51 // pred_fallthru
        _
    $region52: #{res_block_3d_no_bn.1} parent=5 // pred_fallthru
      _
  $region6: #{res_block_3d_no_bn.1} parent=0 // loop_footer
    %s16 = sadd.s32 1, %s12
  $region7: #{res_block_3d_no_bn.1} parent=0 // loop_footer_branch
    %11 = sbr.rel target = $region3
  $region8: #{res_block_3d_no_bn.1} parent=0 // loop_exit
    _

</llo_original>
